<compile_context>
chip_gen: v5e
topology: v5e:2x2
jax: 0.10.0
libtpu: 0.0.40
codegen_flags: <defaults>
</compile_context>

<pallas_src>
import functools

import numpy as np
import jax
import jax.numpy as jnp
from jax.experimental import pallas as pl
from jax.experimental.pallas import tpu as pltpu


def _round_up(x, m):
    return (x + m - 1) // m * m


# ------------------------------------------------------------------ kernel --
def _matmul_bias_act_kernel(a_ref, b_ref, s_ref, o_ref, *, act):
    """o = act(a @ b + shift); full-K single pass, f32 accumulate + epilogue."""
    y = jnp.dot(a_ref[...], b_ref[...], preferred_element_type=jnp.float32)
    y = y + s_ref[...].astype(jnp.float32)
    if act == "relu":
        y = jnp.maximum(y, 0.0)
    elif act == "tanh":
        y = jnp.tanh(y)
    o_ref[...] = y.astype(o_ref.dtype)


def matmul_bias_act(a, b, shift, act=None, out_dtype=jnp.float32,
                    bm_cap=256, bn_cap=2048):
    """act(a @ b + shift) as a single Pallas call.

    K is kept whole (full-K blocks => no accumulator scratch / K revisits).
    M and N are tiled with fixed caps; non-dividing tails are zero-padded and
    sliced off, which keeps every block (8,128)-legal for any problem size.
    `shift` is either (1, N) (per output column) or (M, 1) (per output row).
    """
    m, k = a.shape
    k2, n = b.shape
    assert k == k2, (k, k2)
    assert shift.shape in ((1, n), (m, 1)), shift.shape
    row_shift = shift.shape == (m, 1)

    # --- tile sizes (hardened: fixed caps + padded tail) ---
    if m <= bm_cap:
        bm, mp = m, m
    else:
        bm, mp = bm_cap, _round_up(m, bm_cap)
    if n <= bn_cap:
        bn, np_ = n, n
    else:
        bn, np_ = bn_cap, _round_up(n, bn_cap)
    # v7x: give reasonably sized problems >= 2 parallel grid steps so both
    # TensorCores get work (neutral on single-core v5e / v6e).
    if mp // bm == 1 and np_ // bn == 1:
        if n >= 256 and n % 256 == 0:
            bn = n // 2
        elif m >= 16 and m % 16 == 0:
            bm = m // 2
    gm, gn = mp // bm, np_ // bn

    if mp != m:
        a = jnp.pad(a, ((0, mp - m), (0, 0)))
        if row_shift:
            shift = jnp.pad(shift, ((0, mp - m), (0, 0)))
    if np_ != n:
        b = jnp.pad(b, ((0, 0), (0, np_ - n)))
        if not row_shift:
            shift = jnp.pad(shift, ((0, 0), (0, np_ - n)))

    if row_shift:
        s_block, s_map, s_const = (bm, 1), (lambda i, j: (i, 0)), gm == 1
    else:
        s_block, s_map, s_const = (1, bn), (lambda i, j: (0, j)), gn == 1

    def _spec(block, imap, const):
        # Grid-invariant operands are single-buffered: double-buffering a block
        # whose index never changes is pure VMEM waste (v7x has only 64 MiB).
        if const:
            return pl.BlockSpec(block, imap, pipeline_mode=pl.Buffered(1))
        return pl.BlockSpec(block, imap)

    def _bytes(shape, dtype):
        return int(np.prod(shape)) * jnp.dtype(dtype).itemsize

    vmem_need = (_bytes((bm, k), a.dtype) * (1 if gm == 1 else 2)
                 + _bytes((k, bn), b.dtype) * (1 if gn == 1 else 2)
                 + _bytes(s_block, shift.dtype) * 2
                 + _bytes((bm, bn), out_dtype) * 2)
    vmem_limit = int(min(max(2 * vmem_need + (8 << 20), 16 << 20), 48 << 20))

    out = pl.pallas_call(
        functools.partial(_matmul_bias_act_kernel, act=act),
        out_shape=jax.ShapeDtypeStruct((mp, np_), out_dtype),
        grid=(gm, gn),
        in_specs=[
            _spec((bm, k), lambda i, j: (i, 0), gm == 1),
            _spec((k, bn), lambda i, j: (0, j), gn == 1),
            _spec(s_block, s_map, s_const),
        ],
        out_specs=pl.BlockSpec((bm, bn), lambda i, j: (i, j)),
        compiler_params=pltpu.CompilerParams(
            dimension_semantics=("parallel", "parallel"),
            vmem_limit_bytes=vmem_limit),
    )(a, b, shift)
    if (mp, np_) != (m, n):
        out = out[:m, :n]
    return out


# ------------------------------------------------ conv-transpose weight prep --
def _prep_convt_s2_weight(w):
    """ConvTranspose2d(k=4, s=2, p=1) weight (Cin, Cout, 4, 4) -> matmul B.

    Rows iterate the 3x3 im2col window of the 1-padded input as (dy, dx, cin);
    columns iterate the four output sub-pixel phases as (py, px, cout).
    Output fine pixel (2m+py, 2q+px) uses padded input rows m+py+dy (dy in
    {0,1}) with kernel tap ky = 3 - 2*dy - py (same decomposition along x).
    """
    w = np.asarray(w, np.float32)
    cin, cout = w.shape[0], w.shape[1]
    bmat = np.zeros((3, 3, cin, 2, 2, cout), np.float32)
    for py in range(2):
        for px in range(2):
            for dy in range(2):
                for dx in range(2):
                    ky = 3 - 2 * dy - py
                    kx = 3 - 2 * dx - px
                    bmat[py + dy, px + dx, :, py, px, :] = w[:, :, ky, kx]
    return bmat.reshape(9 * cin, 4 * cout)


def _bn_fold(bn, eps=1e-5):
    g = np.asarray(bn["gamma"], np.float32)
    b = np.asarray(bn["beta"], np.float32)
    rm = np.asarray(bn["running_mean"], np.float32)
    rv = np.asarray(bn["running_var"], np.float32)
    scale = g / np.sqrt(rv + eps)
    return scale, b - rm * scale


# --------------------------------------------------------------- layer glue --
def _phase_to_patches(r, n, h, w, c):
    """Up-block result (n*h*w, 4c) [cols (py,px,c)] -> next layer's im2col
    patch matrix (n*2h*2w, 9c) [cols (dy,dx,c)], rows in NHWC order."""
    fine = r.reshape(n, h, w, 2, 2, c).transpose(0, 1, 3, 2, 4, 5)
    fine = fine.reshape(n, 2 * h, 2 * w, c)
    hp = jnp.pad(fine, ((0, 0), (1, 1), (1, 1), (0, 0)))
    taps = [hp[:, dy:dy + 2 * h, dx:dx + 2 * w, :]
            for dy in range(3) for dx in range(3)]
    return jnp.stack(taps, axis=3).reshape(n * 2 * h * 2 * w, 9 * c)


def _phase_to_patches_t(r, n, h, w, c):
    """Up-block result (n*h*w, 4c) -> TRANSPOSED patch matrix (9c, n*2h*2w)
    (channel-first) feeding the lane-dense final layer."""
    fcf = r.reshape(n, h, w, 2, 2, c).transpose(5, 0, 1, 3, 2, 4)
    fcf = fcf.reshape(c, n, 2 * h, 2 * w)
    hp = jnp.pad(fcf, ((0, 0), (0, 0), (1, 1), (1, 1)))
    taps = [hp[:, :, dy:dy + 2 * h, dx:dx + 2 * w].reshape(c, n * 4 * h * w)
            for dy in range(3) for dx in range(3)]
    return jnp.concatenate(taps, axis=0)


def _final_t_to_nchw(out_t, n, h, w, cimg):
    """Final transposed result (4*cimg, n*h*w) [rows (py,px,c), cols (n,i,j)]
    -> NCHW (n, cimg, 2h, 2w)."""
    o = out_t.reshape(2, 2, cimg, n, h, w).transpose(3, 2, 4, 0, 5, 1)
    return o.reshape(n, cimg, 2 * h, 2 * w)


# ------------------------------------------------------------------- params --
def init_params(key, channels_noise, channels_img, image_size, features_g,
                d_conditional=9, conditional=False):
    assert image_size in (64, 128), "module only defines a net for 64 / 128"
    keys = iter(jax.random.split(key, 64))

    def w(shape, s=0.05):
        return (s * jax.random.normal(next(keys), shape)).astype(jnp.float32)

    def bn(c):
        return dict(
            gamma=(1.0 + 0.1 * jax.random.normal(next(keys), (c,))).astype(jnp.float32),
            beta=(0.1 * jax.random.normal(next(keys), (c,))).astype(jnp.float32),
            running_mean=(0.1 * jax.random.normal(next(keys), (c,))).astype(jnp.float32),
            running_var=(0.8 + 0.2 * jax.random.uniform(next(keys), (c,))).astype(jnp.float32),
        )

    fg = features_g
    d_ch_cond = 50 if conditional else 0
    p = {}
    if conditional:
        p["embed_w"] = w((50, d_conditional))   # nn.Linear(d_cond, 50, bias=False)
    p["b1"] = dict(w=w((channels_noise + d_ch_cond, fg * 16, 4, 4)), bn=bn(fg * 16))
    p["b2"] = dict(w=w((fg * 16, fg * 8, 4, 4)), bn=bn(fg * 8))
    p["b3"] = dict(w=w((fg * 8, fg * 4, 4, 4)), bn=bn(fg * 4))
    p["b4"] = dict(w=w((fg * 4, fg * 2, 4, 4)), bn=bn(fg * 2))
    if image_size == 128:
        p["b5"] = dict(w=w((fg * 2, fg, 4, 4)), bn=bn(fg))
        p["final"] = dict(w=w((fg, channels_img, 4, 4)), b=w((channels_img,)))
    else:
        p["final"] = dict(w=w((fg * 2, channels_img, 4, 4)), b=w((channels_img,)))
    return p


def prepare_params(params, channels_noise, conditional):
    """One-time weight prep (all folding / reordering hoisted out of forward)."""
    prep = {"channels_noise": int(channels_noise), "conditional": bool(conditional)}

    # ---- layer 1 (ConvT k4 s1 p0 on 1x1 latent) fused with layer-2 im2col ----
    w1 = np.asarray(params["b1"]["w"], np.float32)              # (cin_tot, c1, 4, 4)
    cin_tot, c1 = w1.shape[0], w1.shape[1]
    b1 = w1.transpose(0, 2, 3, 1).reshape(cin_tot, 16 * c1)     # cols (ky, kx, c)
    s1, t1 = _bn_fold(params["b1"]["bn"])
    b1 = b1 * np.tile(s1, 16)[None, :]                          # fold BN scale
    t1 = np.tile(t1, 16)
    b1r, t1r = b1.reshape(cin_tot, 16, c1), t1.reshape(16, c1)
    # Column gather: emit layer-2's 3x3 im2col patches of the (1-padded) 4x4
    # output directly; relu(0)=0, so out-of-range taps fold to zero columns.
    b1g = np.zeros((cin_tot, 16, 9, c1), np.float32)
    t1g = np.zeros((16, 9, c1), np.float32)
    for i in range(4):
        for j in range(4):
            for dy in range(3):
                for dx in range(3):
                    yy, xx = i + dy - 1, j + dx - 1
                    if 0 <= yy < 4 and 0 <= xx < 4:
                        b1g[:, i * 4 + j, dy * 3 + dx, :] = b1r[:, yy * 4 + xx, :]
                        t1g[i * 4 + j, dy * 3 + dx, :] = t1r[yy * 4 + xx, :]
    b1g = b1g.reshape(cin_tot, 144 * c1)
    t1g = t1g.reshape(144 * c1)
    if conditional:
        cn = channels_noise
        emb = np.asarray(params["embed_w"], np.float32)         # (50, d_cond)
        # Fold nn.Linear(d_cond, 50, bias=False): [x | y E^T] B = x Bx + y (E^T By)
        b1g = np.concatenate([b1g[:cn], emb.T @ b1g[cn:]], axis=0)
    k1 = b1g.shape[0]
    k1p = _round_up(k1, 16)
    b1g = np.pad(b1g, ((0, k1p - k1), (0, 0)))
    prep["l1"] = dict(b=jnp.asarray(b1g, jnp.bfloat16),
                      shift=jnp.asarray(t1g[None, :], jnp.float32),
                      kp=int(k1p), cout=int(c1))

    # ---- up blocks: ConvT(k4 s2 p1, no bias) + BN + ReLU ----
    ups = []
    for name in ("b2", "b3", "b4", "b5"):
        if name not in params:
            continue
        wl = np.asarray(params[name]["w"], np.float32)
        bmat = _prep_convt_s2_weight(wl)                        # (9cin, 4cout)
        s, t = _bn_fold(params[name]["bn"])
        bmat = bmat * np.tile(s, 4)[None, :]                    # fold BN scale
        ups.append(dict(b=jnp.asarray(bmat, jnp.bfloat16),
                        shift=jnp.asarray(np.tile(t, 4)[None, :], jnp.float32),
                        cout=int(wl.shape[1])))
    prep["ups"] = ups

    # ---- final: ConvT(k4 s2 p1, bias) + Tanh, computed transposed ----
    wf = np.asarray(params["final"]["w"], np.float32)
    bf = np.asarray(params["final"]["b"], np.float32)
    bfm = _prep_convt_s2_weight(wf)                             # (9cin, 4cimg)
    prep["final"] = dict(a=jnp.asarray(bfm.T, jnp.bfloat16),    # (4cimg, 9cin)
                         shift=jnp.asarray(np.tile(bf, 4)[:, None], jnp.float32),
                         cimg=int(wf.shape[1]))
    return prep


# ------------------------------------------------------------------ forward --
def generator1_forward(prep, x, y=None):
    n = x.shape[0]
    cn = prep["channels_noise"]
    a = x.reshape(n, cn)
    if prep["conditional"] and y is not None:
        a = jnp.concatenate([a, y], axis=1)          # embed folded into l1.b
    l1 = prep["l1"]
    a = jnp.pad(a, ((0, 0), (0, l1["kp"] - a.shape[1]))).astype(jnp.bfloat16)

    # Layer 1 fused with layer-2's im2col: the output IS b2's patch matrix.
    p = matmul_bias_act(a, l1["b"], l1["shift"], "relu", jnp.bfloat16)
    h = p.reshape(n * 16, 9 * l1["cout"])            # free (contiguous) reshape
    hh = ww = 4

    ups = prep["ups"]
    for li, up in enumerate(ups):
        r = matmul_bias_act(h, up["b"], up["shift"], "relu", jnp.bfloat16)
        if li + 1 < len(ups):
            h = _phase_to_patches(r, n, hh, ww, up["cout"])
        else:
            h = _phase_to_patches_t(r, n, hh, ww, up["cout"])
        hh, ww = 2 * hh, 2 * ww

    f = prep["final"]
    out_t = matmul_bias_act(f["a"], h, f["shift"], "tanh", jnp.float32)
    return _final_t_to_nchw(out_t, n, hh, ww, f["cimg"])


# --------------------------------------------------- numpy reference (check) --
def _np_convt(x, w, stride, pad):
    """ConvTranspose2d reference.  x: (N,Cin,H,W), w: (Cin,Cout,k,k)."""
    n, _, h, wd = x.shape
    cout, k = w.shape[1], w.shape[2]
    ho = (h - 1) * stride - 2 * pad + k
    wo = (wd - 1) * stride - 2 * pad + k
    out = np.zeros((n, cout, ho, wo), np.float64)
    for ky in range(k):
        for kx in range(k):
            tap = np.einsum("nihw,io->nohw", x, w[:, :, ky, kx])
            oy = np.arange(h) * stride - pad + ky
            ox = np.arange(wd) * stride - pad + kx
            my = (oy >= 0) & (oy < ho)
            mx = (ox >= 0) & (ox < wo)
            out[:, :, oy[my][:, None], ox[mx][None, :]] += tap[:, :, my][:, :, :, mx]
    return out


def _np_bn_relu(x, bn, eps=1e-5):
    g, b = np.asarray(bn["gamma"], np.float64), np.asarray(bn["beta"], np.float64)
    rm = np.asarray(bn["running_mean"], np.float64)
    rv = np.asarray(bn["running_var"], np.float64)
    y = (x - rm[None, :, None, None]) / np.sqrt(rv + eps)[None, :, None, None]
    y = y * g[None, :, None, None] + b[None, :, None, None]
    return np.maximum(y, 0.0)


def reference_forward_np(params, x, y, channels_noise, conditional):
    a = np.asarray(x, np.float64).reshape(x.shape[0], channels_noise)
    if conditional and y is not None:
        emb = np.asarray(y, np.float64) @ np.asarray(params["embed_w"], np.float64).T
        a = np.concatenate([a, emb], axis=1)
    h = a[:, :, None, None]
    h = _np_bn_relu(_np_convt(h, np.asarray(params["b1"]["w"], np.float64), 1, 0),
                    params["b1"]["bn"])
    for name in ("b2", "b3", "b4", "b5"):
        if name not in params:
            continue
        h = _np_bn_relu(_np_convt(h, np.asarray(params[name]["w"], np.float64), 2, 1),
                        params[name]["bn"])
    h = _np_convt(h, np.asarray(params["final"]["w"], np.float64), 2, 1)
    h = h + np.asarray(params["final"]["b"], np.float64)[None, :, None, None]
    return np.tanh(h)


# --------------------------------------------------------------------- main --
if __name__ == "__main__":
    CHANNELS_NOISE = 100
    CHANNELS_IMG = 3
    IMAGE_SIZE = 64
    FEATURES_G = 8
    D_COND = 9
    CONDITIONAL = True
    BATCH = 2

    key = jax.random.PRNGKey(0)
    k_p, k_x, k_y = jax.random.split(key, 3)
    params = init_params(k_p, CHANNELS_NOISE, CHANNELS_IMG, IMAGE_SIZE,
                         FEATURES_G, D_COND, CONDITIONAL)
    prep = prepare_params(params, CHANNELS_NOISE, CONDITIONAL)

    x = jax.random.normal(k_x, (BATCH, CHANNELS_NOISE, 1, 1), jnp.float32)
    y = jax.random.normal(k_y, (BATCH, D_COND), jnp.float32)

    fwd = jax.jit(functools.partial(generator1_forward, prep))
    out = jax.block_until_ready(fwd(x, y))

    assert out.shape == (BATCH, CHANNELS_IMG, IMAGE_SIZE, IMAGE_SIZE), out.shape
    assert bool(jnp.all(jnp.isfinite(out)))
    assert bool(jnp.all(jnp.abs(out) <= 1.0 + 1e-6))        # final Tanh range

    # Numerical check of the full pipeline (incl. the sub-pixel tap mapping and
    # all weight folds) against a straightforward float64 ConvTranspose2d
    # reference; tolerance accounts for bf16 weights / intermediate activations.
    ref = reference_forward_np(params, np.asarray(x), np.asarray(y),
                               CHANNELS_NOISE, CONDITIONAL)
    diff = np.abs(np.asarray(out, np.float64) - ref)
    assert float(diff.mean()) < 1.5e-2 and float(diff.max()) < 1.5e-1, \
        (float(diff.mean()), float(diff.max()))
    print("KERNEL_OK")
</pallas_src>

<mosaic_0001>
module attributes {stable_mosaic.version = 11 : i64} {
  func.func @_matmul_bias_act_kernel(%arg0: i32, %arg1: i32, %arg2: memref<2x112xbf16, #tpu.memory_space<vmem>>, %arg3: memref<112x2048xbf16, #tpu.memory_space<vmem>>, %arg4: memref<1x2048xf32, #tpu.memory_space<vmem>>, %arg5: memref<2x2048xbf16, #tpu.memory_space<vmem>>) attributes {dimension_semantics = [#tpu.dimension_semantics<parallel>, #tpu.dimension_semantics<parallel>], iteration_bounds = array<i64: 1, 9>, scalar_prefetch = 0 : i64, scratch_operands = 0 : i64, tpu.core_type = #tpu.core_type<tc>, window_params = [{pipeline_mode = #tpu.pipeline_mode<synchronous>, transform_indices = @transform_0, window_bounds = array<i64: 2, 112>}, {transform_indices = @transform_1, window_bounds = array<i64: 112, 2048>}, {transform_indices = @transform_2, window_bounds = array<i64: 1, 2048>}, {transform_indices = @transform_3, window_bounds = array<i64: 2, 2048>}]} {
    %c0 = arith.constant 0 : index
    %c0_0 = arith.constant 0 : index
    %0 = vector.load %arg2[%c0, %c0_0] : memref<2x112xbf16, #tpu.memory_space<vmem>>, vector<2x112xbf16>
    %c0_1 = arith.constant 0 : index
    %c0_2 = arith.constant 0 : index
    %1 = vector.load %arg3[%c0_1, %c0_2] : memref<112x2048xbf16, #tpu.memory_space<vmem>>, vector<112x2048xbf16>
    %cst = arith.constant dense<0.000000e+00> : vector<2x2048xf32>
    %2 = tpu.matmul %0, %1, %cst {dimension_numbers = #tpu.dot_dimension_numbers<[1], [0], [0], [1], [0, 0, 1, 1], [], []>} : vector<2x112xbf16>, vector<112x2048xbf16>, vector<2x2048xf32> -> vector<2x2048xf32>
    %c0_3 = arith.constant 0 : index
    %c0_4 = arith.constant 0 : index
    %3 = vector.load %arg4[%c0_3, %c0_4] : memref<1x2048xf32, #tpu.memory_space<vmem>>, vector<1x2048xf32>
    %4 = vector.broadcast %3 : vector<1x2048xf32> to vector<2x2048xf32>
    %5 = arith.addf %2, %4 : vector<2x2048xf32>
    %cst_5 = arith.constant 0.000000e+00 : f32
    %6 = vector.broadcast %cst_5 : f32 to vector<2x2048xf32>
    %7 = arith.maximumf %5, %6 : vector<2x2048xf32>
    %8 = arith.truncf %7 : vector<2x2048xf32> to vector<2x2048xbf16>
    %c0_6 = arith.constant 0 : index
    %c0_7 = arith.constant 0 : index
    %9 = vector.load %arg5[%c0_6, %c0_7] : memref<2x2048xbf16, #tpu.memory_space<vmem>>, vector<2x2048xbf16>
    tpu.vector_store %arg5[%c0_6, %c0_7], %8 {strides = array<i32>} : memref<2x2048xbf16, #tpu.memory_space<vmem>>, vector<2x2048xbf16>,
    return
  }
  func.func @transform_0(%arg0: i32, %arg1: i32) -> (i32, i32) {
    %c0_i32 = arith.constant 0 : i32
    %c0_i32_0 = arith.constant 0 : i32
    return %arg0, %c0_i32 : i32, i32
  }
  func.func @transform_1(%arg0: i32, %arg1: i32) -> (i32, i32) {
    %c0_i32 = arith.constant 0 : i32
    %c0_i32_0 = arith.constant 0 : i32
    return %c0_i32, %arg1 : i32, i32
  }
  func.func @transform_2(%arg0: i32, %arg1: i32) -> (i32, i32) {
    %c0_i32 = arith.constant 0 : i32
    %c0_i32_0 = arith.constant 0 : i32
    return %c0_i32, %arg1 : i32, i32
  }
  func.func @transform_3(%arg0: i32, %arg1: i32) -> (i32, i32) {
    %c0_i32 = arith.constant 0 : i32
    return %arg0, %arg1 : i32, i32
  }
}

module attributes {stable_mosaic.version = 11 : i64} {
  func.func @_matmul_bias_act_kernel(%arg0: i32, %arg1: i32, %arg2: memref<32x1152xbf16, #tpu.memory_space<vmem>>, %arg3: memref<1152x128xbf16, #tpu.memory_space<vmem>>, %arg4: memref<1x128xf32, #tpu.memory_space<vmem>>, %arg5: memref<32x128xbf16, #tpu.memory_space<vmem>>) attributes {dimension_semantics = [#tpu.dimension_semantics<parallel>, #tpu.dimension_semantics<parallel>], iteration_bounds = array<i64: 1, 2>, scalar_prefetch = 0 : i64, scratch_operands = 0 : i64, tpu.core_type = #tpu.core_type<tc>, window_params = [{pipeline_mode = #tpu.pipeline_mode<synchronous>, transform_indices = @transform_0, window_bounds = array<i64: 32, 1152>}, {transform_indices = @transform_1, window_bounds = array<i64: 1152, 128>}, {transform_indices = @transform_2, window_bounds = array<i64: 1, 128>}, {transform_indices = @transform_3, window_bounds = array<i64: 32, 128>}]} {
    %c0 = arith.constant 0 : index
    %c0_0 = arith.constant 0 : index
    %0 = vector.load %arg2[%c0, %c0_0] : memref<32x1152xbf16, #tpu.memory_space<vmem>>, vector<32x1152xbf16>
    %c0_1 = arith.constant 0 : index
    %c0_2 = arith.constant 0 : index
    %1 = vector.load %arg3[%c0_1, %c0_2] : memref<1152x128xbf16, #tpu.memory_space<vmem>>, vector<1152x128xbf16>
    %cst = arith.constant dense<0.000000e+00> : vector<32x128xf32>
    %2 = tpu.matmul %0, %1, %cst {dimension_numbers = #tpu.dot_dimension_numbers<[1], [0], [0], [1], [0, 0, 1, 1], [], []>} : vector<32x1152xbf16>, vector<1152x128xbf16>, vector<32x128xf32> -> vector<32x128xf32>
    %c0_3 = arith.constant 0 : index
    %c0_4 = arith.constant 0 : index
    %3 = vector.load %arg4[%c0_3, %c0_4] : memref<1x128xf32, #tpu.memory_space<vmem>>, vector<1x128xf32>
    %4 = vector.broadcast %3 : vector<1x128xf32> to vector<32x128xf32>
    %5 = arith.addf %2, %4 : vector<32x128xf32>
    %cst_5 = arith.constant 0.000000e+00 : f32
    %6 = vector.broadcast %cst_5 : f32 to vector<32x128xf32>
    %7 = arith.maximumf %5, %6 : vector<32x128xf32>
    %8 = arith.truncf %7 : vector<32x128xf32> to vector<32x128xbf16>
    %c0_6 = arith.constant 0 : index
    %c0_7 = arith.constant 0 : index
    %9 = vector.load %arg5[%c0_6, %c0_7] : memref<32x128xbf16, #tpu.memory_space<vmem>>, vector<32x128xbf16>
    tpu.vector_store %arg5[%c0_6, %c0_7], %8 {strides = array<i32>} : memref<32x128xbf16, #tpu.memory_space<vmem>>, vector<32x128xbf16>,
    return
  }
  func.func @transform_0(%arg0: i32, %arg1: i32) -> (i32, i32) {
    %c0_i32 = arith.constant 0 : i32
    %c0_i32_0 = arith.constant 0 : i32
    return %arg0, %c0_i32 : i32, i32
  }
  func.func @transform_1(%arg0: i32, %arg1: i32) -> (i32, i32) {
    %c0_i32 = arith.constant 0 : i32
    %c0_i32_0 = arith.constant 0 : i32
    return %c0_i32, %arg1 : i32, i32
  }
  func.func @transform_2(%arg0: i32, %arg1: i32) -> (i32, i32) {
    %c0_i32 = arith.constant 0 : i32
    %c0_i32_0 = arith.constant 0 : i32
    return %c0_i32, %arg1 : i32, i32
  }
  func.func @transform_3(%arg0: i32, %arg1: i32) -> (i32, i32) {
    %c0_i32 = arith.constant 0 : i32
    return %arg0, %arg1 : i32, i32
  }
}

module attributes {stable_mosaic.version = 11 : i64} {
  func.func @_matmul_bias_act_kernel(%arg0: i32, %arg1: i32, %arg2: memref<64x576xbf16, #tpu.memory_space<vmem>>, %arg3: memref<576x128xbf16, #tpu.memory_space<vmem>>, %arg4: memref<1x128xf32, #tpu.memory_space<vmem>>, %arg5: memref<64x128xbf16, #tpu.memory_space<vmem>>) attributes {dimension_semantics = [#tpu.dimension_semantics<parallel>, #tpu.dimension_semantics<parallel>], iteration_bounds = array<i64: 2, 1>, scalar_prefetch = 0 : i64, scratch_operands = 0 : i64, tpu.core_type = #tpu.core_type<tc>, window_params = [{transform_indices = @transform_0, window_bounds = array<i64: 64, 576>}, {pipeline_mode = #tpu.pipeline_mode<synchronous>, transform_indices = @transform_1, window_bounds = array<i64: 576, 128>}, {pipeline_mode = #tpu.pipeline_mode<synchronous>, transform_indices = @transform_2, window_bounds = array<i64: 1, 128>}, {transform_indices = @transform_3, window_bounds = array<i64: 64, 128>}]} {
    %c0 = arith.constant 0 : index
    %c0_0 = arith.constant 0 : index
    %0 = vector.load %arg2[%c0, %c0_0] : memref<64x576xbf16, #tpu.memory_space<vmem>>, vector<64x576xbf16>
    %c0_1 = arith.constant 0 : index
    %c0_2 = arith.constant 0 : index
    %1 = vector.load %arg3[%c0_1, %c0_2] : memref<576x128xbf16, #tpu.memory_space<vmem>>, vector<576x128xbf16>
    %cst = arith.constant dense<0.000000e+00> : vector<64x128xf32>
    %2 = tpu.matmul %0, %1, %cst {dimension_numbers = #tpu.dot_dimension_numbers<[1], [0], [0], [1], [0, 0, 1, 1], [], []>} : vector<64x576xbf16>, vector<576x128xbf16>, vector<64x128xf32> -> vector<64x128xf32>
    %c0_3 = arith.constant 0 : index
    %c0_4 = arith.constant 0 : index
    %3 = vector.load %arg4[%c0_3, %c0_4] : memref<1x128xf32, #tpu.memory_space<vmem>>, vector<1x128xf32>
    %4 = vector.broadcast %3 : vector<1x128xf32> to vector<64x128xf32>
    %5 = arith.addf %2, %4 : vector<64x128xf32>
    %cst_5 = arith.constant 0.000000e+00 : f32
    %6 = vector.broadcast %cst_5 : f32 to vector<64x128xf32>
    %7 = arith.maximumf %5, %6 : vector<64x128xf32>
    %8 = arith.truncf %7 : vector<64x128xf32> to vector<64x128xbf16>
    %c0_6 = arith.constant 0 : index
    %c0_7 = arith.constant 0 : index
    %9 = vector.load %arg5[%c0_6, %c0_7] : memref<64x128xbf16, #tpu.memory_space<vmem>>, vector<64x128xbf16>
    tpu.vector_store %arg5[%c0_6, %c0_7], %8 {strides = array<i32>} : memref<64x128xbf16, #tpu.memory_space<vmem>>, vector<64x128xbf16>,
    return
  }
  func.func @transform_0(%arg0: i32, %arg1: i32) -> (i32, i32) {
    %c0_i32 = arith.constant 0 : i32
    %c0_i32_0 = arith.constant 0 : i32
    return %arg0, %c0_i32 : i32, i32
  }
  func.func @transform_1(%arg0: i32, %arg1: i32) -> (i32, i32) {
    %c0_i32 = arith.constant 0 : i32
    %c0_i32_0 = arith.constant 0 : i32
    return %c0_i32, %arg1 : i32, i32
  }
  func.func @transform_2(%arg0: i32, %arg1: i32) -> (i32, i32) {
    %c0_i32 = arith.constant 0 : i32
    %c0_i32_0 = arith.constant 0 : i32
    return %c0_i32, %arg1 : i32, i32
  }
  func.func @transform_3(%arg0: i32, %arg1: i32) -> (i32, i32) {
    %c0_i32 = arith.constant 0 : i32
    return %arg0, %arg1 : i32, i32
  }
}

module attributes {stable_mosaic.version = 11 : i64} {
  func.func @_matmul_bias_act_kernel(%arg0: i32, %arg1: i32, %arg2: memref<256x288xbf16, #tpu.memory_space<vmem>>, %arg3: memref<288x64xbf16, #tpu.memory_space<vmem>>, %arg4: memref<1x64xf32, #tpu.memory_space<vmem>>, %arg5: memref<256x64xbf16, #tpu.memory_space<vmem>>) attributes {dimension_semantics = [#tpu.dimension_semantics<parallel>, #tpu.dimension_semantics<parallel>], iteration_bounds = array<i64: 2, 1>, scalar_prefetch = 0 : i64, scratch_operands = 0 : i64, tpu.core_type = #tpu.core_type<tc>, window_params = [{transform_indices = @transform_0, window_bounds = array<i64: 256, 288>}, {pipeline_mode = #tpu.pipeline_mode<synchronous>, transform_indices = @transform_1, window_bounds = array<i64: 288, 64>}, {pipeline_mode = #tpu.pipeline_mode<synchronous>, transform_indices = @transform_2, window_bounds = array<i64: 1, 64>}, {transform_indices = @transform_3, window_bounds = array<i64: 256, 64>}]} {
    %c0 = arith.constant 0 : index
    %c0_0 = arith.constant 0 : index
    %0 = vector.load %arg2[%c0, %c0_0] : memref<256x288xbf16, #tpu.memory_space<vmem>>, vector<256x288xbf16>
    %c0_1 = arith.constant 0 : index
    %c0_2 = arith.constant 0 : index
    %1 = vector.load %arg3[%c0_1, %c0_2] : memref<288x64xbf16, #tpu.memory_space<vmem>>, vector<288x64xbf16>
    %cst = arith.constant dense<0.000000e+00> : vector<256x64xf32>
    %2 = tpu.matmul %0, %1, %cst {dimension_numbers = #tpu.dot_dimension_numbers<[1], [0], [0], [1], [0, 0, 1, 1], [], []>} : vector<256x288xbf16>, vector<288x64xbf16>, vector<256x64xf32> -> vector<256x64xf32>
    %c0_3 = arith.constant 0 : index
    %c0_4 = arith.constant 0 : index
    %3 = vector.load %arg4[%c0_3, %c0_4] : memref<1x64xf32, #tpu.memory_space<vmem>>, vector<1x64xf32>
    %4 = vector.broadcast %3 : vector<1x64xf32> to vector<256x64xf32>
    %5 = arith.addf %2, %4 : vector<256x64xf32>
    %cst_5 = arith.constant 0.000000e+00 : f32
    %6 = vector.broadcast %cst_5 : f32 to vector<256x64xf32>
    %7 = arith.maximumf %5, %6 : vector<256x64xf32>
    %8 = arith.truncf %7 : vector<256x64xf32> to vector<256x64xbf16>
    %c0_6 = arith.constant 0 : index
    %c0_7 = arith.constant 0 : index
    %9 = vector.load %arg5[%c0_6, %c0_7] : memref<256x64xbf16, #tpu.memory_space<vmem>>, vector<256x64xbf16>
    tpu.vector_store %arg5[%c0_6, %c0_7], %8 {strides = array<i32>} : memref<256x64xbf16, #tpu.memory_space<vmem>>, vector<256x64xbf16>,
    return
  }
  func.func @transform_0(%arg0: i32, %arg1: i32) -> (i32, i32) {
    %c0_i32 = arith.constant 0 : i32
    %c0_i32_0 = arith.constant 0 : i32
    return %arg0, %c0_i32 : i32, i32
  }
  func.func @transform_1(%arg0: i32, %arg1: i32) -> (i32, i32) {
    %c0_i32 = arith.constant 0 : i32
    %c0_i32_0 = arith.constant 0 : i32
    return %c0_i32, %arg1 : i32, i32
  }
  func.func @transform_2(%arg0: i32, %arg1: i32) -> (i32, i32) {
    %c0_i32 = arith.constant 0 : i32
    %c0_i32_0 = arith.constant 0 : i32
    return %c0_i32, %arg1 : i32, i32
  }
  func.func @transform_3(%arg0: i32, %arg1: i32) -> (i32, i32) {
    %c0_i32 = arith.constant 0 : i32
    return %arg0, %arg1 : i32, i32
  }
}

module attributes {stable_mosaic.version = 11 : i64} {
  func.func @_matmul_bias_act_kernel(%arg0: i32, %arg1: i32, %arg2: memref<12x144xbf16, #tpu.memory_space<vmem>>, %arg3: memref<144x1024xbf16, #tpu.memory_space<vmem>>, %arg4: memref<12x1xf32, #tpu.memory_space<vmem>>, %arg5: memref<12x1024xf32, #tpu.memory_space<vmem>>) attributes {dimension_semantics = [#tpu.dimension_semantics<parallel>, #tpu.dimension_semantics<parallel>], iteration_bounds = array<i64: 1, 2>, scalar_prefetch = 0 : i64, scratch_operands = 0 : i64, tpu.core_type = #tpu.core_type<tc>, window_params = [{pipeline_mode = #tpu.pipeline_mode<synchronous>, transform_indices = @transform_0, window_bounds = array<i64: 12, 144>}, {transform_indices = @transform_1, window_bounds = array<i64: 144, 1024>}, {pipeline_mode = #tpu.pipeline_mode<synchronous>, transform_indices = @transform_2, window_bounds = array<i64: 12, 1>}, {transform_indices = @transform_3, window_bounds = array<i64: 12, 1024>}]} {
    %c0 = arith.constant 0 : index
    %c0_0 = arith.constant 0 : index
    %0 = vector.load %arg2[%c0, %c0_0] : memref<12x144xbf16, #tpu.memory_space<vmem>>, vector<12x144xbf16>
    %c0_1 = arith.constant 0 : index
    %c0_2 = arith.constant 0 : index
    %1 = vector.load %arg3[%c0_1, %c0_2] : memref<144x1024xbf16, #tpu.memory_space<vmem>>, vector<144x1024xbf16>
    %cst = arith.constant dense<0.000000e+00> : vector<12x1024xf32>
    %2 = tpu.matmul %0, %1, %cst {dimension_numbers = #tpu.dot_dimension_numbers<[1], [0], [0], [1], [0, 0, 1, 1], [], []>} : vector<12x144xbf16>, vector<144x1024xbf16>, vector<12x1024xf32> -> vector<12x1024xf32>
    %c0_3 = arith.constant 0 : index
    %c0_4 = arith.constant 0 : index
    %3 = vector.load %arg4[%c0_3, %c0_4] : memref<12x1xf32, #tpu.memory_space<vmem>>, vector<12x1xf32>
    %4 = vector.broadcast %3 : vector<12x1xf32> to vector<12x1024xf32>
    %5 = arith.addf %2, %4 : vector<12x1024xf32>
    %6 = math.tanh %5 : vector<12x1024xf32>
    %c0_5 = arith.constant 0 : index
    %c0_6 = arith.constant 0 : index
    %7 = vector.load %arg5[%c0_5, %c0_6] : memref<12x1024xf32, #tpu.memory_space<vmem>>, vector<12x1024xf32>
    tpu.vector_store %arg5[%c0_5, %c0_6], %6 {strides = array<i32>} : memref<12x1024xf32, #tpu.memory_space<vmem>>, vector<12x1024xf32>,
    return
  }
  func.func @transform_0(%arg0: i32, %arg1: i32) -> (i32, i32) {
    %c0_i32 = arith.constant 0 : i32
    %c0_i32_0 = arith.constant 0 : i32
    return %arg0, %c0_i32 : i32, i32
  }
  func.func @transform_1(%arg0: i32, %arg1: i32) -> (i32, i32) {
    %c0_i32 = arith.constant 0 : i32
    %c0_i32_0 = arith.constant 0 : i32
    return %c0_i32, %arg1 : i32, i32
  }
  func.func @transform_2(%arg0: i32, %arg1: i32) -> (i32, i32) {
    %c0_i32 = arith.constant 0 : i32
    %c0_i32_0 = arith.constant 0 : i32
    return %arg0, %c0_i32 : i32, i32
  }
  func.func @transform_3(%arg0: i32, %arg1: i32) -> (i32, i32) {
    %c0_i32 = arith.constant 0 : i32
    return %arg0, %arg1 : i32, i32
  }
}

</mosaic_0001>

<llo_original>
// kernel: generator1_forward.6
$region0: #{generator1_forward.6}
  #allocation0 [shape = 'u32[]', space=smem, size = 0x4, offset = 0x4, fixed_abs, tag = 'smem constant byte address 0x4 - core index']
  #allocation1 [shape = 'u32[72,128]{1,0:T(1,128)}', space=vmem, size = 0x9000, scoped, tag = 'internal scratch']
  %s0 = inlined_call_operand.vmem [shape: bf16[32,1152], index: 0, kind: input, shape index: {}]
  %s1 = inlined_call_operand.hbm [shape: bf16[1152,256], index: 1, kind: input, shape index: {}]
  %s2 = inlined_call_operand.hbm [shape: f32[1,256], index: 2, kind: input, shape index: {}]
  %s3 = inlined_call_operand.vmem [shape: bf16[32,256], index: 3, kind: output, shape index: {}]
  %s4 = sld [smem:[#allocation0]]
  $region90: #{generator1_forward.6} parent=0
    _
  %s6 = ssub.s32 1, %s4
  %s7 = scalar_select 0, %s6, %s4
  $region1: #{generator1_forward.6} parent=0
    #allocation2 [shape = 'u8[589824]{0}', space=vmem, size = 0x90000, scoped, tag = 'input window, operand 1']
    #allocation3 [shape = 's32[2]{0}', space=sflag, size = 0x8, scoped, tag = 'scoped memory for generator1_forward.6']
    #allocation4 [shape = 'u8[1024]{0}', space=vmem, size = 0x400, scoped, tag = 'input window, operand 2']
    #allocation5 [shape = 's32[2]{0}', space=sflag, size = 0x8, scoped, tag = 'scoped memory for generator1_forward.6']
    #allocation6 [shape = 'u8[16384]{0}', space=vmem, size = 0x4000, scoped, tag = 'output window, operand 0']
    %8 = vsyncpa [#allocation3], 0
    %s9 = scalar_lea.sflag [#allocation3], 1
    %10 = vsyncpa %s9, 0
    %11 = vsyncpa [#allocation5], 0
    %s12 = scalar_lea.sflag [#allocation5], 1
    %13 = vsyncpa %s12, 0
    loop: start=0, step=1, limit=4
    $region2: #{generator1_forward.6} parent=1 // loop_pre_header
      _
    $region3: #{generator1_forward.6} parent=1 // loop_header
      %s15 = sphi 0, %s19
      %p16 = scmp.ge.s32.totalorder %s15, 4
      %s22 = sphi 0, %s34
      %s23 = sphi 0, %s30
      %s24 = sphi 0, %s22
      %s25 = sphi 0, %s23
      %s26 = sphi 0, %s24
      %s27 = sphi 0, %s25
      %s37 = sphi 0, %s39
      %s40 = sphi 0, %s37
      %s41 = sphi 0, %s40
      %s57 = sphi 0, %s41
      %s63 = sphi 0, %s65
      %s66 = sphi 0, %s63
      %s67 = sphi 0, %s66
      %s83 = sphi 0, %s67
      %s89 = sphi 0, %s91
      %s92 = sphi 0, %s89
      %s93 = sphi 0, %s92
      %s109 = sphi 0, %s93
      %s117 = sphi 0, %s119
      %s120 = sphi 0, %s117
      %s121 = sphi 0, %s120
      %s137 = sphi 0, %s121
    $region4: #{generator1_forward.6} parent=1 // loop_header_branch
      %18 = sbr.rel (%p16) target = $region8
    $region5: #{generator1_forward.6} parent=1 // loop_body
      %s20 = ssub.s32 %s15, 1
      %s21 = ssub.s32 %s15, 2
      %s28 = sadd.s32 1, %s23
      %p29 = scmp.ge.s32.totalorder %s28, 2
      %s30 = scalar_select %p29, 0, %s28
      %s31 = sadd.s32 1, %s22
      %s32 = scalar_select %p29, %s31, %s22
      %p33 = scmp.ge.s32.totalorder %s32, 1
      %s34 = scalar_select %p33, 0, %s32
      %s35 = ssub.s32 %s22, %s34
      %p36 = scmp.eq.s32.totalorder %s35, 0
      %s38 = sadd.s32 %s37, 1
      %s39 = scalar_select %p36, %s37, %s38
      %p42 = pneg %p36
      %p43 = scmp.eq.s32.totalorder %s15, 1
      %p44 = por %p42, %p43
      %p45 = scmp.ne.s32.totalorder %s37, %s40
      %p46 = scmp.eq.s32.totalorder %s15, 0
      %p47 = por %p45, %p46
      %p48 = scmp.ne.s32.totalorder %s37, %s40
      %p49 = scmp.eq.s32.totalorder %s20, 1
      %p50 = por %p48, %p49
      %p51 = scmp.ne.s32.totalorder %s40, %s41
      %p52 = scmp.eq.s32.totalorder %s20, 0
      %p53 = por %p51, %p52
      %p54 = scmp.ne.s32.totalorder %s40, %s41
      %p55 = scmp.eq.s32.totalorder %s21, 1
      %p56 = por %p54, %p55
      %p58 = scmp.ne.s32.totalorder %s41, %s57
      %p59 = scmp.eq.s32.totalorder %s21, 0
      %p60 = por %p58, %p59
      %s61 = ssub.s32 %s23, %s30
      %p62 = scmp.eq.s32.totalorder %s61, 0
      %s64 = sadd.s32 %s63, 1
      %s65 = scalar_select %p62, %s63, %s64
      %p68 = pneg %p62
      %p69 = scmp.eq.s32.totalorder %s15, 1
      %p70 = por %p68, %p69
      %p71 = scmp.ne.s32.totalorder %s63, %s66
      %p72 = scmp.eq.s32.totalorder %s15, 0
      %p73 = por %p71, %p72
      %p74 = scmp.ne.s32.totalorder %s63, %s66
      %p75 = scmp.eq.s32.totalorder %s20, 1
      %p76 = por %p74, %p75
      %p77 = scmp.ne.s32.totalorder %s66, %s67
      %p78 = scmp.eq.s32.totalorder %s20, 0
      %p79 = por %p77, %p78
      %p80 = scmp.ne.s32.totalorder %s66, %s67
      %p81 = scmp.eq.s32.totalorder %s21, 1
      %p82 = por %p80, %p81
      %p84 = scmp.ne.s32.totalorder %s67, %s83
      %p85 = scmp.eq.s32.totalorder %s21, 0
      %p86 = por %p84, %p85
      %s87 = ssub.s32 %s23, %s30
      %p88 = scmp.eq.s32.totalorder %s87, 0
      %s90 = sadd.s32 %s89, 1
      %s91 = scalar_select %p88, %s89, %s90
      %p94 = pneg %p88
      %p95 = scmp.eq.s32.totalorder %s15, 1
      %p96 = por %p94, %p95
      %p97 = scmp.ne.s32.totalorder %s89, %s92
      %p98 = scmp.eq.s32.totalorder %s15, 0
      %p99 = por %p97, %p98
      %p100 = scmp.ne.s32.totalorder %s89, %s92
      %p101 = scmp.eq.s32.totalorder %s20, 1
      %p102 = por %p100, %p101
      %p103 = scmp.ne.s32.totalorder %s92, %s93
      %p104 = scmp.eq.s32.totalorder %s20, 0
      %p105 = por %p103, %p104
      %p106 = scmp.ne.s32.totalorder %s92, %s93
      %p107 = scmp.eq.s32.totalorder %s21, 1
      %p108 = por %p106, %p107
      %p110 = scmp.ne.s32.totalorder %s93, %s109
      %p111 = scmp.eq.s32.totalorder %s21, 0
      %p112 = por %p110, %p111
      %s113 = ssub.s32 %s22, %s34
      %s114 = ssub.s32 %s23, %s30
      %s115 = sor.u32 %s113, %s114
      %p116 = scmp.eq.s32.totalorder %s115, 0
      %s118 = sadd.s32 %s117, 1
      %s119 = scalar_select %p116, %s117, %s118
      %p122 = pneg %p116
      %p123 = scmp.eq.s32.totalorder %s15, 1
      %p124 = por %p122, %p123
      %p125 = scmp.ne.s32.totalorder %s117, %s120
      %p126 = scmp.eq.s32.totalorder %s15, 0
      %p127 = por %p125, %p126
      %p128 = scmp.ne.s32.totalorder %s117, %s120
      %p129 = scmp.eq.s32.totalorder %s20, 1
      %p130 = por %p128, %p129
      %p131 = scmp.ne.s32.totalorder %s120, %s121
      %p132 = scmp.eq.s32.totalorder %s20, 0
      %p133 = por %p131, %p132
      %p134 = scmp.ne.s32.totalorder %s120, %s121
      %p135 = scmp.eq.s32.totalorder %s21, 1
      %p136 = por %p134, %p135
      %p138 = scmp.ne.s32.totalorder %s121, %s137
      %p139 = scmp.eq.s32.totalorder %s21, 0
      %p140 = por %p138, %p139
      %p141 = scmp.le.s32.totalorder 1, %s15
      %p142 = scmp.lt.s32.totalorder %s15, 3
      %p143 = pnand %p141, %p142
      %p144 = pneg %p143
      // Predicated region
      $region9: #{generator1_forward.6} parent=5 // pred_check
        _
      $region10: #{generator1_forward.6} parent=5 // pred_check_branch
        %146 = sbr.rel (%p143) target = $region12
      $region11: #{generator1_forward.6} parent=5 // pred_region
        %s147 = ssub.s32 %s15, 1
        // Predicated region
        $region13: #{generator1_forward.6} parent=11 // pred_check
          %p148 = pneg %p53
        $region14: #{generator1_forward.6} parent=11 // pred_check_branch
          %150 = sbr.rel (%p148) target = $region16
        $region15: #{generator1_forward.6} parent=11 // pred_region
          %s151 = smul.u32 4, %s24
          %p152 = scmp.lt.s32.totalorder %s151, 3
          %s153 = scalar_select %p152, %s151, 3
          %s154 = smul.addr %s153, 9
          %s155 = smul.addr %s154, 4
          %s156 = scalar_lea.vmem %s0, %s155
          %s157 = smul.u32 4, %s24
        $region16: #{generator1_forward.6} parent=11 // pred_fallthru
          _
      $region12: #{generator1_forward.6} parent=5 // pred_fallthru
        _
      %p158 = scmp.lt.s32.totalorder %s15, 2
      // Predicated region
      $region17: #{generator1_forward.6} parent=5 // pred_check
        %p159 = pneg %p158
      $region18: #{generator1_forward.6} parent=5 // pred_check_branch
        %161 = sbr.rel (%p159) target = $region20
      $region19: #{generator1_forward.6} parent=5 // pred_region
        // Predicated region
        $region21: #{generator1_forward.6} parent=19 // pred_check
          %p162 = pneg %p73
        $region22: #{generator1_forward.6} parent=19 // pred_check_branch
          %164 = sbr.rel (%p162) target = $region24
        $region23: #{generator1_forward.6} parent=19 // pred_region
          %s165 = sand.u32 %s63, 1
          %s166 = scalar_lea.sflag [#allocation3], %s165
          %s167 = sand.u32 %s63, 1
          %s168 = smul.addr %s167, 576
          %s169 = scalar_lea.vmem [#allocation2], %s168
          %171 = vsyncadd %s166, 0
          %s172 = smul.addr %s23, 4
          %s173 = scalar_lea.hbm %s1, %s172
          %s174 = sshll.u32 %s173, 4
          %s175 = int_to_ptr.hbm [resolvable:$true] %s174
          %s176 = sshll.u32 %s169, 4
          %s177 = int_to_ptr.vmem [resolvable:$true] %s176
          %182 = dma.hbm_to_vmem [thread:$0]  %s175, 9216, %s177, %s166, 128, 64, 4
        $region24: #{generator1_forward.6} parent=19 // pred_fallthru
          _
        // Predicated region
        $region25: #{generator1_forward.6} parent=19 // pred_check
          %p183 = pneg %p99
        $region26: #{generator1_forward.6} parent=19 // pred_check_branch
          %185 = sbr.rel (%p183) target = $region28
        $region27: #{generator1_forward.6} parent=19 // pred_region
          %s186 = sand.u32 %s89, 1
          %s187 = scalar_lea.sflag [#allocation5], %s186
          %s188 = sand.u32 %s89, 1
          %s189 = scalar_lea.vmem [#allocation4], %s188
          %191 = vsyncadd %s187, 0
          %s192 = scalar_lea.hbm %s2, %s23
          %s194 = sshll.u32 %s192, 4
          %s195 = int_to_ptr.hbm [resolvable:$true] %s194
          %s196 = sshll.u32 %s189, 4
          %s197 = int_to_ptr.vmem [resolvable:$true] %s196
          %199 = dma.hbm_to_vmem [thread:$0]  %s195, 16, %s197, %s187
        $region28: #{generator1_forward.6} parent=19 // pred_fallthru
          _
      $region20: #{generator1_forward.6} parent=5 // pred_fallthru
        _
      %p200 = scmp.le.s32.totalorder 1, %s15
      %p201 = scmp.lt.s32.totalorder %s15, 3
      %p202 = pnand %p200, %p201
      %p203 = pneg %p202
      // Predicated region
      $region29: #{generator1_forward.6} parent=5 // pred_check
        _
      $region30: #{generator1_forward.6} parent=5 // pred_check_branch
        %205 = sbr.rel (%p202) target = $region32
      $region31: #{generator1_forward.6} parent=5 // pred_region
        %s206 = ssub.s32 %s15, 1
        %s207 = sand.u32 %s66, 1
        %s208 = scalar_lea.sflag [#allocation3], %s207
        %s209 = sand.u32 %s66, 1
        %s210 = smul.addr %s209, 576
        %s211 = scalar_lea.vmem [#allocation2], %s210
        // Predicated region
        $region33: #{generator1_forward.6} parent=31 // pred_check
          %p212 = pneg %p79
        $region34: #{generator1_forward.6} parent=31 // pred_check_branch
          %214 = sbr.rel (%p212) target = $region36
        $region35: #{generator1_forward.6} parent=31 // pred_region
          %216 = dma.done %s208, 9216
        $region36: #{generator1_forward.6} parent=31 // pred_fallthru
          _
        %s217 = sand.u32 %s92, 1
        %s218 = scalar_lea.sflag [#allocation5], %s217
        %s219 = sand.u32 %s92, 1
        %s220 = scalar_lea.vmem [#allocation4], %s219
        // Predicated region
        $region37: #{generator1_forward.6} parent=31 // pred_check
          %p221 = pneg %p105
        $region38: #{generator1_forward.6} parent=31 // pred_check_branch
          %223 = sbr.rel (%p221) target = $region40
        $region39: #{generator1_forward.6} parent=31 // pred_region
          %225 = dma.done %s218, 16
        $region40: #{generator1_forward.6} parent=31 // pred_fallthru
          _
        %s226 = smul.u32 4, %s24
        %p227 = scmp.lt.s32.totalorder %s226, 3
        %s228 = scalar_select %p227, %s226, 3
        %s229 = smul.addr %s228, 9
        %s230 = smul.addr %s229, 4
        %s231 = scalar_lea.vmem %s0, %s230
        %p232 = pneg %p53
        %p233 = pneg %p50
        %s234 = sand.u32 %s66, 1
        %s235 = scalar_lea.sflag [#allocation3], %s234
        %s236 = sand.u32 %s66, 1
        %s237 = smul.addr %s236, 576
        %s238 = scalar_lea.vmem [#allocation2], %s237
        %p239 = pneg %p79
        %p240 = pneg %p76
        %s241 = sand.u32 %s92, 1
        %s242 = scalar_lea.sflag [#allocation5], %s241
        %s243 = sand.u32 %s92, 1
        %s244 = scalar_lea.vmem [#allocation4], %s243
        %p245 = pneg %p105
        %p246 = pneg %p102
        %p247 = pneg %p133
        %p248 = pneg %p130
        %s249 = sand.u32 %s120, 1
        %s250 = sand.u32 %s120, 1
        %s251 = smul.addr %s250, 16
        %s252 = scalar_lea.vmem [#allocation6], %s251
        %s253 = smul.u32 4, %s24
        %p254 = scmp.lt.s32.totalorder %s253, 3
        %s255 = scalar_select %p254, %s253, 3
        %s256 = smul.addr %s255, 9
        %s257 = smul.addr %s256, 4
        %s258 = scalar_lea.vmem %s0, %s257
        %s259 = smul.u32 4, %s24
        %s260 = smul.u32 4, %s24
        %v261 = vld [vmem:[%s258] sm:$0xff]
        %v262 = vld [vmem:[%s258 + $0x8] sm:$0xff]
        %v263 = vld [vmem:[%s258 + $0x10] sm:$0xff]
        %v264 = vld [vmem:[%s258 + $0x18] sm:$0xff]
        %v265 = vld [vmem:[%s258 + $0x20] sm:$0xf]
        %v266 = vld [vmem:[%s258 + $0x24] sm:$0xff]
        %v267 = vld [vmem:[%s258 + $0x2c] sm:$0xff]
        %v268 = vld [vmem:[%s258 + $0x34] sm:$0xff]
        %v269 = vld [vmem:[%s258 + $0x3c] sm:$0xff]
        %v270 = vld [vmem:[%s258 + $0x44] sm:$0xf]
        %v271 = vld [vmem:[%s258 + $0x48] sm:$0xff]
        %v272 = vld [vmem:[%s258 + $0x50] sm:$0xff]
        %v273 = vld [vmem:[%s258 + $0x58] sm:$0xff]
        %v274 = vld [vmem:[%s258 + $0x60] sm:$0xff]
        %v275 = vld [vmem:[%s258 + $0x68] sm:$0xf]
        %v276 = vld [vmem:[%s258 + $0x6c] sm:$0xff]
        %v277 = vld [vmem:[%s258 + $0x74] sm:$0xff]
        %v278 = vld [vmem:[%s258 + $0x7c] sm:$0xff]
        %v279 = vld [vmem:[%s258 + $0x84] sm:$0xff]
        %v280 = vld [vmem:[%s258 + $0x8c] sm:$0xf]
        %v281 = vld [vmem:[%s211] sm:$0xf]
        %v282 = vld [vmem:[%s211 + $0x4] sm:$0xf]
        %v283 = vld [vmem:[%s211 + $0x8] sm:$0xf]
        %v284 = vld [vmem:[%s211 + $0xc] sm:$0xf]
        %v285 = vld [vmem:[%s211 + $0x10] sm:$0xf]
        %v286 = vld [vmem:[%s211 + $0x14] sm:$0xf]
        %v287 = vld [vmem:[%s211 + $0x18] sm:$0xf]
        %v288 = vld [vmem:[%s211 + $0x1c] sm:$0xf]
        %v289 = vld [vmem:[%s211 + $0x20] sm:$0xf]
        %v290 = vld [vmem:[%s211 + $0x24] sm:$0xf]
        %v291 = vld [vmem:[%s211 + $0x28] sm:$0xf]
        %v292 = vld [vmem:[%s211 + $0x2c] sm:$0xf]
        %v293 = vld [vmem:[%s211 + $0x30] sm:$0xf]
        %v294 = vld [vmem:[%s211 + $0x34] sm:$0xf]
        %v295 = vld [vmem:[%s211 + $0x38] sm:$0xf]
        %v296 = vld [vmem:[%s211 + $0x3c] sm:$0xf]
        %v297 = vld [vmem:[%s211 + $0x40] sm:$0xf]
        %v298 = vld [vmem:[%s211 + $0x44] sm:$0xf]
        %v299 = vld [vmem:[%s211 + $0x48] sm:$0xf]
        %v300 = vld [vmem:[%s211 + $0x4c] sm:$0xf]
        %v301 = vld [vmem:[%s211 + $0x50] sm:$0xf]
        %v302 = vld [vmem:[%s211 + $0x54] sm:$0xf]
        %v303 = vld [vmem:[%s211 + $0x58] sm:$0xf]
        %v304 = vld [vmem:[%s211 + $0x5c] sm:$0xf]
        %v305 = vld [vmem:[%s211 + $0x60] sm:$0xf]
        %v306 = vld [vmem:[%s211 + $0x64] sm:$0xf]
        %v307 = vld [vmem:[%s211 + $0x68] sm:$0xf]
        %v308 = vld [vmem:[%s211 + $0x6c] sm:$0xf]
        %v309 = vld [vmem:[%s211 + $0x70] sm:$0xf]
        %v310 = vld [vmem:[%s211 + $0x74] sm:$0xf]
        %v311 = vld [vmem:[%s211 + $0x78] sm:$0xf]
        %v312 = vld [vmem:[%s211 + $0x7c] sm:$0xf]
        %v313 = vld [vmem:[%s211 + $0x80] sm:$0xf]
        %v314 = vld [vmem:[%s211 + $0x84] sm:$0xf]
        %v315 = vld [vmem:[%s211 + $0x88] sm:$0xf]
        %v316 = vld [vmem:[%s211 + $0x8c] sm:$0xf]
        %v317 = vld [vmem:[%s211 + $0x90] sm:$0xf]
        %v318 = vld [vmem:[%s211 + $0x94] sm:$0xf]
        %v319 = vld [vmem:[%s211 + $0x98] sm:$0xf]
        %v320 = vld [vmem:[%s211 + $0x9c] sm:$0xf]
        %v321 = vld [vmem:[%s211 + $0xa0] sm:$0xf]
        %v322 = vld [vmem:[%s211 + $0xa4] sm:$0xf]
        %v323 = vld [vmem:[%s211 + $0xa8] sm:$0xf]
        %v324 = vld [vmem:[%s211 + $0xac] sm:$0xf]
        %v325 = vld [vmem:[%s211 + $0xb0] sm:$0xf]
        %v326 = vld [vmem:[%s211 + $0xb4] sm:$0xf]
        %v327 = vld [vmem:[%s211 + $0xb8] sm:$0xf]
        %v328 = vld [vmem:[%s211 + $0xbc] sm:$0xf]
        %v329 = vld [vmem:[%s211 + $0xc0] sm:$0xf]
        %v330 = vld [vmem:[%s211 + $0xc4] sm:$0xf]
        %v331 = vld [vmem:[%s211 + $0xc8] sm:$0xf]
        %v332 = vld [vmem:[%s211 + $0xcc] sm:$0xf]
        %v333 = vld [vmem:[%s211 + $0xd0] sm:$0xf]
        %v334 = vld [vmem:[%s211 + $0xd4] sm:$0xf]
        %v335 = vld [vmem:[%s211 + $0xd8] sm:$0xf]
        %v336 = vld [vmem:[%s211 + $0xdc] sm:$0xf]
        %v337 = vld [vmem:[%s211 + $0xe0] sm:$0xf]
        %v338 = vld [vmem:[%s211 + $0xe4] sm:$0xf]
        %v339 = vld [vmem:[%s211 + $0xe8] sm:$0xf]
        %v340 = vld [vmem:[%s211 + $0xec] sm:$0xf]
        %v341 = vld [vmem:[%s211 + $0xf0] sm:$0xf]
        %v342 = vld [vmem:[%s211 + $0xf4] sm:$0xf]
        %v343 = vld [vmem:[%s211 + $0xf8] sm:$0xf]
        %v344 = vld [vmem:[%s211 + $0xfc] sm:$0xf]
        %v345 = vld [vmem:[%s211 + $0x100] sm:$0xf]
        %v346 = vld [vmem:[%s211 + $0x104] sm:$0xf]
        %v347 = vld [vmem:[%s211 + $0x108] sm:$0xf]
        %v348 = vld [vmem:[%s211 + $0x10c] sm:$0xf]
        %v349 = vld [vmem:[%s211 + $0x110] sm:$0xf]
        %v350 = vld [vmem:[%s211 + $0x114] sm:$0xf]
        %v351 = vld [vmem:[%s211 + $0x118] sm:$0xf]
        %v352 = vld [vmem:[%s211 + $0x11c] sm:$0xf]
        %v353 = vld [vmem:[%s211 + $0x120] sm:$0xf]
        %v354 = vld [vmem:[%s211 + $0x124] sm:$0xf]
        %v355 = vld [vmem:[%s211 + $0x128] sm:$0xf]
        %v356 = vld [vmem:[%s211 + $0x12c] sm:$0xf]
        %v357 = vld [vmem:[%s211 + $0x130] sm:$0xf]
        %v358 = vld [vmem:[%s211 + $0x134] sm:$0xf]
        %v359 = vld [vmem:[%s211 + $0x138] sm:$0xf]
        %v360 = vld [vmem:[%s211 + $0x13c] sm:$0xf]
        %v361 = vld [vmem:[%s211 + $0x140] sm:$0xf]
        %v362 = vld [vmem:[%s211 + $0x144] sm:$0xf]
        %v363 = vld [vmem:[%s211 + $0x148] sm:$0xf]
        %v364 = vld [vmem:[%s211 + $0x14c] sm:$0xf]
        %v365 = vld [vmem:[%s211 + $0x150] sm:$0xf]
        %v366 = vld [vmem:[%s211 + $0x154] sm:$0xf]
        %v367 = vld [vmem:[%s211 + $0x158] sm:$0xf]
        %v368 = vld [vmem:[%s211 + $0x15c] sm:$0xf]
        %v369 = vld [vmem:[%s211 + $0x160] sm:$0xf]
        %v370 = vld [vmem:[%s211 + $0x164] sm:$0xf]
        %v371 = vld [vmem:[%s211 + $0x168] sm:$0xf]
        %v372 = vld [vmem:[%s211 + $0x16c] sm:$0xf]
        %v373 = vld [vmem:[%s211 + $0x170] sm:$0xf]
        %v374 = vld [vmem:[%s211 + $0x174] sm:$0xf]
        %v375 = vld [vmem:[%s211 + $0x178] sm:$0xf]
        %v376 = vld [vmem:[%s211 + $0x17c] sm:$0xf]
        %v377 = vld [vmem:[%s211 + $0x180] sm:$0xf]
        %v378 = vld [vmem:[%s211 + $0x184] sm:$0xf]
        %v379 = vld [vmem:[%s211 + $0x188] sm:$0xf]
        %v380 = vld [vmem:[%s211 + $0x18c] sm:$0xf]
        %v381 = vld [vmem:[%s211 + $0x190] sm:$0xf]
        %v382 = vld [vmem:[%s211 + $0x194] sm:$0xf]
        %v383 = vld [vmem:[%s211 + $0x198] sm:$0xf]
        %v384 = vld [vmem:[%s211 + $0x19c] sm:$0xf]
        %v385 = vld [vmem:[%s211 + $0x1a0] sm:$0xf]
        %v386 = vld [vmem:[%s211 + $0x1a4] sm:$0xf]
        %v387 = vld [vmem:[%s211 + $0x1a8] sm:$0xf]
        %v388 = vld [vmem:[%s211 + $0x1ac] sm:$0xf]
        %v389 = vld [vmem:[%s211 + $0x1b0] sm:$0xf]
        %v390 = vld [vmem:[%s211 + $0x1b4] sm:$0xf]
        %v391 = vld [vmem:[%s211 + $0x1b8] sm:$0xf]
        %v392 = vld [vmem:[%s211 + $0x1bc] sm:$0xf]
        %v393 = vld [vmem:[%s211 + $0x1c0] sm:$0xf]
        %v394 = vld [vmem:[%s211 + $0x1c4] sm:$0xf]
        %v395 = vld [vmem:[%s211 + $0x1c8] sm:$0xf]
        %v396 = vld [vmem:[%s211 + $0x1cc] sm:$0xf]
        %v397 = vld [vmem:[%s211 + $0x1d0] sm:$0xf]
        %v398 = vld [vmem:[%s211 + $0x1d4] sm:$0xf]
        %v399 = vld [vmem:[%s211 + $0x1d8] sm:$0xf]
        %v400 = vld [vmem:[%s211 + $0x1dc] sm:$0xf]
        %v401 = vld [vmem:[%s211 + $0x1e0] sm:$0xf]
        %v402 = vld [vmem:[%s211 + $0x1e4] sm:$0xf]
        %v403 = vld [vmem:[%s211 + $0x1e8] sm:$0xf]
        %v404 = vld [vmem:[%s211 + $0x1ec] sm:$0xf]
        %v405 = vld [vmem:[%s211 + $0x1f0] sm:$0xf]
        %v406 = vld [vmem:[%s211 + $0x1f4] sm:$0xf]
        %v407 = vld [vmem:[%s211 + $0x1f8] sm:$0xf]
        %v408 = vld [vmem:[%s211 + $0x1fc] sm:$0xf]
        %v409 = vld [vmem:[%s211 + $0x200] sm:$0xf]
        %v410 = vld [vmem:[%s211 + $0x204] sm:$0xf]
        %v411 = vld [vmem:[%s211 + $0x208] sm:$0xf]
        %v412 = vld [vmem:[%s211 + $0x20c] sm:$0xf]
        %v413 = vld [vmem:[%s211 + $0x210] sm:$0xf]
        %v414 = vld [vmem:[%s211 + $0x214] sm:$0xf]
        %v415 = vld [vmem:[%s211 + $0x218] sm:$0xf]
        %v416 = vld [vmem:[%s211 + $0x21c] sm:$0xf]
        %v417 = vld [vmem:[%s211 + $0x220] sm:$0xf]
        %v418 = vld [vmem:[%s211 + $0x224] sm:$0xf]
        %v419 = vld [vmem:[%s211 + $0x228] sm:$0xf]
        %v420 = vld [vmem:[%s211 + $0x22c] sm:$0xf]
        %v421 = vld [vmem:[%s211 + $0x230] sm:$0xf]
        %v422 = vld [vmem:[%s211 + $0x234] sm:$0xf]
        %v423 = vld [vmem:[%s211 + $0x238] sm:$0xf]
        %v424 = vld [vmem:[%s211 + $0x23c] sm:$0xf]
        %v425 = vld [vmem:[%s220] sm:$0x1]
        %v427 = vperm.slane %v425, 0
        %v449 = vunpack.c.l.b16 %v261
        %v450 = vunpack.c.h.b16 %v261
        %v451 = vunpack.c.l.b16 %v262
        %v452 = vunpack.c.h.b16 %v262
        %v453 = vunpack.c.l.b16 %v263
        %v454 = vunpack.c.h.b16 %v263
        %v455 = vunpack.c.l.b16 %v264
        %v456 = vunpack.c.h.b16 %v264
        %v457 = vunpack.c.l.b16 %v265
        %v458 = vunpack.c.l.b16 %v266
        %v459 = vunpack.c.h.b16 %v266
        %v460 = vunpack.c.l.b16 %v267
        %v461 = vunpack.c.h.b16 %v267
        %v462 = vunpack.c.l.b16 %v268
        %v463 = vunpack.c.h.b16 %v268
        %v464 = vunpack.c.l.b16 %v269
        %v465 = vunpack.c.h.b16 %v269
        %v466 = vunpack.c.l.b16 %v270
        %v467 = vunpack.c.l.b16 %v271
        %v468 = vunpack.c.h.b16 %v271
        %v469 = vunpack.c.l.b16 %v272
        %v470 = vunpack.c.h.b16 %v272
        %v471 = vunpack.c.l.b16 %v273
        %v472 = vunpack.c.h.b16 %v273
        %v473 = vunpack.c.l.b16 %v274
        %v474 = vunpack.c.h.b16 %v274
        %v475 = vunpack.c.l.b16 %v275
        %v476 = vunpack.c.l.b16 %v276
        %v477 = vunpack.c.h.b16 %v276
        %v478 = vunpack.c.l.b16 %v277
        %v479 = vunpack.c.h.b16 %v277
        %v480 = vunpack.c.l.b16 %v278
        %v481 = vunpack.c.h.b16 %v278
        %v482 = vunpack.c.l.b16 %v279
        %v483 = vunpack.c.h.b16 %v279
        %v484 = vunpack.c.l.b16 %v280
        %v485 = vpack.c.b16 %v458, %v449
        %v486 = vpack.c.b16 %v459, %v450
        %v487 = vpack.c.b16 %v460, %v451
        %v488 = vpack.c.b16 %v461, %v452
        %v489 = vpack.c.b16 %v462, %v453
        %v490 = vpack.c.b16 %v463, %v454
        %v491 = vpack.c.b16 %v464, %v455
        %v492 = vpack.c.b16 %v465, %v456
        %v493 = vpack.c.b16 %v466, %v457
        %v494 = vpack.c.b16 %v476, %v467
        %v495 = vpack.c.b16 %v477, %v468
        %v496 = vpack.c.b16 %v478, %v469
        %v497 = vpack.c.b16 %v479, %v470
        %v498 = vpack.c.b16 %v480, %v471
        %v499 = vpack.c.b16 %v481, %v472
        %v500 = vpack.c.b16 %v482, %v473
        %v501 = vpack.c.b16 %v483, %v474
        %v502 = vpack.c.b16 %v484, %v475
        %v665 = vunpack.c.l.b16 %v281
        %v666 = vunpack.c.l.b16 %v282
        %v667 = vunpack.c.l.b16 %v283
        %v668 = vunpack.c.l.b16 %v284
        %v669 = vunpack.c.l.b16 %v285
        %v670 = vunpack.c.l.b16 %v286
        %v671 = vunpack.c.l.b16 %v287
        %v672 = vunpack.c.l.b16 %v288
        %v673 = vunpack.c.l.b16 %v289
        %v674 = vunpack.c.l.b16 %v290
        %v675 = vunpack.c.l.b16 %v291
        %v676 = vunpack.c.l.b16 %v292
        %v677 = vunpack.c.l.b16 %v293
        %v678 = vunpack.c.l.b16 %v294
        %v679 = vunpack.c.l.b16 %v295
        %v680 = vunpack.c.l.b16 %v296
        %v681 = vunpack.c.l.b16 %v297
        %v682 = vunpack.c.l.b16 %v298
        %v683 = vunpack.c.l.b16 %v299
        %v684 = vunpack.c.l.b16 %v300
        %v685 = vunpack.c.l.b16 %v301
        %v686 = vunpack.c.l.b16 %v302
        %v687 = vunpack.c.l.b16 %v303
        %v688 = vunpack.c.l.b16 %v304
        %v689 = vunpack.c.l.b16 %v305
        %v690 = vunpack.c.l.b16 %v306
        %v691 = vunpack.c.l.b16 %v307
        %v692 = vunpack.c.l.b16 %v308
        %v693 = vunpack.c.l.b16 %v309
        %v694 = vunpack.c.l.b16 %v310
        %v695 = vunpack.c.l.b16 %v311
        %v696 = vunpack.c.l.b16 %v312
        %v697 = vunpack.c.l.b16 %v313
        %v698 = vunpack.c.l.b16 %v314
        %v699 = vunpack.c.l.b16 %v315
        %v700 = vunpack.c.l.b16 %v316
        %v701 = vunpack.c.l.b16 %v317
        %v702 = vunpack.c.l.b16 %v318
        %v703 = vunpack.c.l.b16 %v319
        %v704 = vunpack.c.l.b16 %v320
        %v705 = vunpack.c.l.b16 %v321
        %v706 = vunpack.c.l.b16 %v322
        %v707 = vunpack.c.l.b16 %v323
        %v708 = vunpack.c.l.b16 %v324
        %v709 = vunpack.c.l.b16 %v325
        %v710 = vunpack.c.l.b16 %v326
        %v711 = vunpack.c.l.b16 %v327
        %v712 = vunpack.c.l.b16 %v328
        %v713 = vunpack.c.l.b16 %v329
        %v714 = vunpack.c.l.b16 %v330
        %v715 = vunpack.c.l.b16 %v331
        %v716 = vunpack.c.l.b16 %v332
        %v717 = vunpack.c.l.b16 %v333
        %v718 = vunpack.c.l.b16 %v334
        %v719 = vunpack.c.l.b16 %v335
        %v720 = vunpack.c.l.b16 %v336
        %v721 = vunpack.c.l.b16 %v337
        %v722 = vunpack.c.l.b16 %v338
        %v723 = vunpack.c.l.b16 %v339
        %v724 = vunpack.c.l.b16 %v340
        %v725 = vunpack.c.l.b16 %v341
        %v726 = vunpack.c.l.b16 %v342
        %v727 = vunpack.c.l.b16 %v343
        %v728 = vunpack.c.l.b16 %v344
        %v729 = vunpack.c.l.b16 %v345
        %v730 = vunpack.c.l.b16 %v346
        %v731 = vunpack.c.l.b16 %v347
        %v732 = vunpack.c.l.b16 %v348
        %v733 = vunpack.c.l.b16 %v349
        %v734 = vunpack.c.l.b16 %v350
        %v735 = vunpack.c.l.b16 %v351
        %v736 = vunpack.c.l.b16 %v352
        %v737 = vunpack.c.l.b16 %v353
        %v738 = vunpack.c.l.b16 %v354
        %v739 = vunpack.c.l.b16 %v355
        %v740 = vunpack.c.l.b16 %v356
        %v741 = vunpack.c.l.b16 %v357
        %v742 = vunpack.c.l.b16 %v358
        %v743 = vunpack.c.l.b16 %v359
        %v744 = vunpack.c.l.b16 %v360
        %v745 = vunpack.c.l.b16 %v361
        %v746 = vunpack.c.l.b16 %v362
        %v747 = vunpack.c.l.b16 %v363
        %v748 = vunpack.c.l.b16 %v364
        %v749 = vunpack.c.l.b16 %v365
        %v750 = vunpack.c.l.b16 %v366
        %v751 = vunpack.c.l.b16 %v367
        %v752 = vunpack.c.l.b16 %v368
        %v753 = vunpack.c.l.b16 %v369
        %v754 = vunpack.c.l.b16 %v370
        %v755 = vunpack.c.l.b16 %v371
        %v756 = vunpack.c.l.b16 %v372
        %v757 = vunpack.c.l.b16 %v373
        %v758 = vunpack.c.l.b16 %v374
        %v759 = vunpack.c.l.b16 %v375
        %v760 = vunpack.c.l.b16 %v376
        %v761 = vunpack.c.l.b16 %v377
        %v762 = vunpack.c.l.b16 %v378
        %v763 = vunpack.c.l.b16 %v379
        %v764 = vunpack.c.l.b16 %v380
        %v765 = vunpack.c.l.b16 %v381
        %v766 = vunpack.c.l.b16 %v382
        %v767 = vunpack.c.l.b16 %v383
        %v768 = vunpack.c.l.b16 %v384
        %v769 = vunpack.c.l.b16 %v385
        %v770 = vunpack.c.l.b16 %v386
        %v771 = vunpack.c.l.b16 %v387
        %v772 = vunpack.c.l.b16 %v388
        %v773 = vunpack.c.l.b16 %v389
        %v774 = vunpack.c.l.b16 %v390
        %v775 = vunpack.c.l.b16 %v391
        %v776 = vunpack.c.l.b16 %v392
        %v777 = vunpack.c.l.b16 %v393
        %v778 = vunpack.c.l.b16 %v394
        %v779 = vunpack.c.l.b16 %v395
        %v780 = vunpack.c.l.b16 %v396
        %v781 = vunpack.c.l.b16 %v397
        %v782 = vunpack.c.l.b16 %v398
        %v783 = vunpack.c.l.b16 %v399
        %v784 = vunpack.c.l.b16 %v400
        %v785 = vunpack.c.l.b16 %v401
        %v786 = vunpack.c.l.b16 %v402
        %v787 = vunpack.c.l.b16 %v403
        %v788 = vunpack.c.l.b16 %v404
        %v789 = vunpack.c.l.b16 %v405
        %v790 = vunpack.c.l.b16 %v406
        %v791 = vunpack.c.l.b16 %v407
        %v792 = vunpack.c.l.b16 %v408
        %v793 = vunpack.c.l.b16 %v409
        %v794 = vunpack.c.l.b16 %v410
        %v795 = vunpack.c.l.b16 %v411
        %v796 = vunpack.c.l.b16 %v412
        %v797 = vunpack.c.l.b16 %v413
        %v798 = vunpack.c.l.b16 %v414
        %v799 = vunpack.c.l.b16 %v415
        %v800 = vunpack.c.l.b16 %v416
        %v801 = vunpack.c.l.b16 %v417
        %v802 = vunpack.c.l.b16 %v418
        %v803 = vunpack.c.l.b16 %v419
        %v804 = vunpack.c.l.b16 %v420
        %v805 = vunpack.c.l.b16 %v421
        %v806 = vunpack.c.l.b16 %v422
        %v807 = vunpack.c.l.b16 %v423
        %v808 = vunpack.c.l.b16 %v424
        %v809 = vpack.c.b16 %v666, %v665
        %v810 = vpack.c.b16 %v668, %v667
        %v811 = vpack.c.b16 %v670, %v669
        %v812 = vpack.c.b16 %v672, %v671
        %v813 = vpack.c.b16 %v674, %v673
        %v814 = vpack.c.b16 %v676, %v675
        %v815 = vpack.c.b16 %v678, %v677
        %v816 = vpack.c.b16 %v680, %v679
        %v817 = vpack.c.b16 %v682, %v681
        %v818 = vpack.c.b16 %v684, %v683
        %v819 = vpack.c.b16 %v686, %v685
        %v820 = vpack.c.b16 %v688, %v687
        %v821 = vpack.c.b16 %v690, %v689
        %v822 = vpack.c.b16 %v692, %v691
        %v823 = vpack.c.b16 %v694, %v693
        %v824 = vpack.c.b16 %v696, %v695
        %v825 = vpack.c.b16 %v698, %v697
        %v826 = vpack.c.b16 %v700, %v699
        %v827 = vpack.c.b16 %v702, %v701
        %v828 = vpack.c.b16 %v704, %v703
        %v829 = vpack.c.b16 %v706, %v705
        %v830 = vpack.c.b16 %v708, %v707
        %v831 = vpack.c.b16 %v710, %v709
        %v832 = vpack.c.b16 %v712, %v711
        %v833 = vpack.c.b16 %v714, %v713
        %v834 = vpack.c.b16 %v716, %v715
        %v835 = vpack.c.b16 %v718, %v717
        %v836 = vpack.c.b16 %v720, %v719
        %v837 = vpack.c.b16 %v722, %v721
        %v838 = vpack.c.b16 %v724, %v723
        %v839 = vpack.c.b16 %v726, %v725
        %v840 = vpack.c.b16 %v728, %v727
        %v841 = vpack.c.b16 %v730, %v729
        %v842 = vpack.c.b16 %v732, %v731
        %v843 = vpack.c.b16 %v734, %v733
        %v844 = vpack.c.b16 %v736, %v735
        %v845 = vpack.c.b16 %v738, %v737
        %v846 = vpack.c.b16 %v740, %v739
        %v847 = vpack.c.b16 %v742, %v741
        %v848 = vpack.c.b16 %v744, %v743
        %v849 = vpack.c.b16 %v746, %v745
        %v850 = vpack.c.b16 %v748, %v747
        %v851 = vpack.c.b16 %v750, %v749
        %v852 = vpack.c.b16 %v752, %v751
        %v853 = vpack.c.b16 %v754, %v753
        %v854 = vpack.c.b16 %v756, %v755
        %v855 = vpack.c.b16 %v758, %v757
        %v856 = vpack.c.b16 %v760, %v759
        %v857 = vpack.c.b16 %v762, %v761
        %v858 = vpack.c.b16 %v764, %v763
        %v859 = vpack.c.b16 %v766, %v765
        %v860 = vpack.c.b16 %v768, %v767
        %v861 = vpack.c.b16 %v770, %v769
        %v862 = vpack.c.b16 %v772, %v771
        %v863 = vpack.c.b16 %v774, %v773
        %v864 = vpack.c.b16 %v776, %v775
        %v865 = vpack.c.b16 %v778, %v777
        %v866 = vpack.c.b16 %v780, %v779
        %v867 = vpack.c.b16 %v782, %v781
        %v868 = vpack.c.b16 %v784, %v783
        %v869 = vpack.c.b16 %v786, %v785
        %v870 = vpack.c.b16 %v788, %v787
        %v871 = vpack.c.b16 %v790, %v789
        %v872 = vpack.c.b16 %v792, %v791
        %v873 = vpack.c.b16 %v794, %v793
        %v874 = vpack.c.b16 %v796, %v795
        %v875 = vpack.c.b16 %v798, %v797
        %v876 = vpack.c.b16 %v800, %v799
        %v877 = vpack.c.b16 %v802, %v801
        %v878 = vpack.c.b16 %v804, %v803
        %v879 = vpack.c.b16 %v806, %v805
        %v880 = vpack.c.b16 %v808, %v807
        %953 = vmatpush.bf16.msra.mxu0 %v816
        %954 = vmatpush.bf16.msra.mxu0 %v815
        %955 = vmatpush.bf16.msra.mxu0 %v814
        %956 = vmatpush.bf16.msra.mxu0 %v813
        %957 = vmatpush.bf16.msra.mxu0 %v812
        %958 = vmatpush.bf16.msra.mxu0 %v811
        %959 = vmatpush.bf16.msra.mxu0 %v810
        %960 = vmatpush.bf16.msra.mxu0 %v809
        %961 = vmatmul.bf16.gmra.mxu0 %v485
        %v962 = vpop.f32.mrf.mxu0
        %v963 = vadd.f32 %v427, %v962
        %v964 = vpop.f32.mrf.mxu0
        %v965 = vadd.f32 %v427, %v964
        %966 = vmatmul.bf16.gmra.mxu0 %v494
        %v967 = vpop.f32.mrf.mxu0
        %v968 = vadd.f32 %v427, %v967
        %v969 = vpop.f32.mrf.mxu0
        %v970 = vadd.f32 %v427, %v969
        %971 = vdwg.mxu0
        %972 = vmatpush.bf16.msra.mxu0 %v824
        %973 = vmatpush.bf16.msra.mxu0 %v823
        %974 = vmatpush.bf16.msra.mxu0 %v822
        %975 = vmatpush.bf16.msra.mxu0 %v821
        %976 = vmatpush.bf16.msra.mxu0 %v820
        %977 = vmatpush.bf16.msra.mxu0 %v819
        %978 = vmatpush.bf16.msra.mxu0 %v818
        %979 = vmatpush.bf16.msra.mxu0 %v817
        %980 = vmatmul.bf16.gmra.mxu0 %v486
        %v981 = vpop.f32.mrf.mxu0
        %v982 = vadd.f32 %v963, %v981
        %v983 = vpop.f32.mrf.mxu0
        %v984 = vadd.f32 %v965, %v983
        %985 = vmatmul.bf16.gmra.mxu0 %v495
        %v986 = vpop.f32.mrf.mxu0
        %v987 = vadd.f32 %v968, %v986
        %v988 = vpop.f32.mrf.mxu0
        %v989 = vadd.f32 %v970, %v988
        %990 = vdwg.mxu0
        %991 = vmatpush.bf16.msra.mxu0 %v832
        %992 = vmatpush.bf16.msra.mxu0 %v831
        %993 = vmatpush.bf16.msra.mxu0 %v830
        %994 = vmatpush.bf16.msra.mxu0 %v829
        %995 = vmatpush.bf16.msra.mxu0 %v828
        %996 = vmatpush.bf16.msra.mxu0 %v827
        %997 = vmatpush.bf16.msra.mxu0 %v826
        %998 = vmatpush.bf16.msra.mxu0 %v825
        %999 = vmatmul.bf16.gmra.mxu0 %v487
        %v1000 = vpop.f32.mrf.mxu0
        %v1001 = vadd.f32 %v982, %v1000
        %v1002 = vpop.f32.mrf.mxu0
        %v1003 = vadd.f32 %v984, %v1002
        %1004 = vmatmul.bf16.gmra.mxu0 %v496
        %v1005 = vpop.f32.mrf.mxu0
        %v1006 = vadd.f32 %v987, %v1005
        %v1007 = vpop.f32.mrf.mxu0
        %v1008 = vadd.f32 %v989, %v1007
        %1009 = vdwg.mxu0
        %1010 = vmatpush.bf16.msra.mxu0 %v840
        %1011 = vmatpush.bf16.msra.mxu0 %v839
        %1012 = vmatpush.bf16.msra.mxu0 %v838
        %1013 = vmatpush.bf16.msra.mxu0 %v837
        %1014 = vmatpush.bf16.msra.mxu0 %v836
        %1015 = vmatpush.bf16.msra.mxu0 %v835
        %1016 = vmatpush.bf16.msra.mxu0 %v834
        %1017 = vmatpush.bf16.msra.mxu0 %v833
        %1018 = vmatmul.bf16.gmra.mxu0 %v488
        %v1019 = vpop.f32.mrf.mxu0
        %v1020 = vadd.f32 %v1001, %v1019
        %v1021 = vpop.f32.mrf.mxu0
        %v1022 = vadd.f32 %v1003, %v1021
        %1023 = vmatmul.bf16.gmra.mxu0 %v497
        %v1024 = vpop.f32.mrf.mxu0
        %v1025 = vadd.f32 %v1006, %v1024
        %v1026 = vpop.f32.mrf.mxu0
        %v1027 = vadd.f32 %v1008, %v1026
        %1028 = vdwg.mxu0
        %1029 = vmatpush.bf16.msra.mxu0 %v848
        %1030 = vmatpush.bf16.msra.mxu0 %v847
        %1031 = vmatpush.bf16.msra.mxu0 %v846
        %1032 = vmatpush.bf16.msra.mxu0 %v845
        %1033 = vmatpush.bf16.msra.mxu0 %v844
        %1034 = vmatpush.bf16.msra.mxu0 %v843
        %1035 = vmatpush.bf16.msra.mxu0 %v842
        %1036 = vmatpush.bf16.msra.mxu0 %v841
        %1037 = vmatmul.bf16.gmra.mxu0 %v489
        %v1038 = vpop.f32.mrf.mxu0
        %v1039 = vadd.f32 %v1020, %v1038
        %v1040 = vpop.f32.mrf.mxu0
        %v1041 = vadd.f32 %v1022, %v1040
        %1042 = vmatmul.bf16.gmra.mxu0 %v498
        %v1043 = vpop.f32.mrf.mxu0
        %v1044 = vadd.f32 %v1025, %v1043
        %v1045 = vpop.f32.mrf.mxu0
        %v1046 = vadd.f32 %v1027, %v1045
        %1047 = vdwg.mxu0
        %1048 = vmatpush.bf16.msra.mxu0 %v856
        %1049 = vmatpush.bf16.msra.mxu0 %v855
        %1050 = vmatpush.bf16.msra.mxu0 %v854
        %1051 = vmatpush.bf16.msra.mxu0 %v853
        %1052 = vmatpush.bf16.msra.mxu0 %v852
        %1053 = vmatpush.bf16.msra.mxu0 %v851
        %1054 = vmatpush.bf16.msra.mxu0 %v850
        %1055 = vmatpush.bf16.msra.mxu0 %v849
        %1056 = vmatmul.bf16.gmra.mxu0 %v490
        %v1057 = vpop.f32.mrf.mxu0
        %v1058 = vadd.f32 %v1039, %v1057
        %v1059 = vpop.f32.mrf.mxu0
        %v1060 = vadd.f32 %v1041, %v1059
        %1061 = vmatmul.bf16.gmra.mxu0 %v499
        %v1062 = vpop.f32.mrf.mxu0
        %v1063 = vadd.f32 %v1044, %v1062
        %v1064 = vpop.f32.mrf.mxu0
        %v1065 = vadd.f32 %v1046, %v1064
        %1066 = vdwg.mxu0
        %1067 = vmatpush.bf16.msra.mxu0 %v864
        %1068 = vmatpush.bf16.msra.mxu0 %v863
        %1069 = vmatpush.bf16.msra.mxu0 %v862
        %1070 = vmatpush.bf16.msra.mxu0 %v861
        %1071 = vmatpush.bf16.msra.mxu0 %v860
        %1072 = vmatpush.bf16.msra.mxu0 %v859
        %1073 = vmatpush.bf16.msra.mxu0 %v858
        %1074 = vmatpush.bf16.msra.mxu0 %v857
        %1075 = vmatmul.bf16.gmra.mxu0 %v491
        %v1076 = vpop.f32.mrf.mxu0
        %v1077 = vadd.f32 %v1058, %v1076
        %v1078 = vpop.f32.mrf.mxu0
        %v1079 = vadd.f32 %v1060, %v1078
        %1080 = vmatmul.bf16.gmra.mxu0 %v500
        %v1081 = vpop.f32.mrf.mxu0
        %v1082 = vadd.f32 %v1063, %v1081
        %v1083 = vpop.f32.mrf.mxu0
        %v1084 = vadd.f32 %v1065, %v1083
        %1085 = vdwg.mxu0
        %1086 = vmatpush.bf16.msra.mxu0 %v872
        %1087 = vmatpush.bf16.msra.mxu0 %v871
        %1088 = vmatpush.bf16.msra.mxu0 %v870
        %1089 = vmatpush.bf16.msra.mxu0 %v869
        %1090 = vmatpush.bf16.msra.mxu0 %v868
        %1091 = vmatpush.bf16.msra.mxu0 %v867
        %1092 = vmatpush.bf16.msra.mxu0 %v866
        %1093 = vmatpush.bf16.msra.mxu0 %v865
        %1094 = vmatmul.bf16.gmra.mxu0 %v492
        %v1095 = vpop.f32.mrf.mxu0
        %v1096 = vadd.f32 %v1077, %v1095
        %v1097 = vpop.f32.mrf.mxu0
        %v1098 = vadd.f32 %v1079, %v1097
        %1099 = vmatmul.bf16.gmra.mxu0 %v501
        %v1100 = vpop.f32.mrf.mxu0
        %v1101 = vadd.f32 %v1082, %v1100
        %v1102 = vpop.f32.mrf.mxu0
        %v1103 = vadd.f32 %v1084, %v1102
        %1104 = vdwg.mxu0
        %1105 = vmatpush.bf16.msra.mxu0 %v880
        %1106 = vmatpush.bf16.msra.mxu0 %v879
        %1107 = vmatpush.bf16.msra.mxu0 %v878
        %1108 = vmatpush.bf16.msra.mxu0 %v877
        %1109 = vmatpush.bf16.msra.mxu0 %v876
        %1110 = vmatpush.bf16.msra.mxu0 %v875
        %1111 = vmatpush.bf16.msra.mxu0 %v874
        %1112 = vmatpush.bf16.msra.mxu0 %v873
        %1113 = vmatmul.bf16.gmra.mxu0 %v493
        %v1114 = vpop.f32.mrf.mxu0
        %v1115 = vadd.f32 %v1096, %v1114
        %v1116 = vpop.f32.mrf.mxu0
        %v1117 = vadd.f32 %v1098, %v1116
        %1118 = vmatmul.bf16.gmra.mxu0 %v502
        %v1119 = vpop.f32.mrf.mxu0
        %v1120 = vadd.f32 %v1101, %v1119
        %v1121 = vpop.f32.mrf.mxu0
        %v1122 = vadd.f32 %v1103, %v1121
        %1123 = vdwg.mxu0
        %v1124 = vmax.f32 %v1115, 0.0
        %v1125 = vmax.f32 %v1117, 0.0
        %v1126 = vmax.f32 %v1120, 0.0
        %v1127 = vmax.f32 %v1122, 0.0
        %v1128 = vpack.c.bf16 %v1124, %v1124
        %v1129 = vpack.c.bf16 %v1125, %v1125
        %v1130 = vpack.c.bf16 %v1126, %v1126
        %v1131 = vpack.c.bf16 %v1127, %v1127
        %1132 = vst [vmem:[%s252] sm:$0xf] %v1128
        %1133 = vst [vmem:[%s252 + $0x4] sm:$0xf] %v1129
        %1134 = vst [vmem:[%s252 + $0x8] sm:$0xf] %v1130
        %1135 = vst [vmem:[%s252 + $0xc] sm:$0xf] %v1131
        %s1136 = sand.u32 %s120, 1
        %s1137 = sand.u32 %s120, 1
        %s1138 = smul.addr %s1137, 16
        %s1139 = scalar_lea.vmem [#allocation6], %s1138
        // Predicated region
        $region41: #{generator1_forward.6} parent=31 // pred_check
          %p1140 = pneg %p130
        $region42: #{generator1_forward.6} parent=31 // pred_check_branch
          %1142 = sbr.rel (%p1140) target = $region44
        $region43: #{generator1_forward.6} parent=31 // pred_region
          %s1143 = smul.u32 4, %s24
          %s1144 = smul.addr %s1143, 2
          %s1145 = sadd.s32 %s25, %s1144
          %s1146 = smul.addr %s1145, 4
          %s1147 = scalar_lea.vmem %s3, %s1146
          // Predicated region
          $region45: #{generator1_forward.6} parent=43 // pred_check
            _
          $region46: #{generator1_forward.6} parent=43 // pred_check_branch
            %1149 = sbr.rel (0) target = $region48
          $region47: #{generator1_forward.6} parent=43 // pred_region
            // Predicated region
            $region49: #{generator1_forward.6} parent=47 // pred_check
              _
            $region50: #{generator1_forward.6} parent=47 // pred_check_branch
              %1151 = sbr.rel target = $region52
            $region51: #{generator1_forward.6} parent=47 // pred_region
              // Predicated region
              $region64: #{generator1_forward.6} parent=51 // pred_check
                _
              $region65: #{generator1_forward.6} parent=51 // pred_check_branch
                %1173 = sbr.rel (0) target = $region67
              $region66: #{generator1_forward.6} parent=51 // pred_region
                loop: start=0, step=1, limit=1
                $region68: #{generator1_forward.6} parent=66 // loop_pre_header
                  _
                $region69: #{generator1_forward.6} parent=66 // loop_header
                  %s1175 = sphi 0, %s1179
                  %p1176 = scmp.ge.s32.totalorder %s1175, 1
                  %s1180 = sphi %s1139, %s1139
                  %s1181 = sphi %s1147, %s1147
                $region70: #{generator1_forward.6} parent=66 // loop_header_branch
                  %1178 = sbr.rel (%p1176) target = $region74
                $region71: #{generator1_forward.6} parent=66 // loop_body
                  _
                $region72: #{generator1_forward.6} parent=66 // loop_footer
                  %s1179 = sadd.s32 1, %s1175
                $region73: #{generator1_forward.6} parent=66 // loop_footer_branch
                  %1174 = sbr.rel target = $region69
                $region74: #{generator1_forward.6} parent=66 // loop_exit
                  _
                %s1183 = ssub.s32 16, 1
                loop: start=0, step=1, limit=1
                $region75: #{generator1_forward.6} parent=66 // loop_pre_header
                  _
                $region76: #{generator1_forward.6} parent=66 // loop_header
                  %s1185 = sphi 0, %s1189
                  %p1186 = scmp.ge.s32.totalorder %s1185, 1
                  %s1190 = sphi %s1139, %s1139
                  %s1191 = sphi %s1147, %s1147
                $region77: #{generator1_forward.6} parent=66 // loop_header_branch
                  %1188 = sbr.rel (%p1186) target = $region81
                $region78: #{generator1_forward.6} parent=66 // loop_body
                  %v1192 = vld [vmem:[%s1190] sm:%s1183]
                  %1193 = vst [vmem:[%s1191] sm:%s1183] %v1192
                  %v1194 = vld [vmem:[%s1190 + $0x4] sm:%s1183]
                  %1195 = vst [vmem:[%s1191 + $0x8] sm:%s1183] %v1194
                  %v1196 = vld [vmem:[%s1190 + $0x8] sm:%s1183]
                  %1197 = vst [vmem:[%s1191 + $0x10] sm:%s1183] %v1196
                  %v1198 = vld [vmem:[%s1190 + $0xc] sm:%s1183]
                  %1199 = vst [vmem:[%s1191 + $0x18] sm:%s1183] %v1198
                $region79: #{generator1_forward.6} parent=66 // loop_footer
                  %s1189 = sadd.s32 1, %s1185
                $region80: #{generator1_forward.6} parent=66 // loop_footer_branch
                  %1184 = sbr.rel target = $region76
                $region81: #{generator1_forward.6} parent=66 // loop_exit
                  _
              $region67: #{generator1_forward.6} parent=51 // pred_fallthru
                _
            $region52: #{generator1_forward.6} parent=47 // pred_fallthru
              _
            // Predicated region
            $region53: #{generator1_forward.6} parent=47 // pred_check
              _
            $region54: #{generator1_forward.6} parent=47 // pred_check_branch
              %1153 = sbr.rel (0) target = $region56
            $region55: #{generator1_forward.6} parent=47 // pred_region
              %s1155 = ssub.s32 16, 1
              loop: start=0, step=1, limit=1
              $region57: #{generator1_forward.6} parent=55 // loop_pre_header
                _
              $region58: #{generator1_forward.6} parent=55 // loop_header
                %s1157 = sphi 0, %s1161
                %p1158 = scmp.ge.s32.totalorder %s1157, 1
                %s1162 = sphi %s1139, %s1139
                %s1163 = sphi %s1147, %s1147
              $region59: #{generator1_forward.6} parent=55 // loop_header_branch
                %1160 = sbr.rel (%p1158) target = $region63
              $region60: #{generator1_forward.6} parent=55 // loop_body
                %v1164 = vld [vmem:[%s1162] sm:%s1155]
                %1165 = vst [vmem:[%s1163] sm:%s1155] %v1164
                %v1166 = vld [vmem:[%s1162 + $0x4] sm:%s1155]
                %1167 = vst [vmem:[%s1163 + $0x8] sm:%s1155] %v1166
                %v1168 = vld [vmem:[%s1162 + $0x8] sm:%s1155]
                %1169 = vst [vmem:[%s1163 + $0x10] sm:%s1155] %v1168
                %v1170 = vld [vmem:[%s1162 + $0xc] sm:%s1155]
                %1171 = vst [vmem:[%s1163 + $0x18] sm:%s1155] %v1170
              $region61: #{generator1_forward.6} parent=55 // loop_footer
                %s1161 = sadd.s32 1, %s1157
              $region62: #{generator1_forward.6} parent=55 // loop_footer_branch
                %1156 = sbr.rel target = $region58
              $region63: #{generator1_forward.6} parent=55 // loop_exit
                _
            $region56: #{generator1_forward.6} parent=47 // pred_fallthru
              _
          $region48: #{generator1_forward.6} parent=43 // pred_fallthru
            _
          %1200 = vnop
        $region44: #{generator1_forward.6} parent=31 // pred_fallthru
          _
      $region32: #{generator1_forward.6} parent=5 // pred_fallthru
        _
      %p1201 = scmp.le.s32.totalorder 2, %s15
      // Predicated region
      $region82: #{generator1_forward.6} parent=5 // pred_check
        %p1202 = pneg %p1201
      $region83: #{generator1_forward.6} parent=5 // pred_check_branch
        %1204 = sbr.rel (%p1202) target = $region85
      $region84: #{generator1_forward.6} parent=5 // pred_region
        %s1205 = ssub.s32 %s15, 2
        // Predicated region
        $region86: #{generator1_forward.6} parent=84 // pred_check
          %p1206 = pneg %p136
        $region87: #{generator1_forward.6} parent=84 // pred_check_branch
          %1208 = sbr.rel (%p1206) target = $region89
        $region88: #{generator1_forward.6} parent=84 // pred_region
          %s1209 = sand.u32 %s121, 1
          %s1210 = sand.u32 %s121, 1
          %s1211 = smul.addr %s1210, 16
          %s1212 = scalar_lea.vmem [#allocation6], %s1211
        $region89: #{generator1_forward.6} parent=84 // pred_fallthru
          _
      $region85: #{generator1_forward.6} parent=5 // pred_fallthru
        _
    $region6: #{generator1_forward.6} parent=1 // loop_footer
      %s19 = sadd.s32 1, %s15
    $region7: #{generator1_forward.6} parent=1 // loop_footer_branch
      %14 = sbr.rel target = $region3
    $region8: #{generator1_forward.6} parent=1 // loop_exit
      _
    %1213 = vsyncpa [#allocation3], 1
    %s1214 = scalar_lea.sflag [#allocation3], 1
    %1215 = vsyncpa %s1214, 1
    %1216 = vsyncpa [#allocation5], 1
    %s1217 = scalar_lea.sflag [#allocation5], 1
    %1218 = vsyncpa %s1217, 1

// kernel: generator1_forward.5
$region0: #{generator1_forward.5}
  #allocation0 [shape = 'u32[]', space=smem, size = 0x4, offset = 0x4, fixed_abs, tag = 'smem constant byte address 0x4 - core index']
  #allocation1 [shape = 'u32[72,128]{1,0:T(1,128)}', space=vmem, size = 0x9000, scoped, tag = 'internal scratch']
  %s0 = inlined_call_operand.vmem [shape: bf16[2,112], index: 0, kind: input, shape index: {}]
  %s1 = inlined_call_operand.hbm [shape: bf16[112,18432], index: 1, kind: input, shape index: {}]
  %s2 = inlined_call_operand.hbm [shape: f32[1,18432], index: 2, kind: input, shape index: {}]
  %s3 = inlined_call_operand.vmem [shape: bf16[2,18432], index: 3, kind: output, shape index: {}]
  %s4 = sld [smem:[#allocation0]]
  $region53: #{generator1_forward.5} parent=0
    _
  %s6 = ssub.s32 1, %s4
  %s7 = scalar_select 0, %s6, %s4
  $region1: #{generator1_forward.5} parent=0
    #allocation2 [shape = 'u8[917504]{0}', space=vmem, size = 0xe0000, scoped, tag = 'input window, operand 1']
    #allocation3 [shape = 's32[2]{0}', space=sflag, size = 0x8, scoped, tag = 'scoped memory for generator1_forward.5']
    #allocation4 [shape = 'u8[16384]{0}', space=vmem, size = 0x4000, scoped, tag = 'input window, operand 2']
    #allocation5 [shape = 's32[2]{0}', space=sflag, size = 0x8, scoped, tag = 'scoped memory for generator1_forward.5']
    %8 = vsyncpa [#allocation3], 0
    %s9 = scalar_lea.sflag [#allocation3], 1
    %10 = vsyncpa %s9, 0
    %11 = vsyncpa [#allocation5], 0
    %s12 = scalar_lea.sflag [#allocation5], 1
    %13 = vsyncpa %s12, 0
    loop: start=0, step=1, limit=11
    $region2: #{generator1_forward.5} parent=1 // loop_pre_header
      _
    $region3: #{generator1_forward.5} parent=1 // loop_header
      %s15 = sphi 0, %s19
      %p16 = scmp.ge.s32.totalorder %s15, 11
      %s22 = sphi 0, %s34
      %s23 = sphi 0, %s30
      %s24 = sphi 0, %s22
      %s25 = sphi 0, %s23
      %s26 = sphi 0, %s24
      %s27 = sphi 0, %s25
      %s37 = sphi 0, %s39
      %s40 = sphi 0, %s37
      %s41 = sphi 0, %s40
      %s57 = sphi 0, %s41
      %s63 = sphi 0, %s65
      %s66 = sphi 0, %s63
      %s67 = sphi 0, %s66
      %s83 = sphi 0, %s67
      %s89 = sphi 0, %s91
      %s92 = sphi 0, %s89
      %s93 = sphi 0, %s92
      %s109 = sphi 0, %s93
      %s117 = sphi 0, %s119
      %s120 = sphi 0, %s117
      %s121 = sphi 0, %s120
      %s137 = sphi 0, %s121
    $region4: #{generator1_forward.5} parent=1 // loop_header_branch
      %18 = sbr.rel (%p16) target = $region8
    $region5: #{generator1_forward.5} parent=1 // loop_body
      %s20 = ssub.s32 %s15, 1
      %s21 = ssub.s32 %s15, 2
      %s28 = sadd.s32 1, %s23
      %p29 = scmp.ge.s32.totalorder %s28, 9
      %s30 = scalar_select %p29, 0, %s28
      %s31 = sadd.s32 1, %s22
      %s32 = scalar_select %p29, %s31, %s22
      %p33 = scmp.ge.s32.totalorder %s32, 1
      %s34 = scalar_select %p33, 0, %s32
      %s35 = ssub.s32 %s22, %s34
      %p36 = scmp.eq.s32.totalorder %s35, 0
      %s38 = sadd.s32 %s37, 1
      %s39 = scalar_select %p36, %s37, %s38
      %p42 = pneg %p36
      %p43 = scmp.eq.s32.totalorder %s15, 8
      %p44 = por %p42, %p43
      %p45 = scmp.ne.s32.totalorder %s37, %s40
      %p46 = scmp.eq.s32.totalorder %s15, 0
      %p47 = por %p45, %p46
      %p48 = scmp.ne.s32.totalorder %s37, %s40
      %p49 = scmp.eq.s32.totalorder %s20, 8
      %p50 = por %p48, %p49
      %p51 = scmp.ne.s32.totalorder %s40, %s41
      %p52 = scmp.eq.s32.totalorder %s20, 0
      %p53 = por %p51, %p52
      %p54 = scmp.ne.s32.totalorder %s40, %s41
      %p55 = scmp.eq.s32.totalorder %s21, 8
      %p56 = por %p54, %p55
      %p58 = scmp.ne.s32.totalorder %s41, %s57
      %p59 = scmp.eq.s32.totalorder %s21, 0
      %p60 = por %p58, %p59
      %s61 = ssub.s32 %s23, %s30
      %p62 = scmp.eq.s32.totalorder %s61, 0
      %s64 = sadd.s32 %s63, 1
      %s65 = scalar_select %p62, %s63, %s64
      %p68 = pneg %p62
      %p69 = scmp.eq.s32.totalorder %s15, 8
      %p70 = por %p68, %p69
      %p71 = scmp.ne.s32.totalorder %s63, %s66
      %p72 = scmp.eq.s32.totalorder %s15, 0
      %p73 = por %p71, %p72
      %p74 = scmp.ne.s32.totalorder %s63, %s66
      %p75 = scmp.eq.s32.totalorder %s20, 8
      %p76 = por %p74, %p75
      %p77 = scmp.ne.s32.totalorder %s66, %s67
      %p78 = scmp.eq.s32.totalorder %s20, 0
      %p79 = por %p77, %p78
      %p80 = scmp.ne.s32.totalorder %s66, %s67
      %p81 = scmp.eq.s32.totalorder %s21, 8
      %p82 = por %p80, %p81
      %p84 = scmp.ne.s32.totalorder %s67, %s83
      %p85 = scmp.eq.s32.totalorder %s21, 0
      %p86 = por %p84, %p85
      %s87 = ssub.s32 %s23, %s30
      %p88 = scmp.eq.s32.totalorder %s87, 0
      %s90 = sadd.s32 %s89, 1
      %s91 = scalar_select %p88, %s89, %s90
      %p94 = pneg %p88
      %p95 = scmp.eq.s32.totalorder %s15, 8
      %p96 = por %p94, %p95
      %p97 = scmp.ne.s32.totalorder %s89, %s92
      %p98 = scmp.eq.s32.totalorder %s15, 0
      %p99 = por %p97, %p98
      %p100 = scmp.ne.s32.totalorder %s89, %s92
      %p101 = scmp.eq.s32.totalorder %s20, 8
      %p102 = por %p100, %p101
      %p103 = scmp.ne.s32.totalorder %s92, %s93
      %p104 = scmp.eq.s32.totalorder %s20, 0
      %p105 = por %p103, %p104
      %p106 = scmp.ne.s32.totalorder %s92, %s93
      %p107 = scmp.eq.s32.totalorder %s21, 8
      %p108 = por %p106, %p107
      %p110 = scmp.ne.s32.totalorder %s93, %s109
      %p111 = scmp.eq.s32.totalorder %s21, 0
      %p112 = por %p110, %p111
      %s113 = ssub.s32 %s22, %s34
      %s114 = ssub.s32 %s23, %s30
      %s115 = sor.u32 %s113, %s114
      %p116 = scmp.eq.s32.totalorder %s115, 0
      %s118 = sadd.s32 %s117, 1
      %s119 = scalar_select %p116, %s117, %s118
      %p122 = pneg %p116
      %p123 = scmp.eq.s32.totalorder %s15, 8
      %p124 = por %p122, %p123
      %p125 = scmp.ne.s32.totalorder %s117, %s120
      %p126 = scmp.eq.s32.totalorder %s15, 0
      %p127 = por %p125, %p126
      %p128 = scmp.ne.s32.totalorder %s117, %s120
      %p129 = scmp.eq.s32.totalorder %s20, 8
      %p130 = por %p128, %p129
      %p131 = scmp.ne.s32.totalorder %s120, %s121
      %p132 = scmp.eq.s32.totalorder %s20, 0
      %p133 = por %p131, %p132
      %p134 = scmp.ne.s32.totalorder %s120, %s121
      %p135 = scmp.eq.s32.totalorder %s21, 8
      %p136 = por %p134, %p135
      %p138 = scmp.ne.s32.totalorder %s121, %s137
      %p139 = scmp.eq.s32.totalorder %s21, 0
      %p140 = por %p138, %p139
      %p141 = scmp.le.s32.totalorder 1, %s15
      %p142 = scmp.lt.s32.totalorder %s15, 10
      %p143 = pnand %p141, %p142
      %p144 = pneg %p143
      // Predicated region
      $region9: #{generator1_forward.5} parent=5 // pred_check
        _
      $region10: #{generator1_forward.5} parent=5 // pred_check_branch
        %146 = sbr.rel (%p143) target = $region12
      $region11: #{generator1_forward.5} parent=5 // pred_region
        %s147 = ssub.s32 %s15, 1
        // Predicated region
        $region13: #{generator1_forward.5} parent=11 // pred_check
          %p148 = pneg %p53
        $region14: #{generator1_forward.5} parent=11 // pred_check_branch
          %150 = sbr.rel (%p148) target = $region16
        $region15: #{generator1_forward.5} parent=11 // pred_region
          %p151 = scmp.lt.s32.totalorder %s24, 0
          %s152 = scalar_select %p151, %s24, 0
          %s153 = scalar_lea.vmem %s0, %s152
        $region16: #{generator1_forward.5} parent=11 // pred_fallthru
          _
      $region12: #{generator1_forward.5} parent=5 // pred_fallthru
        _
      %p154 = scmp.lt.s32.totalorder %s15, 9
      // Predicated region
      $region17: #{generator1_forward.5} parent=5 // pred_check
        %p155 = pneg %p154
      $region18: #{generator1_forward.5} parent=5 // pred_check_branch
        %157 = sbr.rel (%p155) target = $region20
      $region19: #{generator1_forward.5} parent=5 // pred_region
        // Predicated region
        $region21: #{generator1_forward.5} parent=19 // pred_check
          %p158 = pneg %p73
        $region22: #{generator1_forward.5} parent=19 // pred_check_branch
          %160 = sbr.rel (%p158) target = $region24
        $region23: #{generator1_forward.5} parent=19 // pred_region
          %s161 = sand.u32 %s63, 1
          %s162 = scalar_lea.sflag [#allocation3], %s161
          %s163 = sand.u32 %s63, 1
          %s164 = smul.addr %s163, 896
          %s165 = scalar_lea.vmem [#allocation2], %s164
          %s166 = smul.u32 16, %s23
          %168 = vsyncadd %s162, 0
          %s169 = smul.addr %s166, 4
          %s170 = scalar_lea.hbm %s1, %s169
          %s171 = sshll.u32 %s170, 4
          %s172 = int_to_ptr.hbm [resolvable:$true] %s171
          %s173 = sshll.u32 %s165, 4
          %s174 = int_to_ptr.vmem [resolvable:$true] %s173
          %179 = dma.hbm_to_vmem [thread:$0]  %s172, 14336, %s174, %s162, 9216, 1024, 64
        $region24: #{generator1_forward.5} parent=19 // pred_fallthru
          _
        // Predicated region
        $region25: #{generator1_forward.5} parent=19 // pred_check
          %p180 = pneg %p99
        $region26: #{generator1_forward.5} parent=19 // pred_check_branch
          %182 = sbr.rel (%p180) target = $region28
        $region27: #{generator1_forward.5} parent=19 // pred_region
          %s183 = sand.u32 %s89, 1
          %s184 = scalar_lea.sflag [#allocation5], %s183
          %s185 = sand.u32 %s89, 1
          %s186 = smul.addr %s185, 16
          %s187 = scalar_lea.vmem [#allocation4], %s186
          %s188 = smul.u32 16, %s23
          %190 = vsyncadd %s184, 0
          %s191 = scalar_lea.hbm %s2, %s188
          %s193 = sshll.u32 %s191, 4
          %s194 = int_to_ptr.hbm [resolvable:$true] %s193
          %s195 = sshll.u32 %s187, 4
          %s196 = int_to_ptr.vmem [resolvable:$true] %s195
          %198 = dma.hbm_to_vmem [thread:$0]  %s194, 256, %s196, %s184
        $region28: #{generator1_forward.5} parent=19 // pred_fallthru
          _
      $region20: #{generator1_forward.5} parent=5 // pred_fallthru
        _
      %p199 = scmp.le.s32.totalorder 1, %s15
      %p200 = scmp.lt.s32.totalorder %s15, 10
      %p201 = pnand %p199, %p200
      %p202 = pneg %p201
      // Predicated region
      $region29: #{generator1_forward.5} parent=5 // pred_check
        _
      $region30: #{generator1_forward.5} parent=5 // pred_check_branch
        %204 = sbr.rel (%p201) target = $region32
      $region31: #{generator1_forward.5} parent=5 // pred_region
        %s205 = ssub.s32 %s15, 1
        %s206 = sand.u32 %s66, 1
        %s207 = scalar_lea.sflag [#allocation3], %s206
        %s208 = sand.u32 %s66, 1
        %s209 = smul.addr %s208, 896
        %s210 = scalar_lea.vmem [#allocation2], %s209
        // Predicated region
        $region33: #{generator1_forward.5} parent=31 // pred_check
          %p211 = pneg %p79
        $region34: #{generator1_forward.5} parent=31 // pred_check_branch
          %213 = sbr.rel (%p211) target = $region36
        $region35: #{generator1_forward.5} parent=31 // pred_region
          %215 = dma.done %s207, 14336
        $region36: #{generator1_forward.5} parent=31 // pred_fallthru
          _
        %s216 = sand.u32 %s92, 1
        %s217 = scalar_lea.sflag [#allocation5], %s216
        %s218 = sand.u32 %s92, 1
        %s219 = smul.addr %s218, 16
        %s220 = scalar_lea.vmem [#allocation4], %s219
        // Predicated region
        $region37: #{generator1_forward.5} parent=31 // pred_check
          %p221 = pneg %p105
        $region38: #{generator1_forward.5} parent=31 // pred_check_branch
          %223 = sbr.rel (%p221) target = $region40
        $region39: #{generator1_forward.5} parent=31 // pred_region
          %225 = dma.done %s217, 256
        $region40: #{generator1_forward.5} parent=31 // pred_fallthru
          _
        %p226 = scmp.lt.s32.totalorder %s24, 0
        %s227 = scalar_select %p226, %s24, 0
        %s228 = scalar_lea.vmem %s0, %s227
        %p229 = pneg %p53
        %p230 = pneg %p50
        %s231 = sand.u32 %s66, 1
        %s232 = scalar_lea.sflag [#allocation3], %s231
        %s233 = sand.u32 %s66, 1
        %s234 = smul.addr %s233, 896
        %s235 = scalar_lea.vmem [#allocation2], %s234
        %p236 = pneg %p79
        %p237 = pneg %p76
        %s238 = sand.u32 %s92, 1
        %s239 = scalar_lea.sflag [#allocation5], %s238
        %s240 = sand.u32 %s92, 1
        %s241 = smul.addr %s240, 16
        %s242 = scalar_lea.vmem [#allocation4], %s241
        %p243 = pneg %p105
        %p244 = pneg %p102
        %p245 = pneg %p133
        %p246 = pneg %p130
        %s247 = smul.u32 16, %s25
        %p248 = scmp.lt.s32.totalorder %s24, 0
        %s249 = scalar_select %p248, %s24, 0
        %p250 = scmp.lt.s32.totalorder %s247, 143
        %s251 = scalar_select %p250, %s247, 143
        %s252 = smul.addr %s249, 144
        %s253 = sadd.s32 %s251, %s252
        %s254 = scalar_lea.vmem %s3, %s253
        %p255 = scmp.lt.s32.totalorder %s24, 0
        %s256 = scalar_select %p255, %s24, 0
        %s257 = scalar_lea.vmem %s0, %s256
        %s258 = smul.u32 16, %s25
        %s259 = smul.u32 16, %s25
        %s260 = smul.u32 16, %s25
        %p261 = scmp.lt.s32.totalorder %s24, 0
        %s262 = scalar_select %p261, %s24, 0
        %p263 = scmp.lt.s32.totalorder %s260, 143
        %s264 = scalar_select %p263, %s260, 143
        %s265 = smul.addr %s262, 144
        %s266 = sadd.s32 %s264, %s265
        %s267 = scalar_lea.vmem %s3, %s266
        %s268 = smul.u32 16, %s25
        %v270 = vld [vmem:[%s257] sm:$0x1]
        %v271 = vld [vmem:[%s210] sm:$0xff]
        %v272 = vld [vmem:[%s210 + $0x8] sm:$0xff]
        %v273 = vld [vmem:[%s210 + $0x10] sm:$0xff]
        %v274 = vld [vmem:[%s210 + $0x18] sm:$0xff]
        %v275 = vld [vmem:[%s210 + $0x20] sm:$0xff]
        %v276 = vld [vmem:[%s210 + $0x28] sm:$0xff]
        %v277 = vld [vmem:[%s210 + $0x30] sm:$0xff]
        %v278 = vld [vmem:[%s210 + $0x38] sm:$0xff]
        %v279 = vld [vmem:[%s210 + $0x40] sm:$0xff]
        %v280 = vld [vmem:[%s210 + $0x48] sm:$0xff]
        %v281 = vld [vmem:[%s210 + $0x50] sm:$0xff]
        %v282 = vld [vmem:[%s210 + $0x58] sm:$0xff]
        %v283 = vld [vmem:[%s210 + $0x60] sm:$0xff]
        %v284 = vld [vmem:[%s210 + $0x68] sm:$0xff]
        %v285 = vld [vmem:[%s210 + $0x70] sm:$0xff]
        %v286 = vld [vmem:[%s210 + $0x78] sm:$0xff]
        %v287 = vld [vmem:[%s210 + $0x80] sm:$0xff]
        %v288 = vld [vmem:[%s210 + $0x88] sm:$0xff]
        %v289 = vld [vmem:[%s210 + $0x90] sm:$0xff]
        %v290 = vld [vmem:[%s210 + $0x98] sm:$0xff]
        %v291 = vld [vmem:[%s210 + $0xa0] sm:$0xff]
        %v292 = vld [vmem:[%s210 + $0xa8] sm:$0xff]
        %v293 = vld [vmem:[%s210 + $0xb0] sm:$0xff]
        %v294 = vld [vmem:[%s210 + $0xb8] sm:$0xff]
        %v295 = vld [vmem:[%s210 + $0xc0] sm:$0xff]
        %v296 = vld [vmem:[%s210 + $0xc8] sm:$0xff]
        %v297 = vld [vmem:[%s210 + $0xd0] sm:$0xff]
        %v298 = vld [vmem:[%s210 + $0xd8] sm:$0xff]
        %v299 = vld [vmem:[%s210 + $0xe0] sm:$0xff]
        %v300 = vld [vmem:[%s210 + $0xe8] sm:$0xff]
        %v301 = vld [vmem:[%s210 + $0xf0] sm:$0xff]
        %v302 = vld [vmem:[%s210 + $0xf8] sm:$0xff]
        %v303 = vld [vmem:[%s210 + $0x100] sm:$0xff]
        %v304 = vld [vmem:[%s210 + $0x108] sm:$0xff]
        %v305 = vld [vmem:[%s210 + $0x110] sm:$0xff]
        %v306 = vld [vmem:[%s210 + $0x118] sm:$0xff]
        %v307 = vld [vmem:[%s210 + $0x120] sm:$0xff]
        %v308 = vld [vmem:[%s210 + $0x128] sm:$0xff]
        %v309 = vld [vmem:[%s210 + $0x130] sm:$0xff]
        %v310 = vld [vmem:[%s210 + $0x138] sm:$0xff]
        %v311 = vld [vmem:[%s210 + $0x140] sm:$0xff]
        %v312 = vld [vmem:[%s210 + $0x148] sm:$0xff]
        %v313 = vld [vmem:[%s210 + $0x150] sm:$0xff]
        %v314 = vld [vmem:[%s210 + $0x158] sm:$0xff]
        %v315 = vld [vmem:[%s210 + $0x160] sm:$0xff]
        %v316 = vld [vmem:[%s210 + $0x168] sm:$0xff]
        %v317 = vld [vmem:[%s210 + $0x170] sm:$0xff]
        %v318 = vld [vmem:[%s210 + $0x178] sm:$0xff]
        %v319 = vld [vmem:[%s210 + $0x180] sm:$0xff]
        %v320 = vld [vmem:[%s210 + $0x188] sm:$0xff]
        %v321 = vld [vmem:[%s210 + $0x190] sm:$0xff]
        %v322 = vld [vmem:[%s210 + $0x198] sm:$0xff]
        %v323 = vld [vmem:[%s210 + $0x1a0] sm:$0xff]
        %v324 = vld [vmem:[%s210 + $0x1a8] sm:$0xff]
        %v325 = vld [vmem:[%s210 + $0x1b0] sm:$0xff]
        %v326 = vld [vmem:[%s210 + $0x1b8] sm:$0xff]
        %v327 = vld [vmem:[%s210 + $0x1c0] sm:$0xff]
        %v328 = vld [vmem:[%s210 + $0x1c8] sm:$0xff]
        %v329 = vld [vmem:[%s210 + $0x1d0] sm:$0xff]
        %v330 = vld [vmem:[%s210 + $0x1d8] sm:$0xff]
        %v331 = vld [vmem:[%s210 + $0x1e0] sm:$0xff]
        %v332 = vld [vmem:[%s210 + $0x1e8] sm:$0xff]
        %v333 = vld [vmem:[%s210 + $0x1f0] sm:$0xff]
        %v334 = vld [vmem:[%s210 + $0x1f8] sm:$0xff]
        %v335 = vld [vmem:[%s210 + $0x200] sm:$0xff]
        %v336 = vld [vmem:[%s210 + $0x208] sm:$0xff]
        %v337 = vld [vmem:[%s210 + $0x210] sm:$0xff]
        %v338 = vld [vmem:[%s210 + $0x218] sm:$0xff]
        %v339 = vld [vmem:[%s210 + $0x220] sm:$0xff]
        %v340 = vld [vmem:[%s210 + $0x228] sm:$0xff]
        %v341 = vld [vmem:[%s210 + $0x230] sm:$0xff]
        %v342 = vld [vmem:[%s210 + $0x238] sm:$0xff]
        %v343 = vld [vmem:[%s210 + $0x240] sm:$0xff]
        %v344 = vld [vmem:[%s210 + $0x248] sm:$0xff]
        %v345 = vld [vmem:[%s210 + $0x250] sm:$0xff]
        %v346 = vld [vmem:[%s210 + $0x258] sm:$0xff]
        %v347 = vld [vmem:[%s210 + $0x260] sm:$0xff]
        %v348 = vld [vmem:[%s210 + $0x268] sm:$0xff]
        %v349 = vld [vmem:[%s210 + $0x270] sm:$0xff]
        %v350 = vld [vmem:[%s210 + $0x278] sm:$0xff]
        %v351 = vld [vmem:[%s210 + $0x280] sm:$0xff]
        %v352 = vld [vmem:[%s210 + $0x288] sm:$0xff]
        %v353 = vld [vmem:[%s210 + $0x290] sm:$0xff]
        %v354 = vld [vmem:[%s210 + $0x298] sm:$0xff]
        %v355 = vld [vmem:[%s210 + $0x2a0] sm:$0xff]
        %v356 = vld [vmem:[%s210 + $0x2a8] sm:$0xff]
        %v357 = vld [vmem:[%s210 + $0x2b0] sm:$0xff]
        %v358 = vld [vmem:[%s210 + $0x2b8] sm:$0xff]
        %v359 = vld [vmem:[%s210 + $0x2c0] sm:$0xff]
        %v360 = vld [vmem:[%s210 + $0x2c8] sm:$0xff]
        %v361 = vld [vmem:[%s210 + $0x2d0] sm:$0xff]
        %v362 = vld [vmem:[%s210 + $0x2d8] sm:$0xff]
        %v363 = vld [vmem:[%s210 + $0x2e0] sm:$0xff]
        %v364 = vld [vmem:[%s210 + $0x2e8] sm:$0xff]
        %v365 = vld [vmem:[%s210 + $0x2f0] sm:$0xff]
        %v366 = vld [vmem:[%s210 + $0x2f8] sm:$0xff]
        %v367 = vld [vmem:[%s210 + $0x300] sm:$0xff]
        %v368 = vld [vmem:[%s210 + $0x308] sm:$0xff]
        %v369 = vld [vmem:[%s210 + $0x310] sm:$0xff]
        %v370 = vld [vmem:[%s210 + $0x318] sm:$0xff]
        %v371 = vld [vmem:[%s210 + $0x320] sm:$0xff]
        %v372 = vld [vmem:[%s210 + $0x328] sm:$0xff]
        %v373 = vld [vmem:[%s210 + $0x330] sm:$0xff]
        %v374 = vld [vmem:[%s210 + $0x338] sm:$0xff]
        %v375 = vld [vmem:[%s210 + $0x340] sm:$0xff]
        %v376 = vld [vmem:[%s210 + $0x348] sm:$0xff]
        %v377 = vld [vmem:[%s210 + $0x350] sm:$0xff]
        %v378 = vld [vmem:[%s210 + $0x358] sm:$0xff]
        %v379 = vld [vmem:[%s210 + $0x360] sm:$0xff]
        %v380 = vld [vmem:[%s210 + $0x368] sm:$0xff]
        %v381 = vld [vmem:[%s210 + $0x370] sm:$0xff]
        %v382 = vld [vmem:[%s210 + $0x378] sm:$0xff]
        %v383 = vld [vmem:[%s220] sm:$0xff]
        %v384 = vld [vmem:[%s220 + $0x8] sm:$0xff]
        %v387 = vperm.slane %v383, 0
        %v388 = vperm.slane %v383, 1
        %v389 = vperm.slane %v383, 2
        %v390 = vperm.slane %v383, 3
        %v391 = vperm.slane %v383, 4
        %v392 = vperm.slane %v383, 5
        %v393 = vperm.slane %v383, 6
        %v394 = vperm.slane %v383, 7
        %v395 = vperm.slane %v384, 0
        %v396 = vperm.slane %v384, 1
        %v397 = vperm.slane %v384, 2
        %v398 = vperm.slane %v384, 3
        %v399 = vperm.slane %v384, 4
        %v400 = vperm.slane %v384, 5
        %v401 = vperm.slane %v384, 6
        %v402 = vperm.slane %v384, 7
        %v531 = vunpack.c.l.b16 %v271
        %v532 = vunpack.c.h.b16 %v271
        %v533 = vunpack.c.l.b16 %v272
        %v534 = vunpack.c.h.b16 %v272
        %v535 = vunpack.c.l.b16 %v273
        %v536 = vunpack.c.h.b16 %v273
        %v537 = vunpack.c.l.b16 %v274
        %v538 = vunpack.c.h.b16 %v274
        %v539 = vunpack.c.l.b16 %v275
        %v540 = vunpack.c.h.b16 %v275
        %v541 = vunpack.c.l.b16 %v276
        %v542 = vunpack.c.h.b16 %v276
        %v543 = vunpack.c.l.b16 %v277
        %v544 = vunpack.c.h.b16 %v277
        %v545 = vunpack.c.l.b16 %v278
        %v546 = vunpack.c.h.b16 %v278
        %v547 = vunpack.c.l.b16 %v279
        %v548 = vunpack.c.h.b16 %v279
        %v549 = vunpack.c.l.b16 %v280
        %v550 = vunpack.c.h.b16 %v280
        %v551 = vunpack.c.l.b16 %v281
        %v552 = vunpack.c.h.b16 %v281
        %v553 = vunpack.c.l.b16 %v282
        %v554 = vunpack.c.h.b16 %v282
        %v555 = vunpack.c.l.b16 %v283
        %v556 = vunpack.c.h.b16 %v283
        %v557 = vunpack.c.l.b16 %v284
        %v558 = vunpack.c.h.b16 %v284
        %v559 = vunpack.c.l.b16 %v285
        %v560 = vunpack.c.h.b16 %v285
        %v561 = vunpack.c.l.b16 %v286
        %v562 = vunpack.c.h.b16 %v286
        %v563 = vunpack.c.l.b16 %v287
        %v564 = vunpack.c.h.b16 %v287
        %v565 = vunpack.c.l.b16 %v288
        %v566 = vunpack.c.h.b16 %v288
        %v567 = vunpack.c.l.b16 %v289
        %v568 = vunpack.c.h.b16 %v289
        %v569 = vunpack.c.l.b16 %v290
        %v570 = vunpack.c.h.b16 %v290
        %v571 = vunpack.c.l.b16 %v291
        %v572 = vunpack.c.h.b16 %v291
        %v573 = vunpack.c.l.b16 %v292
        %v574 = vunpack.c.h.b16 %v292
        %v575 = vunpack.c.l.b16 %v293
        %v576 = vunpack.c.h.b16 %v293
        %v577 = vunpack.c.l.b16 %v294
        %v578 = vunpack.c.h.b16 %v294
        %v579 = vunpack.c.l.b16 %v295
        %v580 = vunpack.c.h.b16 %v295
        %v581 = vunpack.c.l.b16 %v296
        %v582 = vunpack.c.h.b16 %v296
        %v583 = vunpack.c.l.b16 %v297
        %v584 = vunpack.c.h.b16 %v297
        %v585 = vunpack.c.l.b16 %v298
        %v586 = vunpack.c.h.b16 %v298
        %v587 = vunpack.c.l.b16 %v299
        %v588 = vunpack.c.h.b16 %v299
        %v589 = vunpack.c.l.b16 %v300
        %v590 = vunpack.c.h.b16 %v300
        %v591 = vunpack.c.l.b16 %v301
        %v592 = vunpack.c.h.b16 %v301
        %v593 = vunpack.c.l.b16 %v302
        %v594 = vunpack.c.h.b16 %v302
        %v595 = vunpack.c.l.b16 %v303
        %v596 = vunpack.c.h.b16 %v303
        %v597 = vunpack.c.l.b16 %v304
        %v598 = vunpack.c.h.b16 %v304
        %v599 = vunpack.c.l.b16 %v305
        %v600 = vunpack.c.h.b16 %v305
        %v601 = vunpack.c.l.b16 %v306
        %v602 = vunpack.c.h.b16 %v306
        %v603 = vunpack.c.l.b16 %v307
        %v604 = vunpack.c.h.b16 %v307
        %v605 = vunpack.c.l.b16 %v308
        %v606 = vunpack.c.h.b16 %v308
        %v607 = vunpack.c.l.b16 %v309
        %v608 = vunpack.c.h.b16 %v309
        %v609 = vunpack.c.l.b16 %v310
        %v610 = vunpack.c.h.b16 %v310
        %v611 = vunpack.c.l.b16 %v311
        %v612 = vunpack.c.h.b16 %v311
        %v613 = vunpack.c.l.b16 %v312
        %v614 = vunpack.c.h.b16 %v312
        %v615 = vunpack.c.l.b16 %v313
        %v616 = vunpack.c.h.b16 %v313
        %v617 = vunpack.c.l.b16 %v314
        %v618 = vunpack.c.h.b16 %v314
        %v619 = vunpack.c.l.b16 %v315
        %v620 = vunpack.c.h.b16 %v315
        %v621 = vunpack.c.l.b16 %v316
        %v622 = vunpack.c.h.b16 %v316
        %v623 = vunpack.c.l.b16 %v317
        %v624 = vunpack.c.h.b16 %v317
        %v625 = vunpack.c.l.b16 %v318
        %v626 = vunpack.c.h.b16 %v318
        %v627 = vunpack.c.l.b16 %v319
        %v628 = vunpack.c.h.b16 %v319
        %v629 = vunpack.c.l.b16 %v320
        %v630 = vunpack.c.h.b16 %v320
        %v631 = vunpack.c.l.b16 %v321
        %v632 = vunpack.c.h.b16 %v321
        %v633 = vunpack.c.l.b16 %v322
        %v634 = vunpack.c.h.b16 %v322
        %v635 = vunpack.c.l.b16 %v323
        %v636 = vunpack.c.h.b16 %v323
        %v637 = vunpack.c.l.b16 %v324
        %v638 = vunpack.c.h.b16 %v324
        %v639 = vunpack.c.l.b16 %v325
        %v640 = vunpack.c.h.b16 %v325
        %v641 = vunpack.c.l.b16 %v326
        %v642 = vunpack.c.h.b16 %v326
        %v643 = vunpack.c.l.b16 %v327
        %v644 = vunpack.c.h.b16 %v327
        %v645 = vunpack.c.l.b16 %v328
        %v646 = vunpack.c.h.b16 %v328
        %v647 = vunpack.c.l.b16 %v329
        %v648 = vunpack.c.h.b16 %v329
        %v649 = vunpack.c.l.b16 %v330
        %v650 = vunpack.c.h.b16 %v330
        %v651 = vunpack.c.l.b16 %v331
        %v652 = vunpack.c.h.b16 %v331
        %v653 = vunpack.c.l.b16 %v332
        %v654 = vunpack.c.h.b16 %v332
        %v655 = vunpack.c.l.b16 %v333
        %v656 = vunpack.c.h.b16 %v333
        %v657 = vunpack.c.l.b16 %v334
        %v658 = vunpack.c.h.b16 %v334
        %v659 = vunpack.c.l.b16 %v335
        %v660 = vunpack.c.h.b16 %v335
        %v661 = vunpack.c.l.b16 %v336
        %v662 = vunpack.c.h.b16 %v336
        %v663 = vunpack.c.l.b16 %v337
        %v664 = vunpack.c.h.b16 %v337
        %v665 = vunpack.c.l.b16 %v338
        %v666 = vunpack.c.h.b16 %v338
        %v667 = vunpack.c.l.b16 %v339
        %v668 = vunpack.c.h.b16 %v339
        %v669 = vunpack.c.l.b16 %v340
        %v670 = vunpack.c.h.b16 %v340
        %v671 = vunpack.c.l.b16 %v341
        %v672 = vunpack.c.h.b16 %v341
        %v673 = vunpack.c.l.b16 %v342
        %v674 = vunpack.c.h.b16 %v342
        %v675 = vunpack.c.l.b16 %v343
        %v676 = vunpack.c.h.b16 %v343
        %v677 = vunpack.c.l.b16 %v344
        %v678 = vunpack.c.h.b16 %v344
        %v679 = vunpack.c.l.b16 %v345
        %v680 = vunpack.c.h.b16 %v345
        %v681 = vunpack.c.l.b16 %v346
        %v682 = vunpack.c.h.b16 %v346
        %v683 = vunpack.c.l.b16 %v347
        %v684 = vunpack.c.h.b16 %v347
        %v685 = vunpack.c.l.b16 %v348
        %v686 = vunpack.c.h.b16 %v348
        %v687 = vunpack.c.l.b16 %v349
        %v688 = vunpack.c.h.b16 %v349
        %v689 = vunpack.c.l.b16 %v350
        %v690 = vunpack.c.h.b16 %v350
        %v691 = vunpack.c.l.b16 %v351
        %v692 = vunpack.c.h.b16 %v351
        %v693 = vunpack.c.l.b16 %v352
        %v694 = vunpack.c.h.b16 %v352
        %v695 = vunpack.c.l.b16 %v353
        %v696 = vunpack.c.h.b16 %v353
        %v697 = vunpack.c.l.b16 %v354
        %v698 = vunpack.c.h.b16 %v354
        %v699 = vunpack.c.l.b16 %v355
        %v700 = vunpack.c.h.b16 %v355
        %v701 = vunpack.c.l.b16 %v356
        %v702 = vunpack.c.h.b16 %v356
        %v703 = vunpack.c.l.b16 %v357
        %v704 = vunpack.c.h.b16 %v357
        %v705 = vunpack.c.l.b16 %v358
        %v706 = vunpack.c.h.b16 %v358
        %v707 = vunpack.c.l.b16 %v359
        %v708 = vunpack.c.h.b16 %v359
        %v709 = vunpack.c.l.b16 %v360
        %v710 = vunpack.c.h.b16 %v360
        %v711 = vunpack.c.l.b16 %v361
        %v712 = vunpack.c.h.b16 %v361
        %v713 = vunpack.c.l.b16 %v362
        %v714 = vunpack.c.h.b16 %v362
        %v715 = vunpack.c.l.b16 %v363
        %v716 = vunpack.c.h.b16 %v363
        %v717 = vunpack.c.l.b16 %v364
        %v718 = vunpack.c.h.b16 %v364
        %v719 = vunpack.c.l.b16 %v365
        %v720 = vunpack.c.h.b16 %v365
        %v721 = vunpack.c.l.b16 %v366
        %v722 = vunpack.c.h.b16 %v366
        %v723 = vunpack.c.l.b16 %v367
        %v724 = vunpack.c.h.b16 %v367
        %v725 = vunpack.c.l.b16 %v368
        %v726 = vunpack.c.h.b16 %v368
        %v727 = vunpack.c.l.b16 %v369
        %v728 = vunpack.c.h.b16 %v369
        %v729 = vunpack.c.l.b16 %v370
        %v730 = vunpack.c.h.b16 %v370
        %v731 = vunpack.c.l.b16 %v371
        %v732 = vunpack.c.h.b16 %v371
        %v733 = vunpack.c.l.b16 %v372
        %v734 = vunpack.c.h.b16 %v372
        %v735 = vunpack.c.l.b16 %v373
        %v736 = vunpack.c.h.b16 %v373
        %v737 = vunpack.c.l.b16 %v374
        %v738 = vunpack.c.h.b16 %v374
        %v739 = vunpack.c.l.b16 %v375
        %v740 = vunpack.c.h.b16 %v375
        %v741 = vunpack.c.l.b16 %v376
        %v742 = vunpack.c.h.b16 %v376
        %v743 = vunpack.c.l.b16 %v377
        %v744 = vunpack.c.h.b16 %v377
        %v745 = vunpack.c.l.b16 %v378
        %v746 = vunpack.c.h.b16 %v378
        %v747 = vunpack.c.l.b16 %v379
        %v748 = vunpack.c.h.b16 %v379
        %v749 = vunpack.c.l.b16 %v380
        %v750 = vunpack.c.h.b16 %v380
        %v751 = vunpack.c.l.b16 %v381
        %v752 = vunpack.c.h.b16 %v381
        %v753 = vunpack.c.l.b16 %v382
        %v754 = vunpack.c.h.b16 %v382
        %v755 = vpack.c.b16 %v547, %v531
        %v756 = vpack.c.b16 %v548, %v532
        %v757 = vpack.c.b16 %v549, %v533
        %v758 = vpack.c.b16 %v550, %v534
        %v759 = vpack.c.b16 %v551, %v535
        %v760 = vpack.c.b16 %v552, %v536
        %v761 = vpack.c.b16 %v553, %v537
        %v762 = vpack.c.b16 %v554, %v538
        %v763 = vpack.c.b16 %v555, %v539
        %v764 = vpack.c.b16 %v556, %v540
        %v765 = vpack.c.b16 %v557, %v541
        %v766 = vpack.c.b16 %v558, %v542
        %v767 = vpack.c.b16 %v559, %v543
        %v768 = vpack.c.b16 %v560, %v544
        %v769 = vpack.c.b16 %v561, %v545
        %v770 = vpack.c.b16 %v562, %v546
        %v771 = vpack.c.b16 %v579, %v563
        %v772 = vpack.c.b16 %v580, %v564
        %v773 = vpack.c.b16 %v581, %v565
        %v774 = vpack.c.b16 %v582, %v566
        %v775 = vpack.c.b16 %v583, %v567
        %v776 = vpack.c.b16 %v584, %v568
        %v777 = vpack.c.b16 %v585, %v569
        %v778 = vpack.c.b16 %v586, %v570
        %v779 = vpack.c.b16 %v587, %v571
        %v780 = vpack.c.b16 %v588, %v572
        %v781 = vpack.c.b16 %v589, %v573
        %v782 = vpack.c.b16 %v590, %v574
        %v783 = vpack.c.b16 %v591, %v575
        %v784 = vpack.c.b16 %v592, %v576
        %v785 = vpack.c.b16 %v593, %v577
        %v786 = vpack.c.b16 %v594, %v578
        %v787 = vpack.c.b16 %v611, %v595
        %v788 = vpack.c.b16 %v612, %v596
        %v789 = vpack.c.b16 %v613, %v597
        %v790 = vpack.c.b16 %v614, %v598
        %v791 = vpack.c.b16 %v615, %v599
        %v792 = vpack.c.b16 %v616, %v600
        %v793 = vpack.c.b16 %v617, %v601
        %v794 = vpack.c.b16 %v618, %v602
        %v795 = vpack.c.b16 %v619, %v603
        %v796 = vpack.c.b16 %v620, %v604
        %v797 = vpack.c.b16 %v621, %v605
        %v798 = vpack.c.b16 %v622, %v606
        %v799 = vpack.c.b16 %v623, %v607
        %v800 = vpack.c.b16 %v624, %v608
        %v801 = vpack.c.b16 %v625, %v609
        %v802 = vpack.c.b16 %v626, %v610
        %v803 = vpack.c.b16 %v643, %v627
        %v804 = vpack.c.b16 %v644, %v628
        %v805 = vpack.c.b16 %v645, %v629
        %v806 = vpack.c.b16 %v646, %v630
        %v807 = vpack.c.b16 %v647, %v631
        %v808 = vpack.c.b16 %v648, %v632
        %v809 = vpack.c.b16 %v649, %v633
        %v810 = vpack.c.b16 %v650, %v634
        %v811 = vpack.c.b16 %v651, %v635
        %v812 = vpack.c.b16 %v652, %v636
        %v813 = vpack.c.b16 %v653, %v637
        %v814 = vpack.c.b16 %v654, %v638
        %v815 = vpack.c.b16 %v655, %v639
        %v816 = vpack.c.b16 %v656, %v640
        %v817 = vpack.c.b16 %v657, %v641
        %v818 = vpack.c.b16 %v658, %v642
        %v819 = vpack.c.b16 %v675, %v659
        %v820 = vpack.c.b16 %v676, %v660
        %v821 = vpack.c.b16 %v677, %v661
        %v822 = vpack.c.b16 %v678, %v662
        %v823 = vpack.c.b16 %v679, %v663
        %v824 = vpack.c.b16 %v680, %v664
        %v825 = vpack.c.b16 %v681, %v665
        %v826 = vpack.c.b16 %v682, %v666
        %v827 = vpack.c.b16 %v683, %v667
        %v828 = vpack.c.b16 %v684, %v668
        %v829 = vpack.c.b16 %v685, %v669
        %v830 = vpack.c.b16 %v686, %v670
        %v831 = vpack.c.b16 %v687, %v671
        %v832 = vpack.c.b16 %v688, %v672
        %v833 = vpack.c.b16 %v689, %v673
        %v834 = vpack.c.b16 %v690, %v674
        %v835 = vpack.c.b16 %v707, %v691
        %v836 = vpack.c.b16 %v708, %v692
        %v837 = vpack.c.b16 %v709, %v693
        %v838 = vpack.c.b16 %v710, %v694
        %v839 = vpack.c.b16 %v711, %v695
        %v840 = vpack.c.b16 %v712, %v696
        %v841 = vpack.c.b16 %v713, %v697
        %v842 = vpack.c.b16 %v714, %v698
        %v843 = vpack.c.b16 %v715, %v699
        %v844 = vpack.c.b16 %v716, %v700
        %v845 = vpack.c.b16 %v717, %v701
        %v846 = vpack.c.b16 %v718, %v702
        %v847 = vpack.c.b16 %v719, %v703
        %v848 = vpack.c.b16 %v720, %v704
        %v849 = vpack.c.b16 %v721, %v705
        %v850 = vpack.c.b16 %v722, %v706
        %v851 = vpack.c.b16 %v739, %v723
        %v852 = vpack.c.b16 %v740, %v724
        %v853 = vpack.c.b16 %v741, %v725
        %v854 = vpack.c.b16 %v742, %v726
        %v855 = vpack.c.b16 %v743, %v727
        %v856 = vpack.c.b16 %v744, %v728
        %v857 = vpack.c.b16 %v745, %v729
        %v858 = vpack.c.b16 %v746, %v730
        %v859 = vpack.c.b16 %v747, %v731
        %v860 = vpack.c.b16 %v748, %v732
        %v861 = vpack.c.b16 %v749, %v733
        %v862 = vpack.c.b16 %v750, %v734
        %v863 = vpack.c.b16 %v751, %v735
        %v864 = vpack.c.b16 %v752, %v736
        %v865 = vpack.c.b16 %v753, %v737
        %v866 = vpack.c.b16 %v754, %v738
        %vm979 = vcmask 916480
        %v981 = vsel %vm979, %v270, 0
        %983 = vmatpush.bf16.msra.mxu0 0
        %984 = vmatpush.bf16.msra.mxu0 %v851
        %985 = vmatpush.bf16.msra.mxu0 %v835
        %986 = vmatpush.bf16.msra.mxu0 %v819
        %987 = vmatpush.bf16.msra.mxu0 %v803
        %988 = vmatpush.bf16.msra.mxu0 %v787
        %989 = vmatpush.bf16.msra.mxu0 %v771
        %990 = vmatpush.bf16.msra.mxu0 %v755
        %991 = vmatmul.bf16.gmra.mxu0 %v981
        %v992 = vpop.f32.mrf.mxu0
        %v993 = vadd.f32 %v387, %v992
        %v994 = vpop.f32.mrf.mxu0
        %995 = vdwg.mxu0
        %996 = vmatpush.bf16.msra.mxu0 0
        %997 = vmatpush.bf16.msra.mxu0 %v852
        %998 = vmatpush.bf16.msra.mxu0 %v836
        %999 = vmatpush.bf16.msra.mxu0 %v820
        %1000 = vmatpush.bf16.msra.mxu0 %v804
        %1001 = vmatpush.bf16.msra.mxu0 %v788
        %1002 = vmatpush.bf16.msra.mxu0 %v772
        %1003 = vmatpush.bf16.msra.mxu0 %v756
        %1004 = vmatmul.bf16.gmra.mxu0 %v981
        %v1005 = vpop.f32.mrf.mxu0
        %v1006 = vadd.f32 %v388, %v1005
        %v1007 = vpop.f32.mrf.mxu0
        %1008 = vdwg.mxu0
        %1009 = vmatpush.bf16.msra.mxu0 0
        %1010 = vmatpush.bf16.msra.mxu0 %v853
        %1011 = vmatpush.bf16.msra.mxu0 %v837
        %1012 = vmatpush.bf16.msra.mxu0 %v821
        %1013 = vmatpush.bf16.msra.mxu0 %v805
        %1014 = vmatpush.bf16.msra.mxu0 %v789
        %1015 = vmatpush.bf16.msra.mxu0 %v773
        %1016 = vmatpush.bf16.msra.mxu0 %v757
        %1017 = vmatmul.bf16.gmra.mxu0 %v981
        %v1018 = vpop.f32.mrf.mxu0
        %v1019 = vadd.f32 %v389, %v1018
        %v1020 = vpop.f32.mrf.mxu0
        %1021 = vdwg.mxu0
        %1022 = vmatpush.bf16.msra.mxu0 0
        %1023 = vmatpush.bf16.msra.mxu0 %v854
        %1024 = vmatpush.bf16.msra.mxu0 %v838
        %1025 = vmatpush.bf16.msra.mxu0 %v822
        %1026 = vmatpush.bf16.msra.mxu0 %v806
        %1027 = vmatpush.bf16.msra.mxu0 %v790
        %1028 = vmatpush.bf16.msra.mxu0 %v774
        %1029 = vmatpush.bf16.msra.mxu0 %v758
        %1030 = vmatmul.bf16.gmra.mxu0 %v981
        %v1031 = vpop.f32.mrf.mxu0
        %v1032 = vadd.f32 %v390, %v1031
        %v1033 = vpop.f32.mrf.mxu0
        %1034 = vdwg.mxu0
        %1035 = vmatpush.bf16.msra.mxu0 0
        %1036 = vmatpush.bf16.msra.mxu0 %v855
        %1037 = vmatpush.bf16.msra.mxu0 %v839
        %1038 = vmatpush.bf16.msra.mxu0 %v823
        %1039 = vmatpush.bf16.msra.mxu0 %v807
        %1040 = vmatpush.bf16.msra.mxu0 %v791
        %1041 = vmatpush.bf16.msra.mxu0 %v775
        %1042 = vmatpush.bf16.msra.mxu0 %v759
        %1043 = vmatmul.bf16.gmra.mxu0 %v981
        %v1044 = vpop.f32.mrf.mxu0
        %v1045 = vadd.f32 %v391, %v1044
        %v1046 = vpop.f32.mrf.mxu0
        %1047 = vdwg.mxu0
        %1048 = vmatpush.bf16.msra.mxu0 0
        %1049 = vmatpush.bf16.msra.mxu0 %v856
        %1050 = vmatpush.bf16.msra.mxu0 %v840
        %1051 = vmatpush.bf16.msra.mxu0 %v824
        %1052 = vmatpush.bf16.msra.mxu0 %v808
        %1053 = vmatpush.bf16.msra.mxu0 %v792
        %1054 = vmatpush.bf16.msra.mxu0 %v776
        %1055 = vmatpush.bf16.msra.mxu0 %v760
        %1056 = vmatmul.bf16.gmra.mxu0 %v981
        %v1057 = vpop.f32.mrf.mxu0
        %v1058 = vadd.f32 %v392, %v1057
        %v1059 = vpop.f32.mrf.mxu0
        %1060 = vdwg.mxu0
        %1061 = vmatpush.bf16.msra.mxu0 0
        %1062 = vmatpush.bf16.msra.mxu0 %v857
        %1063 = vmatpush.bf16.msra.mxu0 %v841
        %1064 = vmatpush.bf16.msra.mxu0 %v825
        %1065 = vmatpush.bf16.msra.mxu0 %v809
        %1066 = vmatpush.bf16.msra.mxu0 %v793
        %1067 = vmatpush.bf16.msra.mxu0 %v777
        %1068 = vmatpush.bf16.msra.mxu0 %v761
        %1069 = vmatmul.bf16.gmra.mxu0 %v981
        %v1070 = vpop.f32.mrf.mxu0
        %v1071 = vadd.f32 %v393, %v1070
        %v1072 = vpop.f32.mrf.mxu0
        %1073 = vdwg.mxu0
        %1074 = vmatpush.bf16.msra.mxu0 0
        %1075 = vmatpush.bf16.msra.mxu0 %v858
        %1076 = vmatpush.bf16.msra.mxu0 %v842
        %1077 = vmatpush.bf16.msra.mxu0 %v826
        %1078 = vmatpush.bf16.msra.mxu0 %v810
        %1079 = vmatpush.bf16.msra.mxu0 %v794
        %1080 = vmatpush.bf16.msra.mxu0 %v778
        %1081 = vmatpush.bf16.msra.mxu0 %v762
        %1082 = vmatmul.bf16.gmra.mxu0 %v981
        %v1083 = vpop.f32.mrf.mxu0
        %v1084 = vadd.f32 %v394, %v1083
        %v1085 = vpop.f32.mrf.mxu0
        %1086 = vdwg.mxu0
        %1087 = vmatpush.bf16.msra.mxu0 0
        %1088 = vmatpush.bf16.msra.mxu0 %v859
        %1089 = vmatpush.bf16.msra.mxu0 %v843
        %1090 = vmatpush.bf16.msra.mxu0 %v827
        %1091 = vmatpush.bf16.msra.mxu0 %v811
        %1092 = vmatpush.bf16.msra.mxu0 %v795
        %1093 = vmatpush.bf16.msra.mxu0 %v779
        %1094 = vmatpush.bf16.msra.mxu0 %v763
        %1095 = vmatmul.bf16.gmra.mxu0 %v981
        %v1096 = vpop.f32.mrf.mxu0
        %v1097 = vadd.f32 %v395, %v1096
        %v1098 = vpop.f32.mrf.mxu0
        %1099 = vdwg.mxu0
        %1100 = vmatpush.bf16.msra.mxu0 0
        %1101 = vmatpush.bf16.msra.mxu0 %v860
        %1102 = vmatpush.bf16.msra.mxu0 %v844
        %1103 = vmatpush.bf16.msra.mxu0 %v828
        %1104 = vmatpush.bf16.msra.mxu0 %v812
        %1105 = vmatpush.bf16.msra.mxu0 %v796
        %1106 = vmatpush.bf16.msra.mxu0 %v780
        %1107 = vmatpush.bf16.msra.mxu0 %v764
        %1108 = vmatmul.bf16.gmra.mxu0 %v981
        %v1109 = vpop.f32.mrf.mxu0
        %v1110 = vadd.f32 %v396, %v1109
        %v1111 = vpop.f32.mrf.mxu0
        %1112 = vdwg.mxu0
        %1113 = vmatpush.bf16.msra.mxu0 0
        %1114 = vmatpush.bf16.msra.mxu0 %v861
        %1115 = vmatpush.bf16.msra.mxu0 %v845
        %1116 = vmatpush.bf16.msra.mxu0 %v829
        %1117 = vmatpush.bf16.msra.mxu0 %v813
        %1118 = vmatpush.bf16.msra.mxu0 %v797
        %1119 = vmatpush.bf16.msra.mxu0 %v781
        %1120 = vmatpush.bf16.msra.mxu0 %v765
        %1121 = vmatmul.bf16.gmra.mxu0 %v981
        %v1122 = vpop.f32.mrf.mxu0
        %v1123 = vadd.f32 %v397, %v1122
        %v1124 = vpop.f32.mrf.mxu0
        %1125 = vdwg.mxu0
        %1126 = vmatpush.bf16.msra.mxu0 0
        %1127 = vmatpush.bf16.msra.mxu0 %v862
        %1128 = vmatpush.bf16.msra.mxu0 %v846
        %1129 = vmatpush.bf16.msra.mxu0 %v830
        %1130 = vmatpush.bf16.msra.mxu0 %v814
        %1131 = vmatpush.bf16.msra.mxu0 %v798
        %1132 = vmatpush.bf16.msra.mxu0 %v782
        %1133 = vmatpush.bf16.msra.mxu0 %v766
        %1134 = vmatmul.bf16.gmra.mxu0 %v981
        %v1135 = vpop.f32.mrf.mxu0
        %v1136 = vadd.f32 %v398, %v1135
        %v1137 = vpop.f32.mrf.mxu0
        %1138 = vdwg.mxu0
        %1139 = vmatpush.bf16.msra.mxu0 0
        %1140 = vmatpush.bf16.msra.mxu0 %v863
        %1141 = vmatpush.bf16.msra.mxu0 %v847
        %1142 = vmatpush.bf16.msra.mxu0 %v831
        %1143 = vmatpush.bf16.msra.mxu0 %v815
        %1144 = vmatpush.bf16.msra.mxu0 %v799
        %1145 = vmatpush.bf16.msra.mxu0 %v783
        %1146 = vmatpush.bf16.msra.mxu0 %v767
        %1147 = vmatmul.bf16.gmra.mxu0 %v981
        %v1148 = vpop.f32.mrf.mxu0
        %v1149 = vadd.f32 %v399, %v1148
        %v1150 = vpop.f32.mrf.mxu0
        %1151 = vdwg.mxu0
        %1152 = vmatpush.bf16.msra.mxu0 0
        %1153 = vmatpush.bf16.msra.mxu0 %v864
        %1154 = vmatpush.bf16.msra.mxu0 %v848
        %1155 = vmatpush.bf16.msra.mxu0 %v832
        %1156 = vmatpush.bf16.msra.mxu0 %v816
        %1157 = vmatpush.bf16.msra.mxu0 %v800
        %1158 = vmatpush.bf16.msra.mxu0 %v784
        %1159 = vmatpush.bf16.msra.mxu0 %v768
        %1160 = vmatmul.bf16.gmra.mxu0 %v981
        %v1161 = vpop.f32.mrf.mxu0
        %v1162 = vadd.f32 %v400, %v1161
        %v1163 = vpop.f32.mrf.mxu0
        %1164 = vdwg.mxu0
        %1165 = vmatpush.bf16.msra.mxu0 0
        %1166 = vmatpush.bf16.msra.mxu0 %v865
        %1167 = vmatpush.bf16.msra.mxu0 %v849
        %1168 = vmatpush.bf16.msra.mxu0 %v833
        %1169 = vmatpush.bf16.msra.mxu0 %v817
        %1170 = vmatpush.bf16.msra.mxu0 %v801
        %1171 = vmatpush.bf16.msra.mxu0 %v785
        %1172 = vmatpush.bf16.msra.mxu0 %v769
        %1173 = vmatmul.bf16.gmra.mxu0 %v981
        %v1174 = vpop.f32.mrf.mxu0
        %v1175 = vadd.f32 %v401, %v1174
        %v1176 = vpop.f32.mrf.mxu0
        %1177 = vdwg.mxu0
        %1178 = vmatpush.bf16.msra.mxu0 0
        %1179 = vmatpush.bf16.msra.mxu0 %v866
        %1180 = vmatpush.bf16.msra.mxu0 %v850
        %1181 = vmatpush.bf16.msra.mxu0 %v834
        %1182 = vmatpush.bf16.msra.mxu0 %v818
        %1183 = vmatpush.bf16.msra.mxu0 %v802
        %1184 = vmatpush.bf16.msra.mxu0 %v786
        %1185 = vmatpush.bf16.msra.mxu0 %v770
        %1186 = vmatmul.bf16.gmra.mxu0 %v981
        %v1187 = vpop.f32.mrf.mxu0
        %v1188 = vadd.f32 %v402, %v1187
        %v1189 = vpop.f32.mrf.mxu0
        %1190 = vdwg.mxu0
        %v1191 = vmax.f32 %v993, 0.0
        %v1192 = vmax.f32 %v1006, 0.0
        %v1193 = vmax.f32 %v1019, 0.0
        %v1194 = vmax.f32 %v1032, 0.0
        %v1195 = vmax.f32 %v1045, 0.0
        %v1196 = vmax.f32 %v1058, 0.0
        %v1197 = vmax.f32 %v1071, 0.0
        %v1198 = vmax.f32 %v1084, 0.0
        %v1199 = vmax.f32 %v1097, 0.0
        %v1200 = vmax.f32 %v1110, 0.0
        %v1201 = vmax.f32 %v1123, 0.0
        %v1202 = vmax.f32 %v1136, 0.0
        %v1203 = vmax.f32 %v1149, 0.0
        %v1204 = vmax.f32 %v1162, 0.0
        %v1205 = vmax.f32 %v1175, 0.0
        %v1206 = vmax.f32 %v1188, 0.0
        %v1207 = vpack.c.bf16 %v1192, %v1191
        %v1208 = vpack.c.bf16 %v1194, %v1193
        %v1209 = vpack.c.bf16 %v1196, %v1195
        %v1210 = vpack.c.bf16 %v1198, %v1197
        %v1211 = vpack.c.bf16 %v1200, %v1199
        %v1212 = vpack.c.bf16 %v1202, %v1201
        %v1213 = vpack.c.bf16 %v1204, %v1203
        %v1214 = vpack.c.bf16 %v1206, %v1205
        %v1223 = vrot.slane %v1207, 3
        %v1224 = vrot.slane %v1208, 6
        %v1225 = vrot.slane %v1208, 1
        %v1226 = vrot.slane %v1209, 4
        %v1227 = vrot.slane %v1209, 7
        %v1228 = vrot.slane %v1210, 2
        %v1229 = vrot.slane %v1210, 5
        %v1230 = vrot.slane %v1211, 3
        %v1231 = vrot.slane %v1212, 6
        %v1232 = vrot.slane %v1212, 1
        %v1233 = vrot.slane %v1213, 4
        %v1234 = vrot.slane %v1213, 7
        %v1235 = vrot.slane %v1214, 2
        %v1236 = vrot.slane %v1214, 5
        %vm1237 = vcmask 1040384
        %v1240 = vsel %vm1237, %v1207, %v1223
        %vm1241 = vcmask 1042434
        %v1244 = vsel %vm1241, %v1224, %v1225
        %vm1245 = vcmask 1041408
        %v1246 = vsel %vm1245, %v1240, %v1244
        %vm1247 = vcmask 1044484
        %v1250 = vsel %vm1247, %v1226, %v1227
        %vm1251 = vcmask 1046534
        %v1254 = vsel %vm1251, %v1228, %v1229
        %vm1255 = vcmask 1045508
        %v1256 = vsel %vm1255, %v1250, %v1254
        %vm1257 = vcmask 1043456
        %v1258 = vsel %vm1257, %v1246, %v1256
        %v1261 = vsel %vm1237, %v1211, %v1230
        %v1264 = vsel %vm1241, %v1231, %v1232
        %v1265 = vsel %vm1245, %v1261, %v1264
        %v1268 = vsel %vm1247, %v1233, %v1234
        %v1271 = vsel %vm1251, %v1235, %v1236
        %v1272 = vsel %vm1255, %v1268, %v1271
        %v1273 = vsel %vm1257, %v1265, %v1272
        %1276 = vst [vmem:[%s267] sm:$0xff] %v1258
        %1277 = vst [vmem:[%s267 + $0x8] sm:$0xff] %v1273
        %s1278 = smul.u32 16, %s25
        %p1279 = scmp.lt.s32.totalorder %s24, 0
        %s1280 = scalar_select %p1279, %s24, 0
        %p1281 = scmp.lt.s32.totalorder %s1278, 143
        %s1282 = scalar_select %p1281, %s1278, 143
        %s1283 = smul.addr %s1280, 144
        %s1284 = sadd.s32 %s1282, %s1283
        %s1285 = scalar_lea.vmem %s3, %s1284
        // Predicated region
        $region41: #{generator1_forward.5} parent=31 // pred_check
          %p1286 = pneg %p130
        $region42: #{generator1_forward.5} parent=31 // pred_check_branch
          %1288 = sbr.rel (%p1286) target = $region44
        $region43: #{generator1_forward.5} parent=31 // pred_region
          %s1289 = smul.u32 16, %s25
        $region44: #{generator1_forward.5} parent=31 // pred_fallthru
          _
      $region32: #{generator1_forward.5} parent=5 // pred_fallthru
        _
      %p1290 = scmp.le.s32.totalorder 2, %s15
      // Predicated region
      $region45: #{generator1_forward.5} parent=5 // pred_check
        %p1291 = pneg %p1290
      $region46: #{generator1_forward.5} parent=5 // pred_check_branch
        %1293 = sbr.rel (%p1291) target = $region48
      $region47: #{generator1_forward.5} parent=5 // pred_region
        %s1294 = ssub.s32 %s15, 2
        // Predicated region
        $region49: #{generator1_forward.5} parent=47 // pred_check
          %p1295 = pneg %p136
        $region50: #{generator1_forward.5} parent=47 // pred_check_branch
          %1297 = sbr.rel (%p1295) target = $region52
        $region51: #{generator1_forward.5} parent=47 // pred_region
          %s1298 = smul.u32 16, %s27
          %p1299 = scmp.lt.s32.totalorder %s26, 0
          %s1300 = scalar_select %p1299, %s26, 0
          %p1301 = scmp.lt.s32.totalorder %s1298, 143
          %s1302 = scalar_select %p1301, %s1298, 143
          %s1303 = smul.addr %s1300, 144
          %s1304 = sadd.s32 %s1302, %s1303
          %s1305 = scalar_lea.vmem %s3, %s1304
        $region52: #{generator1_forward.5} parent=47 // pred_fallthru
          _
      $region48: #{generator1_forward.5} parent=5 // pred_fallthru
        _
    $region6: #{generator1_forward.5} parent=1 // loop_footer
      %s19 = sadd.s32 1, %s15
    $region7: #{generator1_forward.5} parent=1 // loop_footer_branch
      %14 = sbr.rel target = $region3
    $region8: #{generator1_forward.5} parent=1 // loop_exit
      _
    %1306 = vsyncpa [#allocation3], 1
    %s1307 = scalar_lea.sflag [#allocation3], 1
    %1308 = vsyncpa %s1307, 1
    %1309 = vsyncpa [#allocation5], 1
    %s1310 = scalar_lea.sflag [#allocation5], 1
    %1311 = vsyncpa %s1310, 1

// kernel: generator1_forward.7
$region0: #{generator1_forward.7}
  #allocation0 [shape = 'u32[]', space=smem, size = 0x4, offset = 0x4, fixed_abs, tag = 'smem constant byte address 0x4 - core index']
  #allocation1 [shape = 'u32[72,128]{1,0:T(1,128)}', space=vmem, size = 0x9000, scoped, tag = 'internal scratch']
  %s0 = inlined_call_operand.vmem [shape: bf16[128,576], index: 0, kind: input, shape index: {}]
  %s1 = inlined_call_operand.vmem [shape: bf16[576,128], index: 1, kind: input, shape index: {}]
  %s2 = inlined_call_operand.vmem [shape: f32[1,128], index: 2, kind: input, shape index: {}]
  %s3 = inlined_call_operand.vmem [shape: bf16[128,128], index: 3, kind: output, shape index: {}]
  %s4 = sld [smem:[#allocation0]]
  $region45: #{generator1_forward.7} parent=0
    _
  %s6 = ssub.s32 1, %s4
  %s7 = scalar_select 0, %s6, %s4
  loop: start=0, step=1, limit=4
  $region2: #{generator1_forward.7} parent=0 // loop_pre_header
    _
  $region3: #{generator1_forward.7} parent=0 // loop_header
    %s9 = sphi 0, %s13
    %p10 = scmp.ge.s32.totalorder %s9, 4
    %s16 = sphi 0, %s28
    %s17 = sphi 0, %s24
    %s18 = sphi 0, %s16
    %s19 = sphi 0, %s17
    %s20 = sphi 0, %s18
    %s21 = sphi 0, %s19
    %s31 = sphi 0, %s33
    %s34 = sphi 0, %s31
    %s35 = sphi 0, %s34
    %s51 = sphi 0, %s35
    %s57 = sphi 0, %s59
    %s60 = sphi 0, %s57
    %s61 = sphi 0, %s60
    %s77 = sphi 0, %s61
    %s83 = sphi 0, %s85
    %s86 = sphi 0, %s83
    %s87 = sphi 0, %s86
    %s103 = sphi 0, %s87
    %s111 = sphi 0, %s113
    %s114 = sphi 0, %s111
    %s115 = sphi 0, %s114
    %s131 = sphi 0, %s115
  $region4: #{generator1_forward.7} parent=0 // loop_header_branch
    %12 = sbr.rel (%p10) target = $region8
  $region5: #{generator1_forward.7} parent=0 // loop_body
    %s14 = ssub.s32 %s9, 1
    %s15 = ssub.s32 %s9, 2
    %s22 = sadd.s32 1, %s17
    %p23 = scmp.ge.s32.totalorder %s22, 1
    %s24 = scalar_select %p23, 0, %s22
    %s25 = sadd.s32 1, %s16
    %s26 = scalar_select %p23, %s25, %s16
    %p27 = scmp.ge.s32.totalorder %s26, 2
    %s28 = scalar_select %p27, 0, %s26
    %s29 = ssub.s32 %s16, %s28
    %p30 = scmp.eq.s32.totalorder %s29, 0
    %s32 = sadd.s32 %s31, 1
    %s33 = scalar_select %p30, %s31, %s32
    %p36 = pneg %p30
    %p37 = scmp.eq.s32.totalorder %s9, 1
    %p38 = por %p36, %p37
    %p39 = scmp.ne.s32.totalorder %s31, %s34
    %p40 = scmp.eq.s32.totalorder %s9, 0
    %p41 = por %p39, %p40
    %p42 = scmp.ne.s32.totalorder %s31, %s34
    %p43 = scmp.eq.s32.totalorder %s14, 1
    %p44 = por %p42, %p43
    %p45 = scmp.ne.s32.totalorder %s34, %s35
    %p46 = scmp.eq.s32.totalorder %s14, 0
    %p47 = por %p45, %p46
    %p48 = scmp.ne.s32.totalorder %s34, %s35
    %p49 = scmp.eq.s32.totalorder %s15, 1
    %p50 = por %p48, %p49
    %p52 = scmp.ne.s32.totalorder %s35, %s51
    %p53 = scmp.eq.s32.totalorder %s15, 0
    %p54 = por %p52, %p53
    %s55 = ssub.s32 %s17, %s24
    %p56 = scmp.eq.s32.totalorder %s55, 0
    %s58 = sadd.s32 %s57, 1
    %s59 = scalar_select %p56, %s57, %s58
    %p62 = pneg %p56
    %p63 = scmp.eq.s32.totalorder %s9, 1
    %p64 = por %p62, %p63
    %p65 = scmp.ne.s32.totalorder %s57, %s60
    %p66 = scmp.eq.s32.totalorder %s9, 0
    %p67 = por %p65, %p66
    %p68 = scmp.ne.s32.totalorder %s57, %s60
    %p69 = scmp.eq.s32.totalorder %s14, 1
    %p70 = por %p68, %p69
    %p71 = scmp.ne.s32.totalorder %s60, %s61
    %p72 = scmp.eq.s32.totalorder %s14, 0
    %p73 = por %p71, %p72
    %p74 = scmp.ne.s32.totalorder %s60, %s61
    %p75 = scmp.eq.s32.totalorder %s15, 1
    %p76 = por %p74, %p75
    %p78 = scmp.ne.s32.totalorder %s61, %s77
    %p79 = scmp.eq.s32.totalorder %s15, 0
    %p80 = por %p78, %p79
    %s81 = ssub.s32 %s17, %s24
    %p82 = scmp.eq.s32.totalorder %s81, 0
    %s84 = sadd.s32 %s83, 1
    %s85 = scalar_select %p82, %s83, %s84
    %p88 = pneg %p82
    %p89 = scmp.eq.s32.totalorder %s9, 1
    %p90 = por %p88, %p89
    %p91 = scmp.ne.s32.totalorder %s83, %s86
    %p92 = scmp.eq.s32.totalorder %s9, 0
    %p93 = por %p91, %p92
    %p94 = scmp.ne.s32.totalorder %s83, %s86
    %p95 = scmp.eq.s32.totalorder %s14, 1
    %p96 = por %p94, %p95
    %p97 = scmp.ne.s32.totalorder %s86, %s87
    %p98 = scmp.eq.s32.totalorder %s14, 0
    %p99 = por %p97, %p98
    %p100 = scmp.ne.s32.totalorder %s86, %s87
    %p101 = scmp.eq.s32.totalorder %s15, 1
    %p102 = por %p100, %p101
    %p104 = scmp.ne.s32.totalorder %s87, %s103
    %p105 = scmp.eq.s32.totalorder %s15, 0
    %p106 = por %p104, %p105
    %s107 = ssub.s32 %s16, %s28
    %s108 = ssub.s32 %s17, %s24
    %s109 = sor.u32 %s107, %s108
    %p110 = scmp.eq.s32.totalorder %s109, 0
    %s112 = sadd.s32 %s111, 1
    %s113 = scalar_select %p110, %s111, %s112
    %p116 = pneg %p110
    %p117 = scmp.eq.s32.totalorder %s9, 1
    %p118 = por %p116, %p117
    %p119 = scmp.ne.s32.totalorder %s111, %s114
    %p120 = scmp.eq.s32.totalorder %s9, 0
    %p121 = por %p119, %p120
    %p122 = scmp.ne.s32.totalorder %s111, %s114
    %p123 = scmp.eq.s32.totalorder %s14, 1
    %p124 = por %p122, %p123
    %p125 = scmp.ne.s32.totalorder %s114, %s115
    %p126 = scmp.eq.s32.totalorder %s14, 0
    %p127 = por %p125, %p126
    %p128 = scmp.ne.s32.totalorder %s114, %s115
    %p129 = scmp.eq.s32.totalorder %s15, 1
    %p130 = por %p128, %p129
    %p132 = scmp.ne.s32.totalorder %s115, %s131
    %p133 = scmp.eq.s32.totalorder %s15, 0
    %p134 = por %p132, %p133
    %p135 = scmp.le.s32.totalorder 1, %s9
    %p136 = scmp.lt.s32.totalorder %s9, 3
    %p137 = pnand %p135, %p136
    %p138 = pneg %p137
    // Predicated region
    $region9: #{generator1_forward.7} parent=5 // pred_check
      _
    $region10: #{generator1_forward.7} parent=5 // pred_check_branch
      %140 = sbr.rel (%p137) target = $region12
    $region11: #{generator1_forward.7} parent=5 // pred_region
      %s141 = ssub.s32 %s9, 1
      // Predicated region
      $region13: #{generator1_forward.7} parent=11 // pred_check
        %p142 = pneg %p73
      $region14: #{generator1_forward.7} parent=11 // pred_check_branch
        %144 = sbr.rel (%p142) target = $region16
      $region15: #{generator1_forward.7} parent=11 // pred_region
        %p145 = scmp.lt.s32.totalorder %s19, 0
        %s146 = scalar_select %p145, %s19, 0
        %s147 = smul.addr %s146, 4
        %s148 = scalar_lea.vmem %s1, %s147
      $region16: #{generator1_forward.7} parent=11 // pred_fallthru
        _
      // Predicated region
      $region17: #{generator1_forward.7} parent=11 // pred_check
        %p149 = pneg %p99
      $region18: #{generator1_forward.7} parent=11 // pred_check_branch
        %151 = sbr.rel (%p149) target = $region20
      $region19: #{generator1_forward.7} parent=11 // pred_region
        %p152 = scmp.lt.s32.totalorder %s19, 0
        %s153 = scalar_select %p152, %s19, 0
        %s154 = scalar_lea.vmem %s2, %s153
      $region20: #{generator1_forward.7} parent=11 // pred_fallthru
        _
    $region12: #{generator1_forward.7} parent=5 // pred_fallthru
      _
    %p155 = scmp.lt.s32.totalorder %s9, 2
    // Predicated region
    $region21: #{generator1_forward.7} parent=5 // pred_check
      %p156 = pneg %p155
    $region22: #{generator1_forward.7} parent=5 // pred_check_branch
      %158 = sbr.rel (%p156) target = $region24
    $region23: #{generator1_forward.7} parent=5 // pred_region
      // Predicated region
      $region25: #{generator1_forward.7} parent=23 // pred_check
        %p159 = pneg %p41
      $region26: #{generator1_forward.7} parent=23 // pred_check_branch
        %161 = sbr.rel (%p159) target = $region28
      $region27: #{generator1_forward.7} parent=23 // pred_region
        %s162 = smul.u32 8, %s16
        %p163 = scmp.lt.s32.totalorder %s162, 15
        %s164 = scalar_select %p163, %s162, 15
        %s165 = smul.addr %s164, 5
        %s166 = smul.addr %s165, 4
        %s167 = scalar_lea.vmem %s0, %s166
        %s168 = smul.u32 8, %s16
      $region28: #{generator1_forward.7} parent=23 // pred_fallthru
        _
    $region24: #{generator1_forward.7} parent=5 // pred_fallthru
      _
    %p169 = scmp.le.s32.totalorder 1, %s9
    %p170 = scmp.lt.s32.totalorder %s9, 3
    %p171 = pnand %p169, %p170
    %p172 = pneg %p171
    // Predicated region
    $region29: #{generator1_forward.7} parent=5 // pred_check
      _
    $region30: #{generator1_forward.7} parent=5 // pred_check_branch
      %174 = sbr.rel (%p171) target = $region32
    $region31: #{generator1_forward.7} parent=5 // pred_region
      %s175 = ssub.s32 %s9, 1
      %s176 = smul.u32 8, %s18
      %p177 = scmp.lt.s32.totalorder %s176, 15
      %s178 = scalar_select %p177, %s176, 15
      %s179 = smul.addr %s178, 5
      %s180 = smul.addr %s179, 4
      %s181 = scalar_lea.vmem %s0, %s180
      %p182 = pneg %p47
      %p183 = pneg %p44
      %p184 = scmp.lt.s32.totalorder %s19, 0
      %s185 = scalar_select %p184, %s19, 0
      %s186 = smul.addr %s185, 4
      %s187 = scalar_lea.vmem %s1, %s186
      %p188 = pneg %p73
      %p189 = pneg %p70
      %p190 = scmp.lt.s32.totalorder %s19, 0
      %s191 = scalar_select %p190, %s19, 0
      %s192 = scalar_lea.vmem %s2, %s191
      %p193 = pneg %p99
      %p194 = pneg %p96
      %p195 = pneg %p127
      %p196 = pneg %p124
      %s197 = smul.u32 8, %s18
      %p198 = scmp.lt.s32.totalorder %s197, 15
      %s199 = scalar_select %p198, %s197, 15
      %p200 = scmp.lt.s32.totalorder %s19, 0
      %s201 = scalar_select %p200, %s19, 0
      %s202 = sadd.s32 %s201, %s199
      %s203 = smul.addr %s202, 4
      %s204 = scalar_lea.vmem %s3, %s203
      %s205 = smul.u32 8, %s18
      %p206 = scmp.lt.s32.totalorder %s205, 15
      %s207 = scalar_select %p206, %s205, 15
      %s208 = smul.addr %s207, 5
      %s209 = smul.addr %s208, 4
      %s210 = scalar_lea.vmem %s0, %s209
      %s211 = smul.u32 8, %s18
      %p212 = scmp.lt.s32.totalorder %s19, 0
      %s213 = scalar_select %p212, %s19, 0
      %s214 = smul.addr %s213, 4
      %s215 = scalar_lea.vmem %s1, %s214
      %p216 = scmp.lt.s32.totalorder %s19, 0
      %s217 = scalar_select %p216, %s19, 0
      %s218 = scalar_lea.vmem %s2, %s217
      %s219 = smul.u32 8, %s18
      %p220 = scmp.lt.s32.totalorder %s219, 15
      %s221 = scalar_select %p220, %s219, 15
      %p222 = scmp.lt.s32.totalorder %s19, 0
      %s223 = scalar_select %p222, %s19, 0
      %s224 = sadd.s32 %s223, %s221
      %s225 = smul.addr %s224, 4
      %s226 = scalar_lea.vmem %s3, %s225
      %s227 = smul.u32 8, %s18
      %v229 = vld [vmem:[%s210] sm:$0xff]
      %v230 = vld [vmem:[%s210 + $0x8] sm:$0xff]
      %v231 = vld [vmem:[%s210 + $0x10] sm:$0xf]
      %v232 = vld [vmem:[%s210 + $0x14] sm:$0xff]
      %v233 = vld [vmem:[%s210 + $0x1c] sm:$0xff]
      %v234 = vld [vmem:[%s210 + $0x24] sm:$0xf]
      %v235 = vld [vmem:[%s210 + $0x28] sm:$0xff]
      %v236 = vld [vmem:[%s210 + $0x30] sm:$0xff]
      %v237 = vld [vmem:[%s210 + $0x38] sm:$0xf]
      %v238 = vld [vmem:[%s210 + $0x3c] sm:$0xff]
      %v239 = vld [vmem:[%s210 + $0x44] sm:$0xff]
      %v240 = vld [vmem:[%s210 + $0x4c] sm:$0xf]
      %v241 = vld [vmem:[%s210 + $0x50] sm:$0xff]
      %v242 = vld [vmem:[%s210 + $0x58] sm:$0xff]
      %v243 = vld [vmem:[%s210 + $0x60] sm:$0xf]
      %v244 = vld [vmem:[%s210 + $0x64] sm:$0xff]
      %v245 = vld [vmem:[%s210 + $0x6c] sm:$0xff]
      %v246 = vld [vmem:[%s210 + $0x74] sm:$0xf]
      %v247 = vld [vmem:[%s210 + $0x78] sm:$0xff]
      %v248 = vld [vmem:[%s210 + $0x80] sm:$0xff]
      %v249 = vld [vmem:[%s210 + $0x88] sm:$0xf]
      %v250 = vld [vmem:[%s210 + $0x8c] sm:$0xff]
      %v251 = vld [vmem:[%s210 + $0x94] sm:$0xff]
      %v252 = vld [vmem:[%s210 + $0x9c] sm:$0xf]
      %v253 = vld [vmem:[%s215] sm:$0xf]
      %v254 = vld [vmem:[%s215 + $0x4] sm:$0xf]
      %v255 = vld [vmem:[%s215 + $0x8] sm:$0xf]
      %v256 = vld [vmem:[%s215 + $0xc] sm:$0xf]
      %v257 = vld [vmem:[%s215 + $0x10] sm:$0xf]
      %v258 = vld [vmem:[%s215 + $0x14] sm:$0xf]
      %v259 = vld [vmem:[%s215 + $0x18] sm:$0xf]
      %v260 = vld [vmem:[%s215 + $0x1c] sm:$0xf]
      %v261 = vld [vmem:[%s215 + $0x20] sm:$0xf]
      %v262 = vld [vmem:[%s215 + $0x24] sm:$0xf]
      %v263 = vld [vmem:[%s215 + $0x28] sm:$0xf]
      %v264 = vld [vmem:[%s215 + $0x2c] sm:$0xf]
      %v265 = vld [vmem:[%s215 + $0x30] sm:$0xf]
      %v266 = vld [vmem:[%s215 + $0x34] sm:$0xf]
      %v267 = vld [vmem:[%s215 + $0x38] sm:$0xf]
      %v268 = vld [vmem:[%s215 + $0x3c] sm:$0xf]
      %v269 = vld [vmem:[%s215 + $0x40] sm:$0xf]
      %v270 = vld [vmem:[%s215 + $0x44] sm:$0xf]
      %v271 = vld [vmem:[%s215 + $0x48] sm:$0xf]
      %v272 = vld [vmem:[%s215 + $0x4c] sm:$0xf]
      %v273 = vld [vmem:[%s215 + $0x50] sm:$0xf]
      %v274 = vld [vmem:[%s215 + $0x54] sm:$0xf]
      %v275 = vld [vmem:[%s215 + $0x58] sm:$0xf]
      %v276 = vld [vmem:[%s215 + $0x5c] sm:$0xf]
      %v277 = vld [vmem:[%s215 + $0x60] sm:$0xf]
      %v278 = vld [vmem:[%s215 + $0x64] sm:$0xf]
      %v279 = vld [vmem:[%s215 + $0x68] sm:$0xf]
      %v280 = vld [vmem:[%s215 + $0x6c] sm:$0xf]
      %v281 = vld [vmem:[%s215 + $0x70] sm:$0xf]
      %v282 = vld [vmem:[%s215 + $0x74] sm:$0xf]
      %v283 = vld [vmem:[%s215 + $0x78] sm:$0xf]
      %v284 = vld [vmem:[%s215 + $0x7c] sm:$0xf]
      %v285 = vld [vmem:[%s215 + $0x80] sm:$0xf]
      %v286 = vld [vmem:[%s215 + $0x84] sm:$0xf]
      %v287 = vld [vmem:[%s215 + $0x88] sm:$0xf]
      %v288 = vld [vmem:[%s215 + $0x8c] sm:$0xf]
      %v289 = vld [vmem:[%s215 + $0x90] sm:$0xf]
      %v290 = vld [vmem:[%s215 + $0x94] sm:$0xf]
      %v291 = vld [vmem:[%s215 + $0x98] sm:$0xf]
      %v292 = vld [vmem:[%s215 + $0x9c] sm:$0xf]
      %v293 = vld [vmem:[%s215 + $0xa0] sm:$0xf]
      %v294 = vld [vmem:[%s215 + $0xa4] sm:$0xf]
      %v295 = vld [vmem:[%s215 + $0xa8] sm:$0xf]
      %v296 = vld [vmem:[%s215 + $0xac] sm:$0xf]
      %v297 = vld [vmem:[%s215 + $0xb0] sm:$0xf]
      %v298 = vld [vmem:[%s215 + $0xb4] sm:$0xf]
      %v299 = vld [vmem:[%s215 + $0xb8] sm:$0xf]
      %v300 = vld [vmem:[%s215 + $0xbc] sm:$0xf]
      %v301 = vld [vmem:[%s215 + $0xc0] sm:$0xf]
      %v302 = vld [vmem:[%s215 + $0xc4] sm:$0xf]
      %v303 = vld [vmem:[%s215 + $0xc8] sm:$0xf]
      %v304 = vld [vmem:[%s215 + $0xcc] sm:$0xf]
      %v305 = vld [vmem:[%s215 + $0xd0] sm:$0xf]
      %v306 = vld [vmem:[%s215 + $0xd4] sm:$0xf]
      %v307 = vld [vmem:[%s215 + $0xd8] sm:$0xf]
      %v308 = vld [vmem:[%s215 + $0xdc] sm:$0xf]
      %v309 = vld [vmem:[%s215 + $0xe0] sm:$0xf]
      %v310 = vld [vmem:[%s215 + $0xe4] sm:$0xf]
      %v311 = vld [vmem:[%s215 + $0xe8] sm:$0xf]
      %v312 = vld [vmem:[%s215 + $0xec] sm:$0xf]
      %v313 = vld [vmem:[%s215 + $0xf0] sm:$0xf]
      %v314 = vld [vmem:[%s215 + $0xf4] sm:$0xf]
      %v315 = vld [vmem:[%s215 + $0xf8] sm:$0xf]
      %v316 = vld [vmem:[%s215 + $0xfc] sm:$0xf]
      %v317 = vld [vmem:[%s215 + $0x100] sm:$0xf]
      %v318 = vld [vmem:[%s215 + $0x104] sm:$0xf]
      %v319 = vld [vmem:[%s215 + $0x108] sm:$0xf]
      %v320 = vld [vmem:[%s215 + $0x10c] sm:$0xf]
      %v321 = vld [vmem:[%s215 + $0x110] sm:$0xf]
      %v322 = vld [vmem:[%s215 + $0x114] sm:$0xf]
      %v323 = vld [vmem:[%s215 + $0x118] sm:$0xf]
      %v324 = vld [vmem:[%s215 + $0x11c] sm:$0xf]
      %v325 = vld [vmem:[%s218] sm:$0x1]
      %v327 = vperm.slane %v325, 0
      %v353 = vunpack.c.l.b16 %v229
      %v354 = vunpack.c.h.b16 %v229
      %v355 = vunpack.c.l.b16 %v230
      %v356 = vunpack.c.h.b16 %v230
      %v357 = vunpack.c.l.b16 %v231
      %v358 = vunpack.c.l.b16 %v232
      %v359 = vunpack.c.h.b16 %v232
      %v360 = vunpack.c.l.b16 %v233
      %v361 = vunpack.c.h.b16 %v233
      %v362 = vunpack.c.l.b16 %v234
      %v363 = vunpack.c.l.b16 %v235
      %v364 = vunpack.c.h.b16 %v235
      %v365 = vunpack.c.l.b16 %v236
      %v366 = vunpack.c.h.b16 %v236
      %v367 = vunpack.c.l.b16 %v237
      %v368 = vunpack.c.l.b16 %v238
      %v369 = vunpack.c.h.b16 %v238
      %v370 = vunpack.c.l.b16 %v239
      %v371 = vunpack.c.h.b16 %v239
      %v372 = vunpack.c.l.b16 %v240
      %v373 = vunpack.c.l.b16 %v241
      %v374 = vunpack.c.h.b16 %v241
      %v375 = vunpack.c.l.b16 %v242
      %v376 = vunpack.c.h.b16 %v242
      %v377 = vunpack.c.l.b16 %v243
      %v378 = vunpack.c.l.b16 %v244
      %v379 = vunpack.c.h.b16 %v244
      %v380 = vunpack.c.l.b16 %v245
      %v381 = vunpack.c.h.b16 %v245
      %v382 = vunpack.c.l.b16 %v246
      %v383 = vunpack.c.l.b16 %v247
      %v384 = vunpack.c.h.b16 %v247
      %v385 = vunpack.c.l.b16 %v248
      %v386 = vunpack.c.h.b16 %v248
      %v387 = vunpack.c.l.b16 %v249
      %v388 = vunpack.c.l.b16 %v250
      %v389 = vunpack.c.h.b16 %v250
      %v390 = vunpack.c.l.b16 %v251
      %v391 = vunpack.c.h.b16 %v251
      %v392 = vunpack.c.l.b16 %v252
      %v393 = vpack.c.b16 %v358, %v353
      %v394 = vpack.c.b16 %v359, %v354
      %v395 = vpack.c.b16 %v360, %v355
      %v396 = vpack.c.b16 %v361, %v356
      %v397 = vpack.c.b16 %v362, %v357
      %v398 = vpack.c.b16 %v368, %v363
      %v399 = vpack.c.b16 %v369, %v364
      %v400 = vpack.c.b16 %v370, %v365
      %v401 = vpack.c.b16 %v371, %v366
      %v402 = vpack.c.b16 %v372, %v367
      %v403 = vpack.c.b16 %v378, %v373
      %v404 = vpack.c.b16 %v379, %v374
      %v405 = vpack.c.b16 %v380, %v375
      %v406 = vpack.c.b16 %v381, %v376
      %v407 = vpack.c.b16 %v382, %v377
      %v408 = vpack.c.b16 %v388, %v383
      %v409 = vpack.c.b16 %v389, %v384
      %v410 = vpack.c.b16 %v390, %v385
      %v411 = vpack.c.b16 %v391, %v386
      %v412 = vpack.c.b16 %v392, %v387
      %v501 = vunpack.c.l.b16 %v253
      %v502 = vunpack.c.l.b16 %v254
      %v503 = vunpack.c.l.b16 %v255
      %v504 = vunpack.c.l.b16 %v256
      %v505 = vunpack.c.l.b16 %v257
      %v506 = vunpack.c.l.b16 %v258
      %v507 = vunpack.c.l.b16 %v259
      %v508 = vunpack.c.l.b16 %v260
      %v509 = vunpack.c.l.b16 %v261
      %v510 = vunpack.c.l.b16 %v262
      %v511 = vunpack.c.l.b16 %v263
      %v512 = vunpack.c.l.b16 %v264
      %v513 = vunpack.c.l.b16 %v265
      %v514 = vunpack.c.l.b16 %v266
      %v515 = vunpack.c.l.b16 %v267
      %v516 = vunpack.c.l.b16 %v268
      %v517 = vunpack.c.l.b16 %v269
      %v518 = vunpack.c.l.b16 %v270
      %v519 = vunpack.c.l.b16 %v271
      %v520 = vunpack.c.l.b16 %v272
      %v521 = vunpack.c.l.b16 %v273
      %v522 = vunpack.c.l.b16 %v274
      %v523 = vunpack.c.l.b16 %v275
      %v524 = vunpack.c.l.b16 %v276
      %v525 = vunpack.c.l.b16 %v277
      %v526 = vunpack.c.l.b16 %v278
      %v527 = vunpack.c.l.b16 %v279
      %v528 = vunpack.c.l.b16 %v280
      %v529 = vunpack.c.l.b16 %v281
      %v530 = vunpack.c.l.b16 %v282
      %v531 = vunpack.c.l.b16 %v283
      %v532 = vunpack.c.l.b16 %v284
      %v533 = vunpack.c.l.b16 %v285
      %v534 = vunpack.c.l.b16 %v286
      %v535 = vunpack.c.l.b16 %v287
      %v536 = vunpack.c.l.b16 %v288
      %v537 = vunpack.c.l.b16 %v289
      %v538 = vunpack.c.l.b16 %v290
      %v539 = vunpack.c.l.b16 %v291
      %v540 = vunpack.c.l.b16 %v292
      %v541 = vunpack.c.l.b16 %v293
      %v542 = vunpack.c.l.b16 %v294
      %v543 = vunpack.c.l.b16 %v295
      %v544 = vunpack.c.l.b16 %v296
      %v545 = vunpack.c.l.b16 %v297
      %v546 = vunpack.c.l.b16 %v298
      %v547 = vunpack.c.l.b16 %v299
      %v548 = vunpack.c.l.b16 %v300
      %v549 = vunpack.c.l.b16 %v301
      %v550 = vunpack.c.l.b16 %v302
      %v551 = vunpack.c.l.b16 %v303
      %v552 = vunpack.c.l.b16 %v304
      %v553 = vunpack.c.l.b16 %v305
      %v554 = vunpack.c.l.b16 %v306
      %v555 = vunpack.c.l.b16 %v307
      %v556 = vunpack.c.l.b16 %v308
      %v557 = vunpack.c.l.b16 %v309
      %v558 = vunpack.c.l.b16 %v310
      %v559 = vunpack.c.l.b16 %v311
      %v560 = vunpack.c.l.b16 %v312
      %v561 = vunpack.c.l.b16 %v313
      %v562 = vunpack.c.l.b16 %v314
      %v563 = vunpack.c.l.b16 %v315
      %v564 = vunpack.c.l.b16 %v316
      %v565 = vunpack.c.l.b16 %v317
      %v566 = vunpack.c.l.b16 %v318
      %v567 = vunpack.c.l.b16 %v319
      %v568 = vunpack.c.l.b16 %v320
      %v569 = vunpack.c.l.b16 %v321
      %v570 = vunpack.c.l.b16 %v322
      %v571 = vunpack.c.l.b16 %v323
      %v572 = vunpack.c.l.b16 %v324
      %v573 = vpack.c.b16 %v502, %v501
      %v574 = vpack.c.b16 %v504, %v503
      %v575 = vpack.c.b16 %v506, %v505
      %v576 = vpack.c.b16 %v508, %v507
      %v577 = vpack.c.b16 %v510, %v509
      %v578 = vpack.c.b16 %v512, %v511
      %v579 = vpack.c.b16 %v514, %v513
      %v580 = vpack.c.b16 %v516, %v515
      %v581 = vpack.c.b16 %v518, %v517
      %v582 = vpack.c.b16 %v520, %v519
      %v583 = vpack.c.b16 %v522, %v521
      %v584 = vpack.c.b16 %v524, %v523
      %v585 = vpack.c.b16 %v526, %v525
      %v586 = vpack.c.b16 %v528, %v527
      %v587 = vpack.c.b16 %v530, %v529
      %v588 = vpack.c.b16 %v532, %v531
      %v589 = vpack.c.b16 %v534, %v533
      %v590 = vpack.c.b16 %v536, %v535
      %v591 = vpack.c.b16 %v538, %v537
      %v592 = vpack.c.b16 %v540, %v539
      %v593 = vpack.c.b16 %v542, %v541
      %v594 = vpack.c.b16 %v544, %v543
      %v595 = vpack.c.b16 %v546, %v545
      %v596 = vpack.c.b16 %v548, %v547
      %v597 = vpack.c.b16 %v550, %v549
      %v598 = vpack.c.b16 %v552, %v551
      %v599 = vpack.c.b16 %v554, %v553
      %v600 = vpack.c.b16 %v556, %v555
      %v601 = vpack.c.b16 %v558, %v557
      %v602 = vpack.c.b16 %v560, %v559
      %v603 = vpack.c.b16 %v562, %v561
      %v604 = vpack.c.b16 %v564, %v563
      %v605 = vpack.c.b16 %v566, %v565
      %v606 = vpack.c.b16 %v568, %v567
      %v607 = vpack.c.b16 %v570, %v569
      %v608 = vpack.c.b16 %v572, %v571
      %vm645 = vcmask 523264
      %v647 = vsel %vm645, %v397, 0
      %v650 = vsel %vm645, %v402, 0
      %v653 = vsel %vm645, %v407, 0
      %v656 = vsel %vm645, %v412, 0
      %658 = vmatpush.bf16.msra.mxu0 %v580
      %659 = vmatpush.bf16.msra.mxu0 %v579
      %660 = vmatpush.bf16.msra.mxu0 %v578
      %661 = vmatpush.bf16.msra.mxu0 %v577
      %662 = vmatpush.bf16.msra.mxu0 %v576
      %663 = vmatpush.bf16.msra.mxu0 %v575
      %664 = vmatpush.bf16.msra.mxu0 %v574
      %665 = vmatpush.bf16.msra.mxu0 %v573
      %666 = vmatmul.bf16.gmra.mxu0 %v393
      %v667 = vpop.f32.mrf.mxu0
      %v668 = vadd.f32 %v327, %v667
      %v669 = vpop.f32.mrf.mxu0
      %v670 = vadd.f32 %v327, %v669
      %671 = vmatmul.bf16.gmra.mxu0 %v398
      %v672 = vpop.f32.mrf.mxu0
      %v673 = vadd.f32 %v327, %v672
      %v674 = vpop.f32.mrf.mxu0
      %v675 = vadd.f32 %v327, %v674
      %676 = vmatmul.bf16.gmra.mxu0 %v403
      %v677 = vpop.f32.mrf.mxu0
      %v678 = vadd.f32 %v327, %v677
      %v679 = vpop.f32.mrf.mxu0
      %v680 = vadd.f32 %v327, %v679
      %681 = vmatmul.bf16.gmra.mxu0 %v408
      %v682 = vpop.f32.mrf.mxu0
      %v683 = vadd.f32 %v327, %v682
      %v684 = vpop.f32.mrf.mxu0
      %v685 = vadd.f32 %v327, %v684
      %686 = vdwg.mxu0
      %687 = vmatpush.bf16.msra.mxu0 %v588
      %688 = vmatpush.bf16.msra.mxu0 %v587
      %689 = vmatpush.bf16.msra.mxu0 %v586
      %690 = vmatpush.bf16.msra.mxu0 %v585
      %691 = vmatpush.bf16.msra.mxu0 %v584
      %692 = vmatpush.bf16.msra.mxu0 %v583
      %693 = vmatpush.bf16.msra.mxu0 %v582
      %694 = vmatpush.bf16.msra.mxu0 %v581
      %695 = vmatmul.bf16.gmra.mxu0 %v394
      %v696 = vpop.f32.mrf.mxu0
      %v697 = vadd.f32 %v668, %v696
      %v698 = vpop.f32.mrf.mxu0
      %v699 = vadd.f32 %v670, %v698
      %700 = vmatmul.bf16.gmra.mxu0 %v399
      %v701 = vpop.f32.mrf.mxu0
      %v702 = vadd.f32 %v673, %v701
      %v703 = vpop.f32.mrf.mxu0
      %v704 = vadd.f32 %v675, %v703
      %705 = vmatmul.bf16.gmra.mxu0 %v404
      %v706 = vpop.f32.mrf.mxu0
      %v707 = vadd.f32 %v678, %v706
      %v708 = vpop.f32.mrf.mxu0
      %v709 = vadd.f32 %v680, %v708
      %710 = vmatmul.bf16.gmra.mxu0 %v409
      %v711 = vpop.f32.mrf.mxu0
      %v712 = vadd.f32 %v683, %v711
      %v713 = vpop.f32.mrf.mxu0
      %v714 = vadd.f32 %v685, %v713
      %715 = vdwg.mxu0
      %716 = vmatpush.bf16.msra.mxu0 %v596
      %717 = vmatpush.bf16.msra.mxu0 %v595
      %718 = vmatpush.bf16.msra.mxu0 %v594
      %719 = vmatpush.bf16.msra.mxu0 %v593
      %720 = vmatpush.bf16.msra.mxu0 %v592
      %721 = vmatpush.bf16.msra.mxu0 %v591
      %722 = vmatpush.bf16.msra.mxu0 %v590
      %723 = vmatpush.bf16.msra.mxu0 %v589
      %724 = vmatmul.bf16.gmra.mxu0 %v395
      %v725 = vpop.f32.mrf.mxu0
      %v726 = vadd.f32 %v697, %v725
      %v727 = vpop.f32.mrf.mxu0
      %v728 = vadd.f32 %v699, %v727
      %729 = vmatmul.bf16.gmra.mxu0 %v400
      %v730 = vpop.f32.mrf.mxu0
      %v731 = vadd.f32 %v702, %v730
      %v732 = vpop.f32.mrf.mxu0
      %v733 = vadd.f32 %v704, %v732
      %734 = vmatmul.bf16.gmra.mxu0 %v405
      %v735 = vpop.f32.mrf.mxu0
      %v736 = vadd.f32 %v707, %v735
      %v737 = vpop.f32.mrf.mxu0
      %v738 = vadd.f32 %v709, %v737
      %739 = vmatmul.bf16.gmra.mxu0 %v410
      %v740 = vpop.f32.mrf.mxu0
      %v741 = vadd.f32 %v712, %v740
      %v742 = vpop.f32.mrf.mxu0
      %v743 = vadd.f32 %v714, %v742
      %744 = vdwg.mxu0
      %745 = vmatpush.bf16.msra.mxu0 %v604
      %746 = vmatpush.bf16.msra.mxu0 %v603
      %747 = vmatpush.bf16.msra.mxu0 %v602
      %748 = vmatpush.bf16.msra.mxu0 %v601
      %749 = vmatpush.bf16.msra.mxu0 %v600
      %750 = vmatpush.bf16.msra.mxu0 %v599
      %751 = vmatpush.bf16.msra.mxu0 %v598
      %752 = vmatpush.bf16.msra.mxu0 %v597
      %753 = vmatmul.bf16.gmra.mxu0 %v396
      %v754 = vpop.f32.mrf.mxu0
      %v755 = vadd.f32 %v726, %v754
      %v756 = vpop.f32.mrf.mxu0
      %v757 = vadd.f32 %v728, %v756
      %758 = vmatmul.bf16.gmra.mxu0 %v401
      %v759 = vpop.f32.mrf.mxu0
      %v760 = vadd.f32 %v731, %v759
      %v761 = vpop.f32.mrf.mxu0
      %v762 = vadd.f32 %v733, %v761
      %763 = vmatmul.bf16.gmra.mxu0 %v406
      %v764 = vpop.f32.mrf.mxu0
      %v765 = vadd.f32 %v736, %v764
      %v766 = vpop.f32.mrf.mxu0
      %v767 = vadd.f32 %v738, %v766
      %768 = vmatmul.bf16.gmra.mxu0 %v411
      %v769 = vpop.f32.mrf.mxu0
      %v770 = vadd.f32 %v741, %v769
      %v771 = vpop.f32.mrf.mxu0
      %v772 = vadd.f32 %v743, %v771
      %773 = vdwg.mxu0
      %774 = vmatpush.bf16.msra.mxu0 0
      %775 = vmatpush.bf16.msra.mxu0 0
      %776 = vmatpush.bf16.msra.mxu0 0
      %777 = vmatpush.bf16.msra.mxu0 0
      %778 = vmatpush.bf16.msra.mxu0 %v608
      %779 = vmatpush.bf16.msra.mxu0 %v607
      %780 = vmatpush.bf16.msra.mxu0 %v606
      %781 = vmatpush.bf16.msra.mxu0 %v605
      %782 = vmatmul.bf16.gmra.mxu0 %v647
      %v783 = vpop.f32.mrf.mxu0
      %v784 = vadd.f32 %v755, %v783
      %v785 = vpop.f32.mrf.mxu0
      %v786 = vadd.f32 %v757, %v785
      %787 = vmatmul.bf16.gmra.mxu0 %v650
      %v788 = vpop.f32.mrf.mxu0
      %v789 = vadd.f32 %v760, %v788
      %v790 = vpop.f32.mrf.mxu0
      %v791 = vadd.f32 %v762, %v790
      %792 = vmatmul.bf16.gmra.mxu0 %v653
      %v793 = vpop.f32.mrf.mxu0
      %v794 = vadd.f32 %v765, %v793
      %v795 = vpop.f32.mrf.mxu0
      %v796 = vadd.f32 %v767, %v795
      %797 = vmatmul.bf16.gmra.mxu0 %v656
      %v798 = vpop.f32.mrf.mxu0
      %v799 = vadd.f32 %v770, %v798
      %v800 = vpop.f32.mrf.mxu0
      %v801 = vadd.f32 %v772, %v800
      %802 = vdwg.mxu0
      %v803 = vmax.f32 %v784, 0.0
      %v804 = vmax.f32 %v786, 0.0
      %v805 = vmax.f32 %v789, 0.0
      %v806 = vmax.f32 %v791, 0.0
      %v807 = vmax.f32 %v794, 0.0
      %v808 = vmax.f32 %v796, 0.0
      %v809 = vmax.f32 %v799, 0.0
      %v810 = vmax.f32 %v801, 0.0
      %v811 = vpack.c.bf16 %v803, %v803
      %v812 = vpack.c.bf16 %v804, %v804
      %v813 = vpack.c.bf16 %v805, %v805
      %v814 = vpack.c.bf16 %v806, %v806
      %v815 = vpack.c.bf16 %v807, %v807
      %v816 = vpack.c.bf16 %v808, %v808
      %v817 = vpack.c.bf16 %v809, %v809
      %v818 = vpack.c.bf16 %v810, %v810
      %819 = vst [vmem:[%s226] sm:$0xf] %v811
      %820 = vst [vmem:[%s226 + $0x4] sm:$0xf] %v812
      %821 = vst [vmem:[%s226 + $0x8] sm:$0xf] %v813
      %822 = vst [vmem:[%s226 + $0xc] sm:$0xf] %v814
      %823 = vst [vmem:[%s226 + $0x10] sm:$0xf] %v815
      %824 = vst [vmem:[%s226 + $0x14] sm:$0xf] %v816
      %825 = vst [vmem:[%s226 + $0x18] sm:$0xf] %v817
      %826 = vst [vmem:[%s226 + $0x1c] sm:$0xf] %v818
      %s827 = smul.u32 8, %s18
      %p828 = scmp.lt.s32.totalorder %s827, 15
      %s829 = scalar_select %p828, %s827, 15
      %p830 = scmp.lt.s32.totalorder %s19, 0
      %s831 = scalar_select %p830, %s19, 0
      %s832 = sadd.s32 %s831, %s829
      %s833 = smul.addr %s832, 4
      %s834 = scalar_lea.vmem %s3, %s833
      // Predicated region
      $region33: #{generator1_forward.7} parent=31 // pred_check
        %p835 = pneg %p124
      $region34: #{generator1_forward.7} parent=31 // pred_check_branch
        %837 = sbr.rel (%p835) target = $region36
      $region35: #{generator1_forward.7} parent=31 // pred_region
        %s838 = smul.u32 8, %s18
      $region36: #{generator1_forward.7} parent=31 // pred_fallthru
        _
    $region32: #{generator1_forward.7} parent=5 // pred_fallthru
      _
    %p839 = scmp.le.s32.totalorder 2, %s9
    // Predicated region
    $region37: #{generator1_forward.7} parent=5 // pred_check
      %p840 = pneg %p839
    $region38: #{generator1_forward.7} parent=5 // pred_check_branch
      %842 = sbr.rel (%p840) target = $region40
    $region39: #{generator1_forward.7} parent=5 // pred_region
      %s843 = ssub.s32 %s9, 2
      // Predicated region
      $region41: #{generator1_forward.7} parent=39 // pred_check
        %p844 = pneg %p130
      $region42: #{generator1_forward.7} parent=39 // pred_check_branch
        %846 = sbr.rel (%p844) target = $region44
      $region43: #{generator1_forward.7} parent=39 // pred_region
        %s847 = smul.u32 8, %s20
        %p848 = scmp.lt.s32.totalorder %s847, 15
        %s849 = scalar_select %p848, %s847, 15
        %p850 = scmp.lt.s32.totalorder %s21, 0
        %s851 = scalar_select %p850, %s21, 0
        %s852 = sadd.s32 %s851, %s849
        %s853 = smul.addr %s852, 4
        %s854 = scalar_lea.vmem %s3, %s853
      $region44: #{generator1_forward.7} parent=39 // pred_fallthru
        _
    $region40: #{generator1_forward.7} parent=5 // pred_fallthru
      _
  $region6: #{generator1_forward.7} parent=0 // loop_footer
    %s13 = sadd.s32 1, %s9
  $region7: #{generator1_forward.7} parent=0 // loop_footer_branch
    %8 = sbr.rel target = $region3
  $region8: #{generator1_forward.7} parent=0 // loop_exit
    _

// kernel: generator1_forward.8
$region0: #{generator1_forward.8}
  #allocation0 [shape = 'u32[]', space=smem, size = 0x4, offset = 0x4, fixed_abs, tag = 'smem constant byte address 0x4 - core index']
  #allocation1 [shape = 'u32[72,128]{1,0:T(1,128)}', space=vmem, size = 0x9000, scoped, tag = 'internal scratch']
  %s0 = inlined_call_operand.vmem [shape: bf16[512,288], index: 0, kind: input, shape index: {}]
  %s1 = inlined_call_operand.vmem [shape: bf16[288,64], index: 1, kind: input, shape index: {}]
  %s2 = inlined_call_operand.vmem [shape: f32[1,64], index: 2, kind: input, shape index: {}]
  %s3 = inlined_call_operand.vmem [shape: bf16[512,64], index: 3, kind: output, shape index: {}]
  %s4 = sld [smem:[#allocation0]]
  $region45: #{generator1_forward.8} parent=0
    _
  %s6 = ssub.s32 1, %s4
  %s7 = scalar_select 0, %s6, %s4
  loop: start=0, step=1, limit=4
  $region2: #{generator1_forward.8} parent=0 // loop_pre_header
    _
  $region3: #{generator1_forward.8} parent=0 // loop_header
    %s9 = sphi 0, %s13
    %p10 = scmp.ge.s32.totalorder %s9, 4
    %s16 = sphi 0, %s28
    %s17 = sphi 0, %s24
    %s18 = sphi 0, %s16
    %s19 = sphi 0, %s17
    %s20 = sphi 0, %s18
    %s21 = sphi 0, %s19
    %s31 = sphi 0, %s33
    %s34 = sphi 0, %s31
    %s35 = sphi 0, %s34
    %s51 = sphi 0, %s35
    %s57 = sphi 0, %s59
    %s60 = sphi 0, %s57
    %s61 = sphi 0, %s60
    %s77 = sphi 0, %s61
    %s83 = sphi 0, %s85
    %s86 = sphi 0, %s83
    %s87 = sphi 0, %s86
    %s103 = sphi 0, %s87
    %s111 = sphi 0, %s113
    %s114 = sphi 0, %s111
    %s115 = sphi 0, %s114
    %s131 = sphi 0, %s115
  $region4: #{generator1_forward.8} parent=0 // loop_header_branch
    %12 = sbr.rel (%p10) target = $region8
  $region5: #{generator1_forward.8} parent=0 // loop_body
    %s14 = ssub.s32 %s9, 1
    %s15 = ssub.s32 %s9, 2
    %s22 = sadd.s32 1, %s17
    %p23 = scmp.ge.s32.totalorder %s22, 1
    %s24 = scalar_select %p23, 0, %s22
    %s25 = sadd.s32 1, %s16
    %s26 = scalar_select %p23, %s25, %s16
    %p27 = scmp.ge.s32.totalorder %s26, 2
    %s28 = scalar_select %p27, 0, %s26
    %s29 = ssub.s32 %s16, %s28
    %p30 = scmp.eq.s32.totalorder %s29, 0
    %s32 = sadd.s32 %s31, 1
    %s33 = scalar_select %p30, %s31, %s32
    %p36 = pneg %p30
    %p37 = scmp.eq.s32.totalorder %s9, 1
    %p38 = por %p36, %p37
    %p39 = scmp.ne.s32.totalorder %s31, %s34
    %p40 = scmp.eq.s32.totalorder %s9, 0
    %p41 = por %p39, %p40
    %p42 = scmp.ne.s32.totalorder %s31, %s34
    %p43 = scmp.eq.s32.totalorder %s14, 1
    %p44 = por %p42, %p43
    %p45 = scmp.ne.s32.totalorder %s34, %s35
    %p46 = scmp.eq.s32.totalorder %s14, 0
    %p47 = por %p45, %p46
    %p48 = scmp.ne.s32.totalorder %s34, %s35
    %p49 = scmp.eq.s32.totalorder %s15, 1
    %p50 = por %p48, %p49
    %p52 = scmp.ne.s32.totalorder %s35, %s51
    %p53 = scmp.eq.s32.totalorder %s15, 0
    %p54 = por %p52, %p53
    %s55 = ssub.s32 %s17, %s24
    %p56 = scmp.eq.s32.totalorder %s55, 0
    %s58 = sadd.s32 %s57, 1
    %s59 = scalar_select %p56, %s57, %s58
    %p62 = pneg %p56
    %p63 = scmp.eq.s32.totalorder %s9, 1
    %p64 = por %p62, %p63
    %p65 = scmp.ne.s32.totalorder %s57, %s60
    %p66 = scmp.eq.s32.totalorder %s9, 0
    %p67 = por %p65, %p66
    %p68 = scmp.ne.s32.totalorder %s57, %s60
    %p69 = scmp.eq.s32.totalorder %s14, 1
    %p70 = por %p68, %p69
    %p71 = scmp.ne.s32.totalorder %s60, %s61
    %p72 = scmp.eq.s32.totalorder %s14, 0
    %p73 = por %p71, %p72
    %p74 = scmp.ne.s32.totalorder %s60, %s61
    %p75 = scmp.eq.s32.totalorder %s15, 1
    %p76 = por %p74, %p75
    %p78 = scmp.ne.s32.totalorder %s61, %s77
    %p79 = scmp.eq.s32.totalorder %s15, 0
    %p80 = por %p78, %p79
    %s81 = ssub.s32 %s17, %s24
    %p82 = scmp.eq.s32.totalorder %s81, 0
    %s84 = sadd.s32 %s83, 1
    %s85 = scalar_select %p82, %s83, %s84
    %p88 = pneg %p82
    %p89 = scmp.eq.s32.totalorder %s9, 1
    %p90 = por %p88, %p89
    %p91 = scmp.ne.s32.totalorder %s83, %s86
    %p92 = scmp.eq.s32.totalorder %s9, 0
    %p93 = por %p91, %p92
    %p94 = scmp.ne.s32.totalorder %s83, %s86
    %p95 = scmp.eq.s32.totalorder %s14, 1
    %p96 = por %p94, %p95
    %p97 = scmp.ne.s32.totalorder %s86, %s87
    %p98 = scmp.eq.s32.totalorder %s14, 0
    %p99 = por %p97, %p98
    %p100 = scmp.ne.s32.totalorder %s86, %s87
    %p101 = scmp.eq.s32.totalorder %s15, 1
    %p102 = por %p100, %p101
    %p104 = scmp.ne.s32.totalorder %s87, %s103
    %p105 = scmp.eq.s32.totalorder %s15, 0
    %p106 = por %p104, %p105
    %s107 = ssub.s32 %s16, %s28
    %s108 = ssub.s32 %s17, %s24
    %s109 = sor.u32 %s107, %s108
    %p110 = scmp.eq.s32.totalorder %s109, 0
    %s112 = sadd.s32 %s111, 1
    %s113 = scalar_select %p110, %s111, %s112
    %p116 = pneg %p110
    %p117 = scmp.eq.s32.totalorder %s9, 1
    %p118 = por %p116, %p117
    %p119 = scmp.ne.s32.totalorder %s111, %s114
    %p120 = scmp.eq.s32.totalorder %s9, 0
    %p121 = por %p119, %p120
    %p122 = scmp.ne.s32.totalorder %s111, %s114
    %p123 = scmp.eq.s32.totalorder %s14, 1
    %p124 = por %p122, %p123
    %p125 = scmp.ne.s32.totalorder %s114, %s115
    %p126 = scmp.eq.s32.totalorder %s14, 0
    %p127 = por %p125, %p126
    %p128 = scmp.ne.s32.totalorder %s114, %s115
    %p129 = scmp.eq.s32.totalorder %s15, 1
    %p130 = por %p128, %p129
    %p132 = scmp.ne.s32.totalorder %s115, %s131
    %p133 = scmp.eq.s32.totalorder %s15, 0
    %p134 = por %p132, %p133
    %p135 = scmp.le.s32.totalorder 1, %s9
    %p136 = scmp.lt.s32.totalorder %s9, 3
    %p137 = pnand %p135, %p136
    %p138 = pneg %p137
    // Predicated region
    $region9: #{generator1_forward.8} parent=5 // pred_check
      _
    $region10: #{generator1_forward.8} parent=5 // pred_check_branch
      %140 = sbr.rel (%p137) target = $region12
    $region11: #{generator1_forward.8} parent=5 // pred_region
      %s141 = ssub.s32 %s9, 1
      // Predicated region
      $region13: #{generator1_forward.8} parent=11 // pred_check
        %p142 = pneg %p73
      $region14: #{generator1_forward.8} parent=11 // pred_check_branch
        %144 = sbr.rel (%p142) target = $region16
      $region15: #{generator1_forward.8} parent=11 // pred_region
        %p145 = scmp.lt.s32.totalorder %s19, 0
        %s146 = scalar_select %p145, %s19, 0
        %s147 = smul.addr %s146, 4
        %s148 = scalar_lea.vmem %s1, %s147
      $region16: #{generator1_forward.8} parent=11 // pred_fallthru
        _
      // Predicated region
      $region17: #{generator1_forward.8} parent=11 // pred_check
        %p149 = pneg %p99
      $region18: #{generator1_forward.8} parent=11 // pred_check_branch
        %151 = sbr.rel (%p149) target = $region20
      $region19: #{generator1_forward.8} parent=11 // pred_region
        %p152 = scmp.lt.s32.totalorder %s19, 0
        %s153 = scalar_select %p152, %s19, 0
        %s154 = scalar_lea.vmem %s2, %s153
      $region20: #{generator1_forward.8} parent=11 // pred_fallthru
        _
    $region12: #{generator1_forward.8} parent=5 // pred_fallthru
      _
    %p155 = scmp.lt.s32.totalorder %s9, 2
    // Predicated region
    $region21: #{generator1_forward.8} parent=5 // pred_check
      %p156 = pneg %p155
    $region22: #{generator1_forward.8} parent=5 // pred_check_branch
      %158 = sbr.rel (%p156) target = $region24
    $region23: #{generator1_forward.8} parent=5 // pred_region
      // Predicated region
      $region25: #{generator1_forward.8} parent=23 // pred_check
        %p159 = pneg %p41
      $region26: #{generator1_forward.8} parent=23 // pred_check_branch
        %161 = sbr.rel (%p159) target = $region28
      $region27: #{generator1_forward.8} parent=23 // pred_region
        %s162 = smul.u32 32, %s16
        %p163 = scmp.lt.s32.totalorder %s162, 63
        %s164 = scalar_select %p163, %s162, 63
        %s165 = smul.addr %s164, 3
        %s166 = smul.addr %s165, 4
        %s167 = scalar_lea.vmem %s0, %s166
        %s168 = smul.u32 32, %s16
      $region28: #{generator1_forward.8} parent=23 // pred_fallthru
        _
    $region24: #{generator1_forward.8} parent=5 // pred_fallthru
      _
    %p169 = scmp.le.s32.totalorder 1, %s9
    %p170 = scmp.lt.s32.totalorder %s9, 3
    %p171 = pnand %p169, %p170
    %p172 = pneg %p171
    // Predicated region
    $region29: #{generator1_forward.8} parent=5 // pred_check
      _
    $region30: #{generator1_forward.8} parent=5 // pred_check_branch
      %174 = sbr.rel (%p171) target = $region32
    $region31: #{generator1_forward.8} parent=5 // pred_region
      %s175 = ssub.s32 %s9, 1
      %s176 = smul.u32 32, %s18
      %p177 = scmp.lt.s32.totalorder %s176, 63
      %s178 = scalar_select %p177, %s176, 63
      %s179 = smul.addr %s178, 3
      %s180 = smul.addr %s179, 4
      %s181 = scalar_lea.vmem %s0, %s180
      %p182 = pneg %p47
      %p183 = pneg %p44
      %p184 = scmp.lt.s32.totalorder %s19, 0
      %s185 = scalar_select %p184, %s19, 0
      %s186 = smul.addr %s185, 4
      %s187 = scalar_lea.vmem %s1, %s186
      %p188 = pneg %p73
      %p189 = pneg %p70
      %p190 = scmp.lt.s32.totalorder %s19, 0
      %s191 = scalar_select %p190, %s19, 0
      %s192 = scalar_lea.vmem %s2, %s191
      %p193 = pneg %p99
      %p194 = pneg %p96
      %p195 = pneg %p127
      %p196 = pneg %p124
      %s197 = smul.u32 32, %s18
      %p198 = scmp.lt.s32.totalorder %s197, 63
      %s199 = scalar_select %p198, %s197, 63
      %p200 = scmp.lt.s32.totalorder %s19, 0
      %s201 = scalar_select %p200, %s19, 0
      %s202 = sadd.s32 %s201, %s199
      %s203 = smul.addr %s202, 4
      %s204 = scalar_lea.vmem %s3, %s203
      %s205 = smul.u32 32, %s18
      %p206 = scmp.lt.s32.totalorder %s205, 63
      %s207 = scalar_select %p206, %s205, 63
      %s208 = smul.addr %s207, 3
      %s209 = smul.addr %s208, 4
      %s210 = scalar_lea.vmem %s0, %s209
      %s211 = smul.u32 32, %s18
      %p212 = scmp.lt.s32.totalorder %s19, 0
      %s213 = scalar_select %p212, %s19, 0
      %s214 = smul.addr %s213, 4
      %s215 = scalar_lea.vmem %s1, %s214
      %p216 = scmp.lt.s32.totalorder %s19, 0
      %s217 = scalar_select %p216, %s19, 0
      %s218 = scalar_lea.vmem %s2, %s217
      %s219 = smul.u32 32, %s18
      %p220 = scmp.lt.s32.totalorder %s219, 63
      %s221 = scalar_select %p220, %s219, 63
      %p222 = scmp.lt.s32.totalorder %s19, 0
      %s223 = scalar_select %p222, %s19, 0
      %s224 = sadd.s32 %s223, %s221
      %s225 = smul.addr %s224, 4
      %s226 = scalar_lea.vmem %s3, %s225
      %s227 = smul.u32 32, %s18
      %v229 = vld [vmem:[%s210] sm:$0xff]
      %v230 = vld [vmem:[%s210 + $0x8] sm:$0xf]
      %v231 = vld [vmem:[%s210 + $0xc] sm:$0xff]
      %v232 = vld [vmem:[%s210 + $0x14] sm:$0xf]
      %v233 = vld [vmem:[%s210 + $0x18] sm:$0xff]
      %v234 = vld [vmem:[%s210 + $0x20] sm:$0xf]
      %v235 = vld [vmem:[%s210 + $0x24] sm:$0xff]
      %v236 = vld [vmem:[%s210 + $0x2c] sm:$0xf]
      %v237 = vld [vmem:[%s210 + $0x30] sm:$0xff]
      %v238 = vld [vmem:[%s210 + $0x38] sm:$0xf]
      %v239 = vld [vmem:[%s210 + $0x3c] sm:$0xff]
      %v240 = vld [vmem:[%s210 + $0x44] sm:$0xf]
      %v241 = vld [vmem:[%s210 + $0x48] sm:$0xff]
      %v242 = vld [vmem:[%s210 + $0x50] sm:$0xf]
      %v243 = vld [vmem:[%s210 + $0x54] sm:$0xff]
      %v244 = vld [vmem:[%s210 + $0x5c] sm:$0xf]
      %v245 = vld [vmem:[%s210 + $0x60] sm:$0xff]
      %v246 = vld [vmem:[%s210 + $0x68] sm:$0xf]
      %v247 = vld [vmem:[%s210 + $0x6c] sm:$0xff]
      %v248 = vld [vmem:[%s210 + $0x74] sm:$0xf]
      %v249 = vld [vmem:[%s210 + $0x78] sm:$0xff]
      %v250 = vld [vmem:[%s210 + $0x80] sm:$0xf]
      %v251 = vld [vmem:[%s210 + $0x84] sm:$0xff]
      %v252 = vld [vmem:[%s210 + $0x8c] sm:$0xf]
      %v253 = vld [vmem:[%s210 + $0x90] sm:$0xff]
      %v254 = vld [vmem:[%s210 + $0x98] sm:$0xf]
      %v255 = vld [vmem:[%s210 + $0x9c] sm:$0xff]
      %v256 = vld [vmem:[%s210 + $0xa4] sm:$0xf]
      %v257 = vld [vmem:[%s210 + $0xa8] sm:$0xff]
      %v258 = vld [vmem:[%s210 + $0xb0] sm:$0xf]
      %v259 = vld [vmem:[%s210 + $0xb4] sm:$0xff]
      %v260 = vld [vmem:[%s210 + $0xbc] sm:$0xf]
      %v261 = vld [vmem:[%s210 + $0xc0] sm:$0xff]
      %v262 = vld [vmem:[%s210 + $0xc8] sm:$0xf]
      %v263 = vld [vmem:[%s210 + $0xcc] sm:$0xff]
      %v264 = vld [vmem:[%s210 + $0xd4] sm:$0xf]
      %v265 = vld [vmem:[%s210 + $0xd8] sm:$0xff]
      %v266 = vld [vmem:[%s210 + $0xe0] sm:$0xf]
      %v267 = vld [vmem:[%s210 + $0xe4] sm:$0xff]
      %v268 = vld [vmem:[%s210 + $0xec] sm:$0xf]
      %v269 = vld [vmem:[%s210 + $0xf0] sm:$0xff]
      %v270 = vld [vmem:[%s210 + $0xf8] sm:$0xf]
      %v271 = vld [vmem:[%s210 + $0xfc] sm:$0xff]
      %v272 = vld [vmem:[%s210 + $0x104] sm:$0xf]
      %v273 = vld [vmem:[%s210 + $0x108] sm:$0xff]
      %v274 = vld [vmem:[%s210 + $0x110] sm:$0xf]
      %v275 = vld [vmem:[%s210 + $0x114] sm:$0xff]
      %v276 = vld [vmem:[%s210 + $0x11c] sm:$0xf]
      %v277 = vld [vmem:[%s210 + $0x120] sm:$0xff]
      %v278 = vld [vmem:[%s210 + $0x128] sm:$0xf]
      %v279 = vld [vmem:[%s210 + $0x12c] sm:$0xff]
      %v280 = vld [vmem:[%s210 + $0x134] sm:$0xf]
      %v281 = vld [vmem:[%s210 + $0x138] sm:$0xff]
      %v282 = vld [vmem:[%s210 + $0x140] sm:$0xf]
      %v283 = vld [vmem:[%s210 + $0x144] sm:$0xff]
      %v284 = vld [vmem:[%s210 + $0x14c] sm:$0xf]
      %v285 = vld [vmem:[%s210 + $0x150] sm:$0xff]
      %v286 = vld [vmem:[%s210 + $0x158] sm:$0xf]
      %v287 = vld [vmem:[%s210 + $0x15c] sm:$0xff]
      %v288 = vld [vmem:[%s210 + $0x164] sm:$0xf]
      %v289 = vld [vmem:[%s210 + $0x168] sm:$0xff]
      %v290 = vld [vmem:[%s210 + $0x170] sm:$0xf]
      %v291 = vld [vmem:[%s210 + $0x174] sm:$0xff]
      %v292 = vld [vmem:[%s210 + $0x17c] sm:$0xf]
      %v293 = vld [vmem:[%s215] sm:$0xf]
      %v294 = vld [vmem:[%s215 + $0x4] sm:$0xf]
      %v295 = vld [vmem:[%s215 + $0x8] sm:$0xf]
      %v296 = vld [vmem:[%s215 + $0xc] sm:$0xf]
      %v297 = vld [vmem:[%s215 + $0x10] sm:$0xf]
      %v298 = vld [vmem:[%s215 + $0x14] sm:$0xf]
      %v299 = vld [vmem:[%s215 + $0x18] sm:$0xf]
      %v300 = vld [vmem:[%s215 + $0x1c] sm:$0xf]
      %v301 = vld [vmem:[%s215 + $0x20] sm:$0xf]
      %v302 = vld [vmem:[%s215 + $0x24] sm:$0xf]
      %v303 = vld [vmem:[%s215 + $0x28] sm:$0xf]
      %v304 = vld [vmem:[%s215 + $0x2c] sm:$0xf]
      %v305 = vld [vmem:[%s215 + $0x30] sm:$0xf]
      %v306 = vld [vmem:[%s215 + $0x34] sm:$0xf]
      %v307 = vld [vmem:[%s215 + $0x38] sm:$0xf]
      %v308 = vld [vmem:[%s215 + $0x3c] sm:$0xf]
      %v309 = vld [vmem:[%s215 + $0x40] sm:$0xf]
      %v310 = vld [vmem:[%s215 + $0x44] sm:$0xf]
      %v311 = vld [vmem:[%s215 + $0x48] sm:$0xf]
      %v312 = vld [vmem:[%s215 + $0x4c] sm:$0xf]
      %v313 = vld [vmem:[%s215 + $0x50] sm:$0xf]
      %v314 = vld [vmem:[%s215 + $0x54] sm:$0xf]
      %v315 = vld [vmem:[%s215 + $0x58] sm:$0xf]
      %v316 = vld [vmem:[%s215 + $0x5c] sm:$0xf]
      %v317 = vld [vmem:[%s215 + $0x60] sm:$0xf]
      %v318 = vld [vmem:[%s215 + $0x64] sm:$0xf]
      %v319 = vld [vmem:[%s215 + $0x68] sm:$0xf]
      %v320 = vld [vmem:[%s215 + $0x6c] sm:$0xf]
      %v321 = vld [vmem:[%s215 + $0x70] sm:$0xf]
      %v322 = vld [vmem:[%s215 + $0x74] sm:$0xf]
      %v323 = vld [vmem:[%s215 + $0x78] sm:$0xf]
      %v324 = vld [vmem:[%s215 + $0x7c] sm:$0xf]
      %v325 = vld [vmem:[%s215 + $0x80] sm:$0xf]
      %v326 = vld [vmem:[%s215 + $0x84] sm:$0xf]
      %v327 = vld [vmem:[%s215 + $0x88] sm:$0xf]
      %v328 = vld [vmem:[%s215 + $0x8c] sm:$0xf]
      %v329 = vld [vmem:[%s218] sm:$0x1]
      %v331 = vperm.slane %v329, 0
      %v397 = vunpack.c.l.b16 %v229
      %v398 = vunpack.c.h.b16 %v229
      %v399 = vunpack.c.l.b16 %v230
      %v400 = vunpack.c.l.b16 %v231
      %v401 = vunpack.c.h.b16 %v231
      %v402 = vunpack.c.l.b16 %v232
      %v403 = vunpack.c.l.b16 %v233
      %v404 = vunpack.c.h.b16 %v233
      %v405 = vunpack.c.l.b16 %v234
      %v406 = vunpack.c.l.b16 %v235
      %v407 = vunpack.c.h.b16 %v235
      %v408 = vunpack.c.l.b16 %v236
      %v409 = vunpack.c.l.b16 %v237
      %v410 = vunpack.c.h.b16 %v237
      %v411 = vunpack.c.l.b16 %v238
      %v412 = vunpack.c.l.b16 %v239
      %v413 = vunpack.c.h.b16 %v239
      %v414 = vunpack.c.l.b16 %v240
      %v415 = vunpack.c.l.b16 %v241
      %v416 = vunpack.c.h.b16 %v241
      %v417 = vunpack.c.l.b16 %v242
      %v418 = vunpack.c.l.b16 %v243
      %v419 = vunpack.c.h.b16 %v243
      %v420 = vunpack.c.l.b16 %v244
      %v421 = vunpack.c.l.b16 %v245
      %v422 = vunpack.c.h.b16 %v245
      %v423 = vunpack.c.l.b16 %v246
      %v424 = vunpack.c.l.b16 %v247
      %v425 = vunpack.c.h.b16 %v247
      %v426 = vunpack.c.l.b16 %v248
      %v427 = vunpack.c.l.b16 %v249
      %v428 = vunpack.c.h.b16 %v249
      %v429 = vunpack.c.l.b16 %v250
      %v430 = vunpack.c.l.b16 %v251
      %v431 = vunpack.c.h.b16 %v251
      %v432 = vunpack.c.l.b16 %v252
      %v433 = vunpack.c.l.b16 %v253
      %v434 = vunpack.c.h.b16 %v253
      %v435 = vunpack.c.l.b16 %v254
      %v436 = vunpack.c.l.b16 %v255
      %v437 = vunpack.c.h.b16 %v255
      %v438 = vunpack.c.l.b16 %v256
      %v439 = vunpack.c.l.b16 %v257
      %v440 = vunpack.c.h.b16 %v257
      %v441 = vunpack.c.l.b16 %v258
      %v442 = vunpack.c.l.b16 %v259
      %v443 = vunpack.c.h.b16 %v259
      %v444 = vunpack.c.l.b16 %v260
      %v445 = vunpack.c.l.b16 %v261
      %v446 = vunpack.c.h.b16 %v261
      %v447 = vunpack.c.l.b16 %v262
      %v448 = vunpack.c.l.b16 %v263
      %v449 = vunpack.c.h.b16 %v263
      %v450 = vunpack.c.l.b16 %v264
      %v451 = vunpack.c.l.b16 %v265
      %v452 = vunpack.c.h.b16 %v265
      %v453 = vunpack.c.l.b16 %v266
      %v454 = vunpack.c.l.b16 %v267
      %v455 = vunpack.c.h.b16 %v267
      %v456 = vunpack.c.l.b16 %v268
      %v457 = vunpack.c.l.b16 %v269
      %v458 = vunpack.c.h.b16 %v269
      %v459 = vunpack.c.l.b16 %v270
      %v460 = vunpack.c.l.b16 %v271
      %v461 = vunpack.c.h.b16 %v271
      %v462 = vunpack.c.l.b16 %v272
      %v463 = vunpack.c.l.b16 %v273
      %v464 = vunpack.c.h.b16 %v273
      %v465 = vunpack.c.l.b16 %v274
      %v466 = vunpack.c.l.b16 %v275
      %v467 = vunpack.c.h.b16 %v275
      %v468 = vunpack.c.l.b16 %v276
      %v469 = vunpack.c.l.b16 %v277
      %v470 = vunpack.c.h.b16 %v277
      %v471 = vunpack.c.l.b16 %v278
      %v472 = vunpack.c.l.b16 %v279
      %v473 = vunpack.c.h.b16 %v279
      %v474 = vunpack.c.l.b16 %v280
      %v475 = vunpack.c.l.b16 %v281
      %v476 = vunpack.c.h.b16 %v281
      %v477 = vunpack.c.l.b16 %v282
      %v478 = vunpack.c.l.b16 %v283
      %v479 = vunpack.c.h.b16 %v283
      %v480 = vunpack.c.l.b16 %v284
      %v481 = vunpack.c.l.b16 %v285
      %v482 = vunpack.c.h.b16 %v285
      %v483 = vunpack.c.l.b16 %v286
      %v484 = vunpack.c.l.b16 %v287
      %v485 = vunpack.c.h.b16 %v287
      %v486 = vunpack.c.l.b16 %v288
      %v487 = vunpack.c.l.b16 %v289
      %v488 = vunpack.c.h.b16 %v289
      %v489 = vunpack.c.l.b16 %v290
      %v490 = vunpack.c.l.b16 %v291
      %v491 = vunpack.c.h.b16 %v291
      %v492 = vunpack.c.l.b16 %v292
      %v493 = vpack.c.b16 %v400, %v397
      %v494 = vpack.c.b16 %v401, %v398
      %v495 = vpack.c.b16 %v402, %v399
      %v496 = vpack.c.b16 %v406, %v403
      %v497 = vpack.c.b16 %v407, %v404
      %v498 = vpack.c.b16 %v408, %v405
      %v499 = vpack.c.b16 %v412, %v409
      %v500 = vpack.c.b16 %v413, %v410
      %v501 = vpack.c.b16 %v414, %v411
      %v502 = vpack.c.b16 %v418, %v415
      %v503 = vpack.c.b16 %v419, %v416
      %v504 = vpack.c.b16 %v420, %v417
      %v505 = vpack.c.b16 %v424, %v421
      %v506 = vpack.c.b16 %v425, %v422
      %v507 = vpack.c.b16 %v426, %v423
      %v508 = vpack.c.b16 %v430, %v427
      %v509 = vpack.c.b16 %v431, %v428
      %v510 = vpack.c.b16 %v432, %v429
      %v511 = vpack.c.b16 %v436, %v433
      %v512 = vpack.c.b16 %v437, %v434
      %v513 = vpack.c.b16 %v438, %v435
      %v514 = vpack.c.b16 %v442, %v439
      %v515 = vpack.c.b16 %v443, %v440
      %v516 = vpack.c.b16 %v444, %v441
      %v517 = vpack.c.b16 %v448, %v445
      %v518 = vpack.c.b16 %v449, %v446
      %v519 = vpack.c.b16 %v450, %v447
      %v520 = vpack.c.b16 %v454, %v451
      %v521 = vpack.c.b16 %v455, %v452
      %v522 = vpack.c.b16 %v456, %v453
      %v523 = vpack.c.b16 %v460, %v457
      %v524 = vpack.c.b16 %v461, %v458
      %v525 = vpack.c.b16 %v462, %v459
      %v526 = vpack.c.b16 %v466, %v463
      %v527 = vpack.c.b16 %v467, %v464
      %v528 = vpack.c.b16 %v468, %v465
      %v529 = vpack.c.b16 %v472, %v469
      %v530 = vpack.c.b16 %v473, %v470
      %v531 = vpack.c.b16 %v474, %v471
      %v532 = vpack.c.b16 %v478, %v475
      %v533 = vpack.c.b16 %v479, %v476
      %v534 = vpack.c.b16 %v480, %v477
      %v535 = vpack.c.b16 %v484, %v481
      %v536 = vpack.c.b16 %v485, %v482
      %v537 = vpack.c.b16 %v486, %v483
      %v538 = vpack.c.b16 %v490, %v487
      %v539 = vpack.c.b16 %v491, %v488
      %v540 = vpack.c.b16 %v492, %v489
      %v609 = vunpack.c.l.b16 %v293
      %v610 = vunpack.c.l.b16 %v294
      %v611 = vunpack.c.l.b16 %v295
      %v612 = vunpack.c.l.b16 %v296
      %v613 = vunpack.c.l.b16 %v297
      %v614 = vunpack.c.l.b16 %v298
      %v615 = vunpack.c.l.b16 %v299
      %v616 = vunpack.c.l.b16 %v300
      %v617 = vunpack.c.l.b16 %v301
      %v618 = vunpack.c.l.b16 %v302
      %v619 = vunpack.c.l.b16 %v303
      %v620 = vunpack.c.l.b16 %v304
      %v621 = vunpack.c.l.b16 %v305
      %v622 = vunpack.c.l.b16 %v306
      %v623 = vunpack.c.l.b16 %v307
      %v624 = vunpack.c.l.b16 %v308
      %v625 = vunpack.c.l.b16 %v309
      %v626 = vunpack.c.l.b16 %v310
      %v627 = vunpack.c.l.b16 %v311
      %v628 = vunpack.c.l.b16 %v312
      %v629 = vunpack.c.l.b16 %v313
      %v630 = vunpack.c.l.b16 %v314
      %v631 = vunpack.c.l.b16 %v315
      %v632 = vunpack.c.l.b16 %v316
      %v633 = vunpack.c.l.b16 %v317
      %v634 = vunpack.c.l.b16 %v318
      %v635 = vunpack.c.l.b16 %v319
      %v636 = vunpack.c.l.b16 %v320
      %v637 = vunpack.c.l.b16 %v321
      %v638 = vunpack.c.l.b16 %v322
      %v639 = vunpack.c.l.b16 %v323
      %v640 = vunpack.c.l.b16 %v324
      %v641 = vunpack.c.l.b16 %v325
      %v642 = vunpack.c.l.b16 %v326
      %v643 = vunpack.c.l.b16 %v327
      %v644 = vunpack.c.l.b16 %v328
      %v645 = vpack.c.b16 %v610, %v609
      %v646 = vpack.c.b16 %v612, %v611
      %v647 = vpack.c.b16 %v614, %v613
      %v648 = vpack.c.b16 %v616, %v615
      %v649 = vpack.c.b16 %v618, %v617
      %v650 = vpack.c.b16 %v620, %v619
      %v651 = vpack.c.b16 %v622, %v621
      %v652 = vpack.c.b16 %v624, %v623
      %v653 = vpack.c.b16 %v626, %v625
      %v654 = vpack.c.b16 %v628, %v627
      %v655 = vpack.c.b16 %v630, %v629
      %v656 = vpack.c.b16 %v632, %v631
      %v657 = vpack.c.b16 %v634, %v633
      %v658 = vpack.c.b16 %v636, %v635
      %v659 = vpack.c.b16 %v638, %v637
      %v660 = vpack.c.b16 %v640, %v639
      %v661 = vpack.c.b16 %v642, %v641
      %v662 = vpack.c.b16 %v644, %v643
      %vm681 = vcmask 261120
      %v683 = vsel %vm681, %v495, 0
      %v686 = vsel %vm681, %v498, 0
      %v689 = vsel %vm681, %v501, 0
      %v692 = vsel %vm681, %v504, 0
      %v695 = vsel %vm681, %v507, 0
      %v698 = vsel %vm681, %v510, 0
      %v701 = vsel %vm681, %v513, 0
      %v704 = vsel %vm681, %v516, 0
      %v707 = vsel %vm681, %v519, 0
      %v710 = vsel %vm681, %v522, 0
      %v713 = vsel %vm681, %v525, 0
      %v716 = vsel %vm681, %v528, 0
      %v719 = vsel %vm681, %v531, 0
      %v722 = vsel %vm681, %v534, 0
      %v725 = vsel %vm681, %v537, 0
      %v728 = vsel %vm681, %v540, 0
      %730 = vmatpush.bf16.msra.mxu0 %v652
      %731 = vmatpush.bf16.msra.mxu0 %v651
      %732 = vmatpush.bf16.msra.mxu0 %v650
      %733 = vmatpush.bf16.msra.mxu0 %v649
      %734 = vmatpush.bf16.msra.mxu0 %v648
      %735 = vmatpush.bf16.msra.mxu0 %v647
      %736 = vmatpush.bf16.msra.mxu0 %v646
      %737 = vmatpush.bf16.msra.mxu0 %v645
      %738 = vmatmul.bf16.gmra.mxu0 %v493
      %v739 = vpop.f32.mrf.mxu0
      %v740 = vadd.f32 %v331, %v739
      %v741 = vpop.f32.mrf.mxu0
      %v742 = vadd.f32 %v331, %v741
      %743 = vmatmul.bf16.gmra.mxu0 %v496
      %v744 = vpop.f32.mrf.mxu0
      %v745 = vadd.f32 %v331, %v744
      %v746 = vpop.f32.mrf.mxu0
      %v747 = vadd.f32 %v331, %v746
      %748 = vmatmul.bf16.gmra.mxu0 %v499
      %v749 = vpop.f32.mrf.mxu0
      %v750 = vadd.f32 %v331, %v749
      %v751 = vpop.f32.mrf.mxu0
      %v752 = vadd.f32 %v331, %v751
      %753 = vmatmul.bf16.gmra.mxu0 %v502
      %v754 = vpop.f32.mrf.mxu0
      %v755 = vadd.f32 %v331, %v754
      %v756 = vpop.f32.mrf.mxu0
      %v757 = vadd.f32 %v331, %v756
      %758 = vmatmul.bf16.gmra.mxu0 %v505
      %v759 = vpop.f32.mrf.mxu0
      %v760 = vadd.f32 %v331, %v759
      %v761 = vpop.f32.mrf.mxu0
      %v762 = vadd.f32 %v331, %v761
      %763 = vmatmul.bf16.gmra.mxu0 %v508
      %v764 = vpop.f32.mrf.mxu0
      %v765 = vadd.f32 %v331, %v764
      %v766 = vpop.f32.mrf.mxu0
      %v767 = vadd.f32 %v331, %v766
      %768 = vmatmul.bf16.gmra.mxu0 %v511
      %v769 = vpop.f32.mrf.mxu0
      %v770 = vadd.f32 %v331, %v769
      %v771 = vpop.f32.mrf.mxu0
      %v772 = vadd.f32 %v331, %v771
      %773 = vmatmul.bf16.gmra.mxu0 %v514
      %v774 = vpop.f32.mrf.mxu0
      %v775 = vadd.f32 %v331, %v774
      %v776 = vpop.f32.mrf.mxu0
      %v777 = vadd.f32 %v331, %v776
      %778 = vmatmul.bf16.gmra.mxu0 %v517
      %v779 = vpop.f32.mrf.mxu0
      %v780 = vadd.f32 %v331, %v779
      %v781 = vpop.f32.mrf.mxu0
      %v782 = vadd.f32 %v331, %v781
      %783 = vmatmul.bf16.gmra.mxu0 %v520
      %v784 = vpop.f32.mrf.mxu0
      %v785 = vadd.f32 %v331, %v784
      %v786 = vpop.f32.mrf.mxu0
      %v787 = vadd.f32 %v331, %v786
      %788 = vmatmul.bf16.gmra.mxu0 %v523
      %v789 = vpop.f32.mrf.mxu0
      %v790 = vadd.f32 %v331, %v789
      %v791 = vpop.f32.mrf.mxu0
      %v792 = vadd.f32 %v331, %v791
      %793 = vmatmul.bf16.gmra.mxu0 %v526
      %v794 = vpop.f32.mrf.mxu0
      %v795 = vadd.f32 %v331, %v794
      %v796 = vpop.f32.mrf.mxu0
      %v797 = vadd.f32 %v331, %v796
      %798 = vmatmul.bf16.gmra.mxu0 %v529
      %v799 = vpop.f32.mrf.mxu0
      %v800 = vadd.f32 %v331, %v799
      %v801 = vpop.f32.mrf.mxu0
      %v802 = vadd.f32 %v331, %v801
      %803 = vmatmul.bf16.gmra.mxu0 %v532
      %v804 = vpop.f32.mrf.mxu0
      %v805 = vadd.f32 %v331, %v804
      %v806 = vpop.f32.mrf.mxu0
      %v807 = vadd.f32 %v331, %v806
      %808 = vmatmul.bf16.gmra.mxu0 %v535
      %v809 = vpop.f32.mrf.mxu0
      %v810 = vadd.f32 %v331, %v809
      %v811 = vpop.f32.mrf.mxu0
      %v812 = vadd.f32 %v331, %v811
      %813 = vmatmul.bf16.gmra.mxu0 %v538
      %v814 = vpop.f32.mrf.mxu0
      %v815 = vadd.f32 %v331, %v814
      %v816 = vpop.f32.mrf.mxu0
      %v817 = vadd.f32 %v331, %v816
      %818 = vdwg.mxu0
      %819 = vmatpush.bf16.msra.mxu0 %v660
      %820 = vmatpush.bf16.msra.mxu0 %v659
      %821 = vmatpush.bf16.msra.mxu0 %v658
      %822 = vmatpush.bf16.msra.mxu0 %v657
      %823 = vmatpush.bf16.msra.mxu0 %v656
      %824 = vmatpush.bf16.msra.mxu0 %v655
      %825 = vmatpush.bf16.msra.mxu0 %v654
      %826 = vmatpush.bf16.msra.mxu0 %v653
      %827 = vmatmul.bf16.gmra.mxu0 %v494
      %v828 = vpop.f32.mrf.mxu0
      %v829 = vadd.f32 %v740, %v828
      %v830 = vpop.f32.mrf.mxu0
      %v831 = vadd.f32 %v742, %v830
      %832 = vmatmul.bf16.gmra.mxu0 %v497
      %v833 = vpop.f32.mrf.mxu0
      %v834 = vadd.f32 %v745, %v833
      %v835 = vpop.f32.mrf.mxu0
      %v836 = vadd.f32 %v747, %v835
      %837 = vmatmul.bf16.gmra.mxu0 %v500
      %v838 = vpop.f32.mrf.mxu0
      %v839 = vadd.f32 %v750, %v838
      %v840 = vpop.f32.mrf.mxu0
      %v841 = vadd.f32 %v752, %v840
      %842 = vmatmul.bf16.gmra.mxu0 %v503
      %v843 = vpop.f32.mrf.mxu0
      %v844 = vadd.f32 %v755, %v843
      %v845 = vpop.f32.mrf.mxu0
      %v846 = vadd.f32 %v757, %v845
      %847 = vmatmul.bf16.gmra.mxu0 %v506
      %v848 = vpop.f32.mrf.mxu0
      %v849 = vadd.f32 %v760, %v848
      %v850 = vpop.f32.mrf.mxu0
      %v851 = vadd.f32 %v762, %v850
      %852 = vmatmul.bf16.gmra.mxu0 %v509
      %v853 = vpop.f32.mrf.mxu0
      %v854 = vadd.f32 %v765, %v853
      %v855 = vpop.f32.mrf.mxu0
      %v856 = vadd.f32 %v767, %v855
      %857 = vmatmul.bf16.gmra.mxu0 %v512
      %v858 = vpop.f32.mrf.mxu0
      %v859 = vadd.f32 %v770, %v858
      %v860 = vpop.f32.mrf.mxu0
      %v861 = vadd.f32 %v772, %v860
      %862 = vmatmul.bf16.gmra.mxu0 %v515
      %v863 = vpop.f32.mrf.mxu0
      %v864 = vadd.f32 %v775, %v863
      %v865 = vpop.f32.mrf.mxu0
      %v866 = vadd.f32 %v777, %v865
      %867 = vmatmul.bf16.gmra.mxu0 %v518
      %v868 = vpop.f32.mrf.mxu0
      %v869 = vadd.f32 %v780, %v868
      %v870 = vpop.f32.mrf.mxu0
      %v871 = vadd.f32 %v782, %v870
      %872 = vmatmul.bf16.gmra.mxu0 %v521
      %v873 = vpop.f32.mrf.mxu0
      %v874 = vadd.f32 %v785, %v873
      %v875 = vpop.f32.mrf.mxu0
      %v876 = vadd.f32 %v787, %v875
      %877 = vmatmul.bf16.gmra.mxu0 %v524
      %v878 = vpop.f32.mrf.mxu0
      %v879 = vadd.f32 %v790, %v878
      %v880 = vpop.f32.mrf.mxu0
      %v881 = vadd.f32 %v792, %v880
      %882 = vmatmul.bf16.gmra.mxu0 %v527
      %v883 = vpop.f32.mrf.mxu0
      %v884 = vadd.f32 %v795, %v883
      %v885 = vpop.f32.mrf.mxu0
      %v886 = vadd.f32 %v797, %v885
      %887 = vmatmul.bf16.gmra.mxu0 %v530
      %v888 = vpop.f32.mrf.mxu0
      %v889 = vadd.f32 %v800, %v888
      %v890 = vpop.f32.mrf.mxu0
      %v891 = vadd.f32 %v802, %v890
      %892 = vmatmul.bf16.gmra.mxu0 %v533
      %v893 = vpop.f32.mrf.mxu0
      %v894 = vadd.f32 %v805, %v893
      %v895 = vpop.f32.mrf.mxu0
      %v896 = vadd.f32 %v807, %v895
      %897 = vmatmul.bf16.gmra.mxu0 %v536
      %v898 = vpop.f32.mrf.mxu0
      %v899 = vadd.f32 %v810, %v898
      %v900 = vpop.f32.mrf.mxu0
      %v901 = vadd.f32 %v812, %v900
      %902 = vmatmul.bf16.gmra.mxu0 %v539
      %v903 = vpop.f32.mrf.mxu0
      %v904 = vadd.f32 %v815, %v903
      %v905 = vpop.f32.mrf.mxu0
      %v906 = vadd.f32 %v817, %v905
      %907 = vdwg.mxu0
      %908 = vmatpush.bf16.msra.mxu0 0
      %909 = vmatpush.bf16.msra.mxu0 0
      %910 = vmatpush.bf16.msra.mxu0 0
      %911 = vmatpush.bf16.msra.mxu0 0
      %912 = vmatpush.bf16.msra.mxu0 0
      %913 = vmatpush.bf16.msra.mxu0 0
      %914 = vmatpush.bf16.msra.mxu0 %v662
      %915 = vmatpush.bf16.msra.mxu0 %v661
      %916 = vmatmul.bf16.gmra.mxu0 %v683
      %v917 = vpop.f32.mrf.mxu0
      %v918 = vadd.f32 %v829, %v917
      %v919 = vpop.f32.mrf.mxu0
      %v920 = vadd.f32 %v831, %v919
      %921 = vmatmul.bf16.gmra.mxu0 %v686
      %v922 = vpop.f32.mrf.mxu0
      %v923 = vadd.f32 %v834, %v922
      %v924 = vpop.f32.mrf.mxu0
      %v925 = vadd.f32 %v836, %v924
      %926 = vmatmul.bf16.gmra.mxu0 %v689
      %v927 = vpop.f32.mrf.mxu0
      %v928 = vadd.f32 %v839, %v927
      %v929 = vpop.f32.mrf.mxu0
      %v930 = vadd.f32 %v841, %v929
      %931 = vmatmul.bf16.gmra.mxu0 %v692
      %v932 = vpop.f32.mrf.mxu0
      %v933 = vadd.f32 %v844, %v932
      %v934 = vpop.f32.mrf.mxu0
      %v935 = vadd.f32 %v846, %v934
      %936 = vmatmul.bf16.gmra.mxu0 %v695
      %v937 = vpop.f32.mrf.mxu0
      %v938 = vadd.f32 %v849, %v937
      %v939 = vpop.f32.mrf.mxu0
      %v940 = vadd.f32 %v851, %v939
      %941 = vmatmul.bf16.gmra.mxu0 %v698
      %v942 = vpop.f32.mrf.mxu0
      %v943 = vadd.f32 %v854, %v942
      %v944 = vpop.f32.mrf.mxu0
      %v945 = vadd.f32 %v856, %v944
      %946 = vmatmul.bf16.gmra.mxu0 %v701
      %v947 = vpop.f32.mrf.mxu0
      %v948 = vadd.f32 %v859, %v947
      %v949 = vpop.f32.mrf.mxu0
      %v950 = vadd.f32 %v861, %v949
      %951 = vmatmul.bf16.gmra.mxu0 %v704
      %v952 = vpop.f32.mrf.mxu0
      %v953 = vadd.f32 %v864, %v952
      %v954 = vpop.f32.mrf.mxu0
      %v955 = vadd.f32 %v866, %v954
      %956 = vmatmul.bf16.gmra.mxu0 %v707
      %v957 = vpop.f32.mrf.mxu0
      %v958 = vadd.f32 %v869, %v957
      %v959 = vpop.f32.mrf.mxu0
      %v960 = vadd.f32 %v871, %v959
      %961 = vmatmul.bf16.gmra.mxu0 %v710
      %v962 = vpop.f32.mrf.mxu0
      %v963 = vadd.f32 %v874, %v962
      %v964 = vpop.f32.mrf.mxu0
      %v965 = vadd.f32 %v876, %v964
      %966 = vmatmul.bf16.gmra.mxu0 %v713
      %v967 = vpop.f32.mrf.mxu0
      %v968 = vadd.f32 %v879, %v967
      %v969 = vpop.f32.mrf.mxu0
      %v970 = vadd.f32 %v881, %v969
      %971 = vmatmul.bf16.gmra.mxu0 %v716
      %v972 = vpop.f32.mrf.mxu0
      %v973 = vadd.f32 %v884, %v972
      %v974 = vpop.f32.mrf.mxu0
      %v975 = vadd.f32 %v886, %v974
      %976 = vmatmul.bf16.gmra.mxu0 %v719
      %v977 = vpop.f32.mrf.mxu0
      %v978 = vadd.f32 %v889, %v977
      %v979 = vpop.f32.mrf.mxu0
      %v980 = vadd.f32 %v891, %v979
      %981 = vmatmul.bf16.gmra.mxu0 %v722
      %v982 = vpop.f32.mrf.mxu0
      %v983 = vadd.f32 %v894, %v982
      %v984 = vpop.f32.mrf.mxu0
      %v985 = vadd.f32 %v896, %v984
      %986 = vmatmul.bf16.gmra.mxu0 %v725
      %v987 = vpop.f32.mrf.mxu0
      %v988 = vadd.f32 %v899, %v987
      %v989 = vpop.f32.mrf.mxu0
      %v990 = vadd.f32 %v901, %v989
      %991 = vmatmul.bf16.gmra.mxu0 %v728
      %v992 = vpop.f32.mrf.mxu0
      %v993 = vadd.f32 %v904, %v992
      %v994 = vpop.f32.mrf.mxu0
      %v995 = vadd.f32 %v906, %v994
      %996 = vdwg.mxu0
      %v997 = vmax.f32 %v918, 0.0
      %v998 = vmax.f32 %v920, 0.0
      %v999 = vmax.f32 %v923, 0.0
      %v1000 = vmax.f32 %v925, 0.0
      %v1001 = vmax.f32 %v928, 0.0
      %v1002 = vmax.f32 %v930, 0.0
      %v1003 = vmax.f32 %v933, 0.0
      %v1004 = vmax.f32 %v935, 0.0
      %v1005 = vmax.f32 %v938, 0.0
      %v1006 = vmax.f32 %v940, 0.0
      %v1007 = vmax.f32 %v943, 0.0
      %v1008 = vmax.f32 %v945, 0.0
      %v1009 = vmax.f32 %v948, 0.0
      %v1010 = vmax.f32 %v950, 0.0
      %v1011 = vmax.f32 %v953, 0.0
      %v1012 = vmax.f32 %v955, 0.0
      %v1013 = vmax.f32 %v958, 0.0
      %v1014 = vmax.f32 %v960, 0.0
      %v1015 = vmax.f32 %v963, 0.0
      %v1016 = vmax.f32 %v965, 0.0
      %v1017 = vmax.f32 %v968, 0.0
      %v1018 = vmax.f32 %v970, 0.0
      %v1019 = vmax.f32 %v973, 0.0
      %v1020 = vmax.f32 %v975, 0.0
      %v1021 = vmax.f32 %v978, 0.0
      %v1022 = vmax.f32 %v980, 0.0
      %v1023 = vmax.f32 %v983, 0.0
      %v1024 = vmax.f32 %v985, 0.0
      %v1025 = vmax.f32 %v988, 0.0
      %v1026 = vmax.f32 %v990, 0.0
      %v1027 = vmax.f32 %v993, 0.0
      %v1028 = vmax.f32 %v995, 0.0
      %v1029 = vpack.c.bf16 %v997, %v997
      %v1030 = vpack.c.bf16 %v998, %v998
      %v1031 = vpack.c.bf16 %v999, %v999
      %v1032 = vpack.c.bf16 %v1000, %v1000
      %v1033 = vpack.c.bf16 %v1001, %v1001
      %v1034 = vpack.c.bf16 %v1002, %v1002
      %v1035 = vpack.c.bf16 %v1003, %v1003
      %v1036 = vpack.c.bf16 %v1004, %v1004
      %v1037 = vpack.c.bf16 %v1005, %v1005
      %v1038 = vpack.c.bf16 %v1006, %v1006
      %v1039 = vpack.c.bf16 %v1007, %v1007
      %v1040 = vpack.c.bf16 %v1008, %v1008
      %v1041 = vpack.c.bf16 %v1009, %v1009
      %v1042 = vpack.c.bf16 %v1010, %v1010
      %v1043 = vpack.c.bf16 %v1011, %v1011
      %v1044 = vpack.c.bf16 %v1012, %v1012
      %v1045 = vpack.c.bf16 %v1013, %v1013
      %v1046 = vpack.c.bf16 %v1014, %v1014
      %v1047 = vpack.c.bf16 %v1015, %v1015
      %v1048 = vpack.c.bf16 %v1016, %v1016
      %v1049 = vpack.c.bf16 %v1017, %v1017
      %v1050 = vpack.c.bf16 %v1018, %v1018
      %v1051 = vpack.c.bf16 %v1019, %v1019
      %v1052 = vpack.c.bf16 %v1020, %v1020
      %v1053 = vpack.c.bf16 %v1021, %v1021
      %v1054 = vpack.c.bf16 %v1022, %v1022
      %v1055 = vpack.c.bf16 %v1023, %v1023
      %v1056 = vpack.c.bf16 %v1024, %v1024
      %v1057 = vpack.c.bf16 %v1025, %v1025
      %v1058 = vpack.c.bf16 %v1026, %v1026
      %v1059 = vpack.c.bf16 %v1027, %v1027
      %v1060 = vpack.c.bf16 %v1028, %v1028
      %vm1061 = vcmask 519168
      %1062 = vst.msk [vmem:[%s226] sm:$0xf] %vm1061, %v1029
      %1063 = vst.msk [vmem:[%s226 + $0x4] sm:$0xf] %vm1061, %v1030
      %1064 = vst.msk [vmem:[%s226 + $0x8] sm:$0xf] %vm1061, %v1031
      %1065 = vst.msk [vmem:[%s226 + $0xc] sm:$0xf] %vm1061, %v1032
      %1066 = vst.msk [vmem:[%s226 + $0x10] sm:$0xf] %vm1061, %v1033
      %1067 = vst.msk [vmem:[%s226 + $0x14] sm:$0xf] %vm1061, %v1034
      %1068 = vst.msk [vmem:[%s226 + $0x18] sm:$0xf] %vm1061, %v1035
      %1069 = vst.msk [vmem:[%s226 + $0x1c] sm:$0xf] %vm1061, %v1036
      %1070 = vst.msk [vmem:[%s226 + $0x20] sm:$0xf] %vm1061, %v1037
      %1071 = vst.msk [vmem:[%s226 + $0x24] sm:$0xf] %vm1061, %v1038
      %1072 = vst.msk [vmem:[%s226 + $0x28] sm:$0xf] %vm1061, %v1039
      %1073 = vst.msk [vmem:[%s226 + $0x2c] sm:$0xf] %vm1061, %v1040
      %1074 = vst.msk [vmem:[%s226 + $0x30] sm:$0xf] %vm1061, %v1041
      %1075 = vst.msk [vmem:[%s226 + $0x34] sm:$0xf] %vm1061, %v1042
      %1076 = vst.msk [vmem:[%s226 + $0x38] sm:$0xf] %vm1061, %v1043
      %1077 = vst.msk [vmem:[%s226 + $0x3c] sm:$0xf] %vm1061, %v1044
      %1078 = vst.msk [vmem:[%s226 + $0x40] sm:$0xf] %vm1061, %v1045
      %1079 = vst.msk [vmem:[%s226 + $0x44] sm:$0xf] %vm1061, %v1046
      %1080 = vst.msk [vmem:[%s226 + $0x48] sm:$0xf] %vm1061, %v1047
      %1081 = vst.msk [vmem:[%s226 + $0x4c] sm:$0xf] %vm1061, %v1048
      %1082 = vst.msk [vmem:[%s226 + $0x50] sm:$0xf] %vm1061, %v1049
      %1083 = vst.msk [vmem:[%s226 + $0x54] sm:$0xf] %vm1061, %v1050
      %1084 = vst.msk [vmem:[%s226 + $0x58] sm:$0xf] %vm1061, %v1051
      %1085 = vst.msk [vmem:[%s226 + $0x5c] sm:$0xf] %vm1061, %v1052
      %1086 = vst.msk [vmem:[%s226 + $0x60] sm:$0xf] %vm1061, %v1053
      %1087 = vst.msk [vmem:[%s226 + $0x64] sm:$0xf] %vm1061, %v1054
      %1088 = vst.msk [vmem:[%s226 + $0x68] sm:$0xf] %vm1061, %v1055
      %1089 = vst.msk [vmem:[%s226 + $0x6c] sm:$0xf] %vm1061, %v1056
      %1090 = vst.msk [vmem:[%s226 + $0x70] sm:$0xf] %vm1061, %v1057
      %1091 = vst.msk [vmem:[%s226 + $0x74] sm:$0xf] %vm1061, %v1058
      %1092 = vst.msk [vmem:[%s226 + $0x78] sm:$0xf] %vm1061, %v1059
      %1093 = vst.msk [vmem:[%s226 + $0x7c] sm:$0xf] %vm1061, %v1060
      %s1094 = smul.u32 32, %s18
      %p1095 = scmp.lt.s32.totalorder %s1094, 63
      %s1096 = scalar_select %p1095, %s1094, 63
      %p1097 = scmp.lt.s32.totalorder %s19, 0
      %s1098 = scalar_select %p1097, %s19, 0
      %s1099 = sadd.s32 %s1098, %s1096
      %s1100 = smul.addr %s1099, 4
      %s1101 = scalar_lea.vmem %s3, %s1100
      // Predicated region
      $region33: #{generator1_forward.8} parent=31 // pred_check
        %p1102 = pneg %p124
      $region34: #{generator1_forward.8} parent=31 // pred_check_branch
        %1104 = sbr.rel (%p1102) target = $region36
      $region35: #{generator1_forward.8} parent=31 // pred_region
        %s1105 = smul.u32 32, %s18
      $region36: #{generator1_forward.8} parent=31 // pred_fallthru
        _
    $region32: #{generator1_forward.8} parent=5 // pred_fallthru
      _
    %p1106 = scmp.le.s32.totalorder 2, %s9
    // Predicated region
    $region37: #{generator1_forward.8} parent=5 // pred_check
      %p1107 = pneg %p1106
    $region38: #{generator1_forward.8} parent=5 // pred_check_branch
      %1109 = sbr.rel (%p1107) target = $region40
    $region39: #{generator1_forward.8} parent=5 // pred_region
      %s1110 = ssub.s32 %s9, 2
      // Predicated region
      $region41: #{generator1_forward.8} parent=39 // pred_check
        %p1111 = pneg %p130
      $region42: #{generator1_forward.8} parent=39 // pred_check_branch
        %1113 = sbr.rel (%p1111) target = $region44
      $region43: #{generator1_forward.8} parent=39 // pred_region
        %s1114 = smul.u32 32, %s20
        %p1115 = scmp.lt.s32.totalorder %s1114, 63
        %s1116 = scalar_select %p1115, %s1114, 63
        %p1117 = scmp.lt.s32.totalorder %s21, 0
        %s1118 = scalar_select %p1117, %s21, 0
        %s1119 = sadd.s32 %s1118, %s1116
        %s1120 = smul.addr %s1119, 4
        %s1121 = scalar_lea.vmem %s3, %s1120
      $region44: #{generator1_forward.8} parent=39 // pred_fallthru
        _
    $region40: #{generator1_forward.8} parent=5 // pred_fallthru
      _
  $region6: #{generator1_forward.8} parent=0 // loop_footer
    %s13 = sadd.s32 1, %s9
  $region7: #{generator1_forward.8} parent=0 // loop_footer_branch
    %8 = sbr.rel target = $region3
  $region8: #{generator1_forward.8} parent=0 // loop_exit
    _

// kernel: generator1_forward.9
$region0: #{generator1_forward.9}
  #allocation0 [shape = 'u32[]', space=smem, size = 0x4, offset = 0x4, fixed_abs, tag = 'smem constant byte address 0x4 - core index']
  #allocation1 [shape = 'u32[72,128]{1,0:T(1,128)}', space=vmem, size = 0x9000, scoped, tag = 'internal scratch']
  %s0 = inlined_call_operand.vmem [shape: bf16[12,144], index: 0, kind: input, shape index: {}]
  %s1 = inlined_call_operand.vmem [shape: bf16[144,2048], index: 1, kind: input, shape index: {}]
  %s2 = inlined_call_operand.vmem [shape: f32[12,1], index: 2, kind: input, shape index: {}]
  %s3 = inlined_call_operand.vmem [shape: f32[12,2048], index: 3, kind: output, shape index: {}]
  %s4 = sld [smem:[#allocation0]]
  $region87: #{generator1_forward.9} parent=0
    _
  %s6 = ssub.s32 1, %s4
  %s7 = scalar_select 0, %s6, %s4
  $region1: #{generator1_forward.9} parent=0
    #allocation2 [shape = 'u8[589824]{0}', space=vmem, size = 0x90000, scoped, tag = 'input window, operand 1']
    #allocation3 [shape = 'u8[131072]{0}', space=vmem, size = 0x20000, scoped, tag = 'output window, operand 0']
    loop: start=0, step=1, limit=4
    $region2: #{generator1_forward.9} parent=1 // loop_pre_header
      _
    $region3: #{generator1_forward.9} parent=1 // loop_header
      %s9 = sphi 0, %s13
      %p10 = scmp.ge.s32.totalorder %s9, 4
      %s16 = sphi 0, %s28
      %s17 = sphi 0, %s24
      %s18 = sphi 0, %s16
      %s19 = sphi 0, %s17
      %s20 = sphi 0, %s18
      %s21 = sphi 0, %s19
      %s31 = sphi 0, %s33
      %s34 = sphi 0, %s31
      %s35 = sphi 0, %s34
      %s51 = sphi 0, %s35
      %s57 = sphi 0, %s59
      %s60 = sphi 0, %s57
      %s61 = sphi 0, %s60
      %s77 = sphi 0, %s61
      %s83 = sphi 0, %s85
      %s86 = sphi 0, %s83
      %s87 = sphi 0, %s86
      %s103 = sphi 0, %s87
      %s111 = sphi 0, %s113
      %s114 = sphi 0, %s111
      %s115 = sphi 0, %s114
      %s131 = sphi 0, %s115
    $region4: #{generator1_forward.9} parent=1 // loop_header_branch
      %12 = sbr.rel (%p10) target = $region8
    $region5: #{generator1_forward.9} parent=1 // loop_body
      %s14 = ssub.s32 %s9, 1
      %s15 = ssub.s32 %s9, 2
      %s22 = sadd.s32 1, %s17
      %p23 = scmp.ge.s32.totalorder %s22, 2
      %s24 = scalar_select %p23, 0, %s22
      %s25 = sadd.s32 1, %s16
      %s26 = scalar_select %p23, %s25, %s16
      %p27 = scmp.ge.s32.totalorder %s26, 1
      %s28 = scalar_select %p27, 0, %s26
      %s29 = ssub.s32 %s16, %s28
      %p30 = scmp.eq.s32.totalorder %s29, 0
      %s32 = sadd.s32 %s31, 1
      %s33 = scalar_select %p30, %s31, %s32
      %p36 = pneg %p30
      %p37 = scmp.eq.s32.totalorder %s9, 1
      %p38 = por %p36, %p37
      %p39 = scmp.ne.s32.totalorder %s31, %s34
      %p40 = scmp.eq.s32.totalorder %s9, 0
      %p41 = por %p39, %p40
      %p42 = scmp.ne.s32.totalorder %s31, %s34
      %p43 = scmp.eq.s32.totalorder %s14, 1
      %p44 = por %p42, %p43
      %p45 = scmp.ne.s32.totalorder %s34, %s35
      %p46 = scmp.eq.s32.totalorder %s14, 0
      %p47 = por %p45, %p46
      %p48 = scmp.ne.s32.totalorder %s34, %s35
      %p49 = scmp.eq.s32.totalorder %s15, 1
      %p50 = por %p48, %p49
      %p52 = scmp.ne.s32.totalorder %s35, %s51
      %p53 = scmp.eq.s32.totalorder %s15, 0
      %p54 = por %p52, %p53
      %s55 = ssub.s32 %s17, %s24
      %p56 = scmp.eq.s32.totalorder %s55, 0
      %s58 = sadd.s32 %s57, 1
      %s59 = scalar_select %p56, %s57, %s58
      %p62 = pneg %p56
      %p63 = scmp.eq.s32.totalorder %s9, 1
      %p64 = por %p62, %p63
      %p65 = scmp.ne.s32.totalorder %s57, %s60
      %p66 = scmp.eq.s32.totalorder %s9, 0
      %p67 = por %p65, %p66
      %p68 = scmp.ne.s32.totalorder %s57, %s60
      %p69 = scmp.eq.s32.totalorder %s14, 1
      %p70 = por %p68, %p69
      %p71 = scmp.ne.s32.totalorder %s60, %s61
      %p72 = scmp.eq.s32.totalorder %s14, 0
      %p73 = por %p71, %p72
      %p74 = scmp.ne.s32.totalorder %s60, %s61
      %p75 = scmp.eq.s32.totalorder %s15, 1
      %p76 = por %p74, %p75
      %p78 = scmp.ne.s32.totalorder %s61, %s77
      %p79 = scmp.eq.s32.totalorder %s15, 0
      %p80 = por %p78, %p79
      %s81 = ssub.s32 %s16, %s28
      %p82 = scmp.eq.s32.totalorder %s81, 0
      %s84 = sadd.s32 %s83, 1
      %s85 = scalar_select %p82, %s83, %s84
      %p88 = pneg %p82
      %p89 = scmp.eq.s32.totalorder %s9, 1
      %p90 = por %p88, %p89
      %p91 = scmp.ne.s32.totalorder %s83, %s86
      %p92 = scmp.eq.s32.totalorder %s9, 0
      %p93 = por %p91, %p92
      %p94 = scmp.ne.s32.totalorder %s83, %s86
      %p95 = scmp.eq.s32.totalorder %s14, 1
      %p96 = por %p94, %p95
      %p97 = scmp.ne.s32.totalorder %s86, %s87
      %p98 = scmp.eq.s32.totalorder %s14, 0
      %p99 = por %p97, %p98
      %p100 = scmp.ne.s32.totalorder %s86, %s87
      %p101 = scmp.eq.s32.totalorder %s15, 1
      %p102 = por %p100, %p101
      %p104 = scmp.ne.s32.totalorder %s87, %s103
      %p105 = scmp.eq.s32.totalorder %s15, 0
      %p106 = por %p104, %p105
      %s107 = ssub.s32 %s16, %s28
      %s108 = ssub.s32 %s17, %s24
      %s109 = sor.u32 %s107, %s108
      %p110 = scmp.eq.s32.totalorder %s109, 0
      %s112 = sadd.s32 %s111, 1
      %s113 = scalar_select %p110, %s111, %s112
      %p116 = pneg %p110
      %p117 = scmp.eq.s32.totalorder %s9, 1
      %p118 = por %p116, %p117
      %p119 = scmp.ne.s32.totalorder %s111, %s114
      %p120 = scmp.eq.s32.totalorder %s9, 0
      %p121 = por %p119, %p120
      %p122 = scmp.ne.s32.totalorder %s111, %s114
      %p123 = scmp.eq.s32.totalorder %s14, 1
      %p124 = por %p122, %p123
      %p125 = scmp.ne.s32.totalorder %s114, %s115
      %p126 = scmp.eq.s32.totalorder %s14, 0
      %p127 = por %p125, %p126
      %p128 = scmp.ne.s32.totalorder %s114, %s115
      %p129 = scmp.eq.s32.totalorder %s15, 1
      %p130 = por %p128, %p129
      %p132 = scmp.ne.s32.totalorder %s115, %s131
      %p133 = scmp.eq.s32.totalorder %s15, 0
      %p134 = por %p132, %p133
      %p135 = scmp.le.s32.totalorder 1, %s9
      %p136 = scmp.lt.s32.totalorder %s9, 3
      %p137 = pnand %p135, %p136
      %p138 = pneg %p137
      // Predicated region
      $region9: #{generator1_forward.9} parent=5 // pred_check
        _
      $region10: #{generator1_forward.9} parent=5 // pred_check_branch
        %140 = sbr.rel (%p137) target = $region12
      $region11: #{generator1_forward.9} parent=5 // pred_region
        %s141 = ssub.s32 %s9, 1
        // Predicated region
        $region13: #{generator1_forward.9} parent=11 // pred_check
          %p142 = pneg %p47
        $region14: #{generator1_forward.9} parent=11 // pred_check_branch
          %144 = sbr.rel (%p142) target = $region16
        $region15: #{generator1_forward.9} parent=11 // pred_region
          %s145 = smul.u32 2, %s18
          %p146 = scmp.lt.s32.totalorder %s145, 1
          %s147 = scalar_select %p146, %s145, 1
          %s148 = smul.addr %s147, 2
          %s149 = smul.addr %s148, 4
          %s150 = scalar_lea.vmem %s0, %s149
          %s151 = smul.u32 2, %s18
        $region16: #{generator1_forward.9} parent=11 // pred_fallthru
          _
        // Predicated region
        $region17: #{generator1_forward.9} parent=11 // pred_check
          %p152 = pneg %p99
        $region18: #{generator1_forward.9} parent=11 // pred_check_branch
          %154 = sbr.rel (%p152) target = $region20
        $region19: #{generator1_forward.9} parent=11 // pred_region
          %s155 = smul.u32 2, %s18
          %p156 = scmp.lt.s32.totalorder %s155, 1
          %s157 = scalar_select %p156, %s155, 1
          %s158 = smul.addr %s157, 8
          %s159 = scalar_lea.vmem %s2, %s158
          %s160 = smul.u32 2, %s18
        $region20: #{generator1_forward.9} parent=11 // pred_fallthru
          _
      $region12: #{generator1_forward.9} parent=5 // pred_fallthru
        _
      %p161 = scmp.lt.s32.totalorder %s9, 2
      // Predicated region
      $region21: #{generator1_forward.9} parent=5 // pred_check
        %p162 = pneg %p161
      $region22: #{generator1_forward.9} parent=5 // pred_check_branch
        %164 = sbr.rel (%p162) target = $region24
      $region23: #{generator1_forward.9} parent=5 // pred_region
        // Predicated region
        $region25: #{generator1_forward.9} parent=23 // pred_check
          %p165 = pneg %p67
        $region26: #{generator1_forward.9} parent=23 // pred_check_branch
          %167 = sbr.rel (%p165) target = $region28
        $region27: #{generator1_forward.9} parent=23 // pred_region
          %s168 = sand.u32 %s57, 1
          %s169 = sand.u32 %s57, 1
          %s170 = smul.addr %s169, 576
          %s171 = scalar_lea.vmem [#allocation2], %s170
          %s172 = smul.u32 8, %s17
          %s173 = smul.addr %s172, 4
          %s174 = scalar_lea.vmem %s1, %s173
          // Predicated region
          $region29: #{generator1_forward.9} parent=27 // pred_check
            _
          $region30: #{generator1_forward.9} parent=27 // pred_check_branch
            %176 = sbr.rel (0) target = $region32
          $region31: #{generator1_forward.9} parent=27 // pred_region
            // Predicated region
            $region33: #{generator1_forward.9} parent=31 // pred_check
              _
            $region34: #{generator1_forward.9} parent=31 // pred_check_branch
              %178 = sbr.rel (0) target = $region36
            $region35: #{generator1_forward.9} parent=31 // pred_region
              loop: start=0, step=1, limit=1
              $region37: #{generator1_forward.9} parent=35 // loop_pre_header
                _
              $region38: #{generator1_forward.9} parent=35 // loop_header
                %s180 = sphi 0, %s184
                %p181 = scmp.ge.s32.totalorder %s180, 1
                %s185 = sphi %s174, %s174
                %s186 = sphi %s171, %s171
              $region39: #{generator1_forward.9} parent=35 // loop_header_branch
                %183 = sbr.rel (%p181) target = $region43
              $region40: #{generator1_forward.9} parent=35 // loop_body
                %v187 = vld [vmem:[%s185] sm:$0xff]
                %188 = vst [vmem:[%s186] sm:$0xff] %v187
                %v189 = vld [vmem:[%s185 + $0x8] sm:$0xff]
                %190 = vst [vmem:[%s186 + $0x8] sm:$0xff] %v189
                %v191 = vld [vmem:[%s185 + $0x10] sm:$0xff]
                %192 = vst [vmem:[%s186 + $0x10] sm:$0xff] %v191
                %v193 = vld [vmem:[%s185 + $0x18] sm:$0xff]
                %194 = vst [vmem:[%s186 + $0x18] sm:$0xff] %v193
                %v195 = vld [vmem:[%s185 + $0x40] sm:$0xff]
                %196 = vst [vmem:[%s186 + $0x20] sm:$0xff] %v195
                %v197 = vld [vmem:[%s185 + $0x48] sm:$0xff]
                %198 = vst [vmem:[%s186 + $0x28] sm:$0xff] %v197
                %v199 = vld [vmem:[%s185 + $0x50] sm:$0xff]
                %200 = vst [vmem:[%s186 + $0x30] sm:$0xff] %v199
                %v201 = vld [vmem:[%s185 + $0x58] sm:$0xff]
                %202 = vst [vmem:[%s186 + $0x38] sm:$0xff] %v201
                %v203 = vld [vmem:[%s185 + $0x80] sm:$0xff]
                %204 = vst [vmem:[%s186 + $0x40] sm:$0xff] %v203
                %v205 = vld [vmem:[%s185 + $0x88] sm:$0xff]
                %206 = vst [vmem:[%s186 + $0x48] sm:$0xff] %v205
                %v207 = vld [vmem:[%s185 + $0x90] sm:$0xff]
                %208 = vst [vmem:[%s186 + $0x50] sm:$0xff] %v207
                %v209 = vld [vmem:[%s185 + $0x98] sm:$0xff]
                %210 = vst [vmem:[%s186 + $0x58] sm:$0xff] %v209
                %v211 = vld [vmem:[%s185 + $0xc0] sm:$0xff]
                %212 = vst [vmem:[%s186 + $0x60] sm:$0xff] %v211
                %v213 = vld [vmem:[%s185 + $0xc8] sm:$0xff]
                %214 = vst [vmem:[%s186 + $0x68] sm:$0xff] %v213
                %v215 = vld [vmem:[%s185 + $0xd0] sm:$0xff]
                %216 = vst [vmem:[%s186 + $0x70] sm:$0xff] %v215
                %v217 = vld [vmem:[%s185 + $0xd8] sm:$0xff]
                %218 = vst [vmem:[%s186 + $0x78] sm:$0xff] %v217
                %v219 = vld [vmem:[%s185 + $0x100] sm:$0xff]
                %220 = vst [vmem:[%s186 + $0x80] sm:$0xff] %v219
                %v221 = vld [vmem:[%s185 + $0x108] sm:$0xff]
                %222 = vst [vmem:[%s186 + $0x88] sm:$0xff] %v221
                %v223 = vld [vmem:[%s185 + $0x110] sm:$0xff]
                %224 = vst [vmem:[%s186 + $0x90] sm:$0xff] %v223
                %v225 = vld [vmem:[%s185 + $0x118] sm:$0xff]
                %226 = vst [vmem:[%s186 + $0x98] sm:$0xff] %v225
                %v227 = vld [vmem:[%s185 + $0x140] sm:$0xff]
                %228 = vst [vmem:[%s186 + $0xa0] sm:$0xff] %v227
                %v229 = vld [vmem:[%s185 + $0x148] sm:$0xff]
                %230 = vst [vmem:[%s186 + $0xa8] sm:$0xff] %v229
                %v231 = vld [vmem:[%s185 + $0x150] sm:$0xff]
                %232 = vst [vmem:[%s186 + $0xb0] sm:$0xff] %v231
                %v233 = vld [vmem:[%s185 + $0x158] sm:$0xff]
                %234 = vst [vmem:[%s186 + $0xb8] sm:$0xff] %v233
                %v235 = vld [vmem:[%s185 + $0x180] sm:$0xff]
                %236 = vst [vmem:[%s186 + $0xc0] sm:$0xff] %v235
                %v237 = vld [vmem:[%s185 + $0x188] sm:$0xff]
                %238 = vst [vmem:[%s186 + $0xc8] sm:$0xff] %v237
                %v239 = vld [vmem:[%s185 + $0x190] sm:$0xff]
                %240 = vst [vmem:[%s186 + $0xd0] sm:$0xff] %v239
                %v241 = vld [vmem:[%s185 + $0x198] sm:$0xff]
                %242 = vst [vmem:[%s186 + $0xd8] sm:$0xff] %v241
                %v243 = vld [vmem:[%s185 + $0x1c0] sm:$0xff]
                %244 = vst [vmem:[%s186 + $0xe0] sm:$0xff] %v243
                %v245 = vld [vmem:[%s185 + $0x1c8] sm:$0xff]
                %246 = vst [vmem:[%s186 + $0xe8] sm:$0xff] %v245
                %v247 = vld [vmem:[%s185 + $0x1d0] sm:$0xff]
                %248 = vst [vmem:[%s186 + $0xf0] sm:$0xff] %v247
                %v249 = vld [vmem:[%s185 + $0x1d8] sm:$0xff]
                %250 = vst [vmem:[%s186 + $0xf8] sm:$0xff] %v249
                %v251 = vld [vmem:[%s185 + $0x200] sm:$0xff]
                %252 = vst [vmem:[%s186 + $0x100] sm:$0xff] %v251
                %v253 = vld [vmem:[%s185 + $0x208] sm:$0xff]
                %254 = vst [vmem:[%s186 + $0x108] sm:$0xff] %v253
                %v255 = vld [vmem:[%s185 + $0x210] sm:$0xff]
                %256 = vst [vmem:[%s186 + $0x110] sm:$0xff] %v255
                %v257 = vld [vmem:[%s185 + $0x218] sm:$0xff]
                %258 = vst [vmem:[%s186 + $0x118] sm:$0xff] %v257
                %v259 = vld [vmem:[%s185 + $0x240] sm:$0xff]
                %260 = vst [vmem:[%s186 + $0x120] sm:$0xff] %v259
                %v261 = vld [vmem:[%s185 + $0x248] sm:$0xff]
                %262 = vst [vmem:[%s186 + $0x128] sm:$0xff] %v261
                %v263 = vld [vmem:[%s185 + $0x250] sm:$0xff]
                %264 = vst [vmem:[%s186 + $0x130] sm:$0xff] %v263
                %v265 = vld [vmem:[%s185 + $0x258] sm:$0xff]
                %266 = vst [vmem:[%s186 + $0x138] sm:$0xff] %v265
                %v267 = vld [vmem:[%s185 + $0x280] sm:$0xff]
                %268 = vst [vmem:[%s186 + $0x140] sm:$0xff] %v267
                %v269 = vld [vmem:[%s185 + $0x288] sm:$0xff]
                %270 = vst [vmem:[%s186 + $0x148] sm:$0xff] %v269
                %v271 = vld [vmem:[%s185 + $0x290] sm:$0xff]
                %272 = vst [vmem:[%s186 + $0x150] sm:$0xff] %v271
                %v273 = vld [vmem:[%s185 + $0x298] sm:$0xff]
                %274 = vst [vmem:[%s186 + $0x158] sm:$0xff] %v273
                %v275 = vld [vmem:[%s185 + $0x2c0] sm:$0xff]
                %276 = vst [vmem:[%s186 + $0x160] sm:$0xff] %v275
                %v277 = vld [vmem:[%s185 + $0x2c8] sm:$0xff]
                %278 = vst [vmem:[%s186 + $0x168] sm:$0xff] %v277
                %v279 = vld [vmem:[%s185 + $0x2d0] sm:$0xff]
                %280 = vst [vmem:[%s186 + $0x170] sm:$0xff] %v279
                %v281 = vld [vmem:[%s185 + $0x2d8] sm:$0xff]
                %282 = vst [vmem:[%s186 + $0x178] sm:$0xff] %v281
                %v283 = vld [vmem:[%s185 + $0x300] sm:$0xff]
                %284 = vst [vmem:[%s186 + $0x180] sm:$0xff] %v283
                %v285 = vld [vmem:[%s185 + $0x308] sm:$0xff]
                %286 = vst [vmem:[%s186 + $0x188] sm:$0xff] %v285
                %v287 = vld [vmem:[%s185 + $0x310] sm:$0xff]
                %288 = vst [vmem:[%s186 + $0x190] sm:$0xff] %v287
                %v289 = vld [vmem:[%s185 + $0x318] sm:$0xff]
                %290 = vst [vmem:[%s186 + $0x198] sm:$0xff] %v289
                %v291 = vld [vmem:[%s185 + $0x340] sm:$0xff]
                %292 = vst [vmem:[%s186 + $0x1a0] sm:$0xff] %v291
                %v293 = vld [vmem:[%s185 + $0x348] sm:$0xff]
                %294 = vst [vmem:[%s186 + $0x1a8] sm:$0xff] %v293
                %v295 = vld [vmem:[%s185 + $0x350] sm:$0xff]
                %296 = vst [vmem:[%s186 + $0x1b0] sm:$0xff] %v295
                %v297 = vld [vmem:[%s185 + $0x358] sm:$0xff]
                %298 = vst [vmem:[%s186 + $0x1b8] sm:$0xff] %v297
                %v299 = vld [vmem:[%s185 + $0x380] sm:$0xff]
                %300 = vst [vmem:[%s186 + $0x1c0] sm:$0xff] %v299
                %v301 = vld [vmem:[%s185 + $0x388] sm:$0xff]
                %302 = vst [vmem:[%s186 + $0x1c8] sm:$0xff] %v301
                %v303 = vld [vmem:[%s185 + $0x390] sm:$0xff]
                %304 = vst [vmem:[%s186 + $0x1d0] sm:$0xff] %v303
                %v305 = vld [vmem:[%s185 + $0x398] sm:$0xff]
                %306 = vst [vmem:[%s186 + $0x1d8] sm:$0xff] %v305
                %v307 = vld [vmem:[%s185 + $0x3c0] sm:$0xff]
                %308 = vst [vmem:[%s186 + $0x1e0] sm:$0xff] %v307
                %v309 = vld [vmem:[%s185 + $0x3c8] sm:$0xff]
                %310 = vst [vmem:[%s186 + $0x1e8] sm:$0xff] %v309
                %v311 = vld [vmem:[%s185 + $0x3d0] sm:$0xff]
                %312 = vst [vmem:[%s186 + $0x1f0] sm:$0xff] %v311
                %v313 = vld [vmem:[%s185 + $0x3d8] sm:$0xff]
                %314 = vst [vmem:[%s186 + $0x1f8] sm:$0xff] %v313
                %v315 = vld [vmem:[%s185 + $0x400] sm:$0xff]
                %316 = vst [vmem:[%s186 + $0x200] sm:$0xff] %v315
                %v317 = vld [vmem:[%s185 + $0x408] sm:$0xff]
                %318 = vst [vmem:[%s186 + $0x208] sm:$0xff] %v317
                %v319 = vld [vmem:[%s185 + $0x410] sm:$0xff]
                %320 = vst [vmem:[%s186 + $0x210] sm:$0xff] %v319
                %v321 = vld [vmem:[%s185 + $0x418] sm:$0xff]
                %322 = vst [vmem:[%s186 + $0x218] sm:$0xff] %v321
                %v323 = vld [vmem:[%s185 + $0x440] sm:$0xff]
                %324 = vst [vmem:[%s186 + $0x220] sm:$0xff] %v323
                %v325 = vld [vmem:[%s185 + $0x448] sm:$0xff]
                %326 = vst [vmem:[%s186 + $0x228] sm:$0xff] %v325
                %v327 = vld [vmem:[%s185 + $0x450] sm:$0xff]
                %328 = vst [vmem:[%s186 + $0x230] sm:$0xff] %v327
                %v329 = vld [vmem:[%s185 + $0x458] sm:$0xff]
                %330 = vst [vmem:[%s186 + $0x238] sm:$0xff] %v329
              $region41: #{generator1_forward.9} parent=35 // loop_footer
                %s184 = sadd.s32 1, %s180
              $region42: #{generator1_forward.9} parent=35 // loop_footer_branch
                %179 = sbr.rel target = $region38
              $region43: #{generator1_forward.9} parent=35 // loop_exit
                _
            $region36: #{generator1_forward.9} parent=31 // pred_fallthru
              _
            // Predicated region
            $region44: #{generator1_forward.9} parent=31 // pred_check
              _
            $region45: #{generator1_forward.9} parent=31 // pred_check_branch
              %332 = sbr.rel target = $region47
            $region46: #{generator1_forward.9} parent=31 // pred_region
              _
            $region47: #{generator1_forward.9} parent=31 // pred_fallthru
              _
          $region32: #{generator1_forward.9} parent=27 // pred_fallthru
            _
          %333 = vnop
        $region28: #{generator1_forward.9} parent=23 // pred_fallthru
          _
      $region24: #{generator1_forward.9} parent=5 // pred_fallthru
        _
      %p334 = scmp.le.s32.totalorder 1, %s9
      %p335 = scmp.lt.s32.totalorder %s9, 3
      %p336 = pnand %p334, %p335
      %p337 = pneg %p336
      // Predicated region
      $region48: #{generator1_forward.9} parent=5 // pred_check
        _
      $region49: #{generator1_forward.9} parent=5 // pred_check_branch
        %339 = sbr.rel (%p336) target = $region51
      $region50: #{generator1_forward.9} parent=5 // pred_region
        %s340 = ssub.s32 %s9, 1
        %s341 = sand.u32 %s60, 1
        %s342 = sand.u32 %s60, 1
        %s343 = smul.addr %s342, 576
        %s344 = scalar_lea.vmem [#allocation2], %s343
        // Predicated region
        $region52: #{generator1_forward.9} parent=50 // pred_check
          %p345 = pneg %p73
        $region53: #{generator1_forward.9} parent=50 // pred_check_branch
          %347 = sbr.rel (%p345) target = $region55
        $region54: #{generator1_forward.9} parent=50 // pred_region
          _
        $region55: #{generator1_forward.9} parent=50 // pred_fallthru
          _
        %s348 = smul.u32 2, %s18
        %p349 = scmp.lt.s32.totalorder %s348, 1
        %s350 = scalar_select %p349, %s348, 1
        %s351 = smul.addr %s350, 2
        %s352 = smul.addr %s351, 4
        %s353 = scalar_lea.vmem %s0, %s352
        %p354 = pneg %p47
        %p355 = pneg %p44
        %s356 = sand.u32 %s60, 1
        %s357 = sand.u32 %s60, 1
        %s358 = smul.addr %s357, 576
        %s359 = scalar_lea.vmem [#allocation2], %s358
        %p360 = pneg %p73
        %p361 = pneg %p70
        %s362 = smul.u32 2, %s18
        %p363 = scmp.lt.s32.totalorder %s362, 1
        %s364 = scalar_select %p363, %s362, 1
        %s365 = smul.addr %s364, 8
        %s366 = scalar_lea.vmem %s2, %s365
        %p367 = pneg %p99
        %p368 = pneg %p96
        %p369 = pneg %p127
        %p370 = pneg %p124
        %s371 = sand.u32 %s114, 1
        %s372 = sand.u32 %s114, 1
        %s373 = smul.addr %s372, 128
        %s374 = scalar_lea.vmem [#allocation3], %s373
        %s375 = smul.u32 2, %s18
        %p376 = scmp.lt.s32.totalorder %s375, 1
        %s377 = scalar_select %p376, %s375, 1
        %s378 = smul.addr %s377, 2
        %s379 = smul.addr %s378, 4
        %s380 = scalar_lea.vmem %s0, %s379
        %s381 = smul.u32 2, %s18
        %s382 = smul.u32 8, %s19
        %s383 = smul.u32 2, %s18
        %p384 = scmp.lt.s32.totalorder %s383, 1
        %s385 = scalar_select %p384, %s383, 1
        %s386 = smul.addr %s385, 8
        %s387 = scalar_lea.vmem %s2, %s386
        %s388 = smul.u32 2, %s18
        %s389 = smul.u32 2, %s18
        %s390 = smul.u32 8, %s19
        %v392 = vld [vmem:[%s380] sm:$0xff]
        %v393 = vld [vmem:[%s380 + $0x8] sm:$0x33]
        %v394 = vld [vmem:[%s344] sm:$0xff]
        %v395 = vld [vmem:[%s344 + $0x8] sm:$0xff]
        %v396 = vld [vmem:[%s344 + $0x10] sm:$0xff]
        %v397 = vld [vmem:[%s344 + $0x18] sm:$0xff]
        %v398 = vld [vmem:[%s344 + $0x20] sm:$0xff]
        %v399 = vld [vmem:[%s344 + $0x28] sm:$0xff]
        %v400 = vld [vmem:[%s344 + $0x30] sm:$0xff]
        %v401 = vld [vmem:[%s344 + $0x38] sm:$0xff]
        %v402 = vld [vmem:[%s344 + $0x40] sm:$0xff]
        %v403 = vld [vmem:[%s344 + $0x48] sm:$0xff]
        %v404 = vld [vmem:[%s344 + $0x50] sm:$0xff]
        %v405 = vld [vmem:[%s344 + $0x58] sm:$0xff]
        %v406 = vld [vmem:[%s344 + $0x60] sm:$0xff]
        %v407 = vld [vmem:[%s344 + $0x68] sm:$0xff]
        %v408 = vld [vmem:[%s344 + $0x70] sm:$0xff]
        %v409 = vld [vmem:[%s344 + $0x78] sm:$0xff]
        %v410 = vld [vmem:[%s344 + $0x80] sm:$0xff]
        %v411 = vld [vmem:[%s344 + $0x88] sm:$0xff]
        %v412 = vld [vmem:[%s344 + $0x90] sm:$0xff]
        %v413 = vld [vmem:[%s344 + $0x98] sm:$0xff]
        %v414 = vld [vmem:[%s344 + $0xa0] sm:$0xff]
        %v415 = vld [vmem:[%s344 + $0xa8] sm:$0xff]
        %v416 = vld [vmem:[%s344 + $0xb0] sm:$0xff]
        %v417 = vld [vmem:[%s344 + $0xb8] sm:$0xff]
        %v418 = vld [vmem:[%s344 + $0xc0] sm:$0xff]
        %v419 = vld [vmem:[%s344 + $0xc8] sm:$0xff]
        %v420 = vld [vmem:[%s344 + $0xd0] sm:$0xff]
        %v421 = vld [vmem:[%s344 + $0xd8] sm:$0xff]
        %v422 = vld [vmem:[%s344 + $0xe0] sm:$0xff]
        %v423 = vld [vmem:[%s344 + $0xe8] sm:$0xff]
        %v424 = vld [vmem:[%s344 + $0xf0] sm:$0xff]
        %v425 = vld [vmem:[%s344 + $0xf8] sm:$0xff]
        %v426 = vld [vmem:[%s344 + $0x100] sm:$0xff]
        %v427 = vld [vmem:[%s344 + $0x108] sm:$0xff]
        %v428 = vld [vmem:[%s344 + $0x110] sm:$0xff]
        %v429 = vld [vmem:[%s344 + $0x118] sm:$0xff]
        %v430 = vld [vmem:[%s344 + $0x120] sm:$0xff]
        %v431 = vld [vmem:[%s344 + $0x128] sm:$0xff]
        %v432 = vld [vmem:[%s344 + $0x130] sm:$0xff]
        %v433 = vld [vmem:[%s344 + $0x138] sm:$0xff]
        %v434 = vld [vmem:[%s344 + $0x140] sm:$0xff]
        %v435 = vld [vmem:[%s344 + $0x148] sm:$0xff]
        %v436 = vld [vmem:[%s344 + $0x150] sm:$0xff]
        %v437 = vld [vmem:[%s344 + $0x158] sm:$0xff]
        %v438 = vld [vmem:[%s344 + $0x160] sm:$0xff]
        %v439 = vld [vmem:[%s344 + $0x168] sm:$0xff]
        %v440 = vld [vmem:[%s344 + $0x170] sm:$0xff]
        %v441 = vld [vmem:[%s344 + $0x178] sm:$0xff]
        %v442 = vld [vmem:[%s344 + $0x180] sm:$0xff]
        %v443 = vld [vmem:[%s344 + $0x188] sm:$0xff]
        %v444 = vld [vmem:[%s344 + $0x190] sm:$0xff]
        %v445 = vld [vmem:[%s344 + $0x198] sm:$0xff]
        %v446 = vld [vmem:[%s344 + $0x1a0] sm:$0xff]
        %v447 = vld [vmem:[%s344 + $0x1a8] sm:$0xff]
        %v448 = vld [vmem:[%s344 + $0x1b0] sm:$0xff]
        %v449 = vld [vmem:[%s344 + $0x1b8] sm:$0xff]
        %v450 = vld [vmem:[%s344 + $0x1c0] sm:$0xff]
        %v451 = vld [vmem:[%s344 + $0x1c8] sm:$0xff]
        %v452 = vld [vmem:[%s344 + $0x1d0] sm:$0xff]
        %v453 = vld [vmem:[%s344 + $0x1d8] sm:$0xff]
        %v454 = vld [vmem:[%s344 + $0x1e0] sm:$0xff]
        %v455 = vld [vmem:[%s344 + $0x1e8] sm:$0xff]
        %v456 = vld [vmem:[%s344 + $0x1f0] sm:$0xff]
        %v457 = vld [vmem:[%s344 + $0x1f8] sm:$0xff]
        %v458 = vld [vmem:[%s344 + $0x200] sm:$0xff]
        %v459 = vld [vmem:[%s344 + $0x208] sm:$0xff]
        %v460 = vld [vmem:[%s344 + $0x210] sm:$0xff]
        %v461 = vld [vmem:[%s344 + $0x218] sm:$0xff]
        %v462 = vld [vmem:[%s344 + $0x220] sm:$0xff]
        %v463 = vld [vmem:[%s344 + $0x228] sm:$0xff]
        %v464 = vld [vmem:[%s344 + $0x230] sm:$0xff]
        %v465 = vld [vmem:[%s344 + $0x238] sm:$0xff]
        %v466 = vld [vmem:[%s387] sm:$0xff]
        %v467 = vld [vmem:[%s387 + $0x8] sm:$0xf]
        %469 = vset.pattern.permute.xlu0 0
        %470 = vperm.xlu0 %469, %v466
        %v471 = vpop.permute.xlu0 %470
        %474 = vset.pattern.permute.xlu0 0
        %475 = vperm.xlu0 %474, %v467
        %v476 = vpop.permute.xlu0 %475
        %v480 = vunpack.c.l.b16 %v392
        %v481 = vunpack.c.h.b16 %v392
        %v482 = vunpack.c.l.b16 %v393
        %v483 = vunpack.c.h.b16 %v393
        %v484 = vpack.c.b16 %v482, %v480
        %v485 = vpack.c.b16 %v483, %v481
        %v559 = vunpack.c.l.b16 %v394
        %v560 = vunpack.c.h.b16 %v394
        %v561 = vunpack.c.l.b16 %v395
        %v562 = vunpack.c.h.b16 %v395
        %v563 = vunpack.c.l.b16 %v396
        %v564 = vunpack.c.h.b16 %v396
        %v565 = vunpack.c.l.b16 %v397
        %v566 = vunpack.c.h.b16 %v397
        %v567 = vunpack.c.l.b16 %v398
        %v568 = vunpack.c.h.b16 %v398
        %v569 = vunpack.c.l.b16 %v399
        %v570 = vunpack.c.h.b16 %v399
        %v571 = vunpack.c.l.b16 %v400
        %v572 = vunpack.c.h.b16 %v400
        %v573 = vunpack.c.l.b16 %v401
        %v574 = vunpack.c.h.b16 %v401
        %v575 = vunpack.c.l.b16 %v402
        %v576 = vunpack.c.h.b16 %v402
        %v577 = vunpack.c.l.b16 %v403
        %v578 = vunpack.c.h.b16 %v403
        %v579 = vunpack.c.l.b16 %v404
        %v580 = vunpack.c.h.b16 %v404
        %v581 = vunpack.c.l.b16 %v405
        %v582 = vunpack.c.h.b16 %v405
        %v583 = vunpack.c.l.b16 %v406
        %v584 = vunpack.c.h.b16 %v406
        %v585 = vunpack.c.l.b16 %v407
        %v586 = vunpack.c.h.b16 %v407
        %v587 = vunpack.c.l.b16 %v408
        %v588 = vunpack.c.h.b16 %v408
        %v589 = vunpack.c.l.b16 %v409
        %v590 = vunpack.c.h.b16 %v409
        %v591 = vunpack.c.l.b16 %v410
        %v592 = vunpack.c.h.b16 %v410
        %v593 = vunpack.c.l.b16 %v411
        %v594 = vunpack.c.h.b16 %v411
        %v595 = vunpack.c.l.b16 %v412
        %v596 = vunpack.c.h.b16 %v412
        %v597 = vunpack.c.l.b16 %v413
        %v598 = vunpack.c.h.b16 %v413
        %v599 = vunpack.c.l.b16 %v414
        %v600 = vunpack.c.h.b16 %v414
        %v601 = vunpack.c.l.b16 %v415
        %v602 = vunpack.c.h.b16 %v415
        %v603 = vunpack.c.l.b16 %v416
        %v604 = vunpack.c.h.b16 %v416
        %v605 = vunpack.c.l.b16 %v417
        %v606 = vunpack.c.h.b16 %v417
        %v607 = vunpack.c.l.b16 %v418
        %v608 = vunpack.c.h.b16 %v418
        %v609 = vunpack.c.l.b16 %v419
        %v610 = vunpack.c.h.b16 %v419
        %v611 = vunpack.c.l.b16 %v420
        %v612 = vunpack.c.h.b16 %v420
        %v613 = vunpack.c.l.b16 %v421
        %v614 = vunpack.c.h.b16 %v421
        %v615 = vunpack.c.l.b16 %v422
        %v616 = vunpack.c.h.b16 %v422
        %v617 = vunpack.c.l.b16 %v423
        %v618 = vunpack.c.h.b16 %v423
        %v619 = vunpack.c.l.b16 %v424
        %v620 = vunpack.c.h.b16 %v424
        %v621 = vunpack.c.l.b16 %v425
        %v622 = vunpack.c.h.b16 %v425
        %v623 = vunpack.c.l.b16 %v426
        %v624 = vunpack.c.h.b16 %v426
        %v625 = vunpack.c.l.b16 %v427
        %v626 = vunpack.c.h.b16 %v427
        %v627 = vunpack.c.l.b16 %v428
        %v628 = vunpack.c.h.b16 %v428
        %v629 = vunpack.c.l.b16 %v429
        %v630 = vunpack.c.h.b16 %v429
        %v631 = vunpack.c.l.b16 %v430
        %v632 = vunpack.c.h.b16 %v430
        %v633 = vunpack.c.l.b16 %v431
        %v634 = vunpack.c.h.b16 %v431
        %v635 = vunpack.c.l.b16 %v432
        %v636 = vunpack.c.h.b16 %v432
        %v637 = vunpack.c.l.b16 %v433
        %v638 = vunpack.c.h.b16 %v433
        %v639 = vunpack.c.l.b16 %v434
        %v640 = vunpack.c.h.b16 %v434
        %v641 = vunpack.c.l.b16 %v435
        %v642 = vunpack.c.h.b16 %v435
        %v643 = vunpack.c.l.b16 %v436
        %v644 = vunpack.c.h.b16 %v436
        %v645 = vunpack.c.l.b16 %v437
        %v646 = vunpack.c.h.b16 %v437
        %v647 = vunpack.c.l.b16 %v438
        %v648 = vunpack.c.h.b16 %v438
        %v649 = vunpack.c.l.b16 %v439
        %v650 = vunpack.c.h.b16 %v439
        %v651 = vunpack.c.l.b16 %v440
        %v652 = vunpack.c.h.b16 %v440
        %v653 = vunpack.c.l.b16 %v441
        %v654 = vunpack.c.h.b16 %v441
        %v655 = vunpack.c.l.b16 %v442
        %v656 = vunpack.c.h.b16 %v442
        %v657 = vunpack.c.l.b16 %v443
        %v658 = vunpack.c.h.b16 %v443
        %v659 = vunpack.c.l.b16 %v444
        %v660 = vunpack.c.h.b16 %v444
        %v661 = vunpack.c.l.b16 %v445
        %v662 = vunpack.c.h.b16 %v445
        %v663 = vunpack.c.l.b16 %v446
        %v664 = vunpack.c.h.b16 %v446
        %v665 = vunpack.c.l.b16 %v447
        %v666 = vunpack.c.h.b16 %v447
        %v667 = vunpack.c.l.b16 %v448
        %v668 = vunpack.c.h.b16 %v448
        %v669 = vunpack.c.l.b16 %v449
        %v670 = vunpack.c.h.b16 %v449
        %v671 = vunpack.c.l.b16 %v450
        %v672 = vunpack.c.h.b16 %v450
        %v673 = vunpack.c.l.b16 %v451
        %v674 = vunpack.c.h.b16 %v451
        %v675 = vunpack.c.l.b16 %v452
        %v676 = vunpack.c.h.b16 %v452
        %v677 = vunpack.c.l.b16 %v453
        %v678 = vunpack.c.h.b16 %v453
        %v679 = vunpack.c.l.b16 %v454
        %v680 = vunpack.c.h.b16 %v454
        %v681 = vunpack.c.l.b16 %v455
        %v682 = vunpack.c.h.b16 %v455
        %v683 = vunpack.c.l.b16 %v456
        %v684 = vunpack.c.h.b16 %v456
        %v685 = vunpack.c.l.b16 %v457
        %v686 = vunpack.c.h.b16 %v457
        %v687 = vunpack.c.l.b16 %v458
        %v688 = vunpack.c.h.b16 %v458
        %v689 = vunpack.c.l.b16 %v459
        %v690 = vunpack.c.h.b16 %v459
        %v691 = vunpack.c.l.b16 %v460
        %v692 = vunpack.c.h.b16 %v460
        %v693 = vunpack.c.l.b16 %v461
        %v694 = vunpack.c.h.b16 %v461
        %v695 = vunpack.c.l.b16 %v462
        %v696 = vunpack.c.h.b16 %v462
        %v697 = vunpack.c.l.b16 %v463
        %v698 = vunpack.c.h.b16 %v463
        %v699 = vunpack.c.l.b16 %v464
        %v700 = vunpack.c.h.b16 %v464
        %v701 = vunpack.c.l.b16 %v465
        %v702 = vunpack.c.h.b16 %v465
        %v703 = vpack.c.b16 %v567, %v559
        %v704 = vpack.c.b16 %v568, %v560
        %v705 = vpack.c.b16 %v569, %v561
        %v706 = vpack.c.b16 %v570, %v562
        %v707 = vpack.c.b16 %v571, %v563
        %v708 = vpack.c.b16 %v572, %v564
        %v709 = vpack.c.b16 %v573, %v565
        %v710 = vpack.c.b16 %v574, %v566
        %v711 = vpack.c.b16 %v583, %v575
        %v712 = vpack.c.b16 %v584, %v576
        %v713 = vpack.c.b16 %v585, %v577
        %v714 = vpack.c.b16 %v586, %v578
        %v715 = vpack.c.b16 %v587, %v579
        %v716 = vpack.c.b16 %v588, %v580
        %v717 = vpack.c.b16 %v589, %v581
        %v718 = vpack.c.b16 %v590, %v582
        %v719 = vpack.c.b16 %v599, %v591
        %v720 = vpack.c.b16 %v600, %v592
        %v721 = vpack.c.b16 %v601, %v593
        %v722 = vpack.c.b16 %v602, %v594
        %v723 = vpack.c.b16 %v603, %v595
        %v724 = vpack.c.b16 %v604, %v596
        %v725 = vpack.c.b16 %v605, %v597
        %v726 = vpack.c.b16 %v606, %v598
        %v727 = vpack.c.b16 %v615, %v607
        %v728 = vpack.c.b16 %v616, %v608
        %v729 = vpack.c.b16 %v617, %v609
        %v730 = vpack.c.b16 %v618, %v610
        %v731 = vpack.c.b16 %v619, %v611
        %v732 = vpack.c.b16 %v620, %v612
        %v733 = vpack.c.b16 %v621, %v613
        %v734 = vpack.c.b16 %v622, %v614
        %v735 = vpack.c.b16 %v631, %v623
        %v736 = vpack.c.b16 %v632, %v624
        %v737 = vpack.c.b16 %v633, %v625
        %v738 = vpack.c.b16 %v634, %v626
        %v739 = vpack.c.b16 %v635, %v627
        %v740 = vpack.c.b16 %v636, %v628
        %v741 = vpack.c.b16 %v637, %v629
        %v742 = vpack.c.b16 %v638, %v630
        %v743 = vpack.c.b16 %v647, %v639
        %v744 = vpack.c.b16 %v648, %v640
        %v745 = vpack.c.b16 %v649, %v641
        %v746 = vpack.c.b16 %v650, %v642
        %v747 = vpack.c.b16 %v651, %v643
        %v748 = vpack.c.b16 %v652, %v644
        %v749 = vpack.c.b16 %v653, %v645
        %v750 = vpack.c.b16 %v654, %v646
        %v751 = vpack.c.b16 %v663, %v655
        %v752 = vpack.c.b16 %v664, %v656
        %v753 = vpack.c.b16 %v665, %v657
        %v754 = vpack.c.b16 %v666, %v658
        %v755 = vpack.c.b16 %v667, %v659
        %v756 = vpack.c.b16 %v668, %v660
        %v757 = vpack.c.b16 %v669, %v661
        %v758 = vpack.c.b16 %v670, %v662
        %v759 = vpack.c.b16 %v679, %v671
        %v760 = vpack.c.b16 %v680, %v672
        %v761 = vpack.c.b16 %v681, %v673
        %v762 = vpack.c.b16 %v682, %v674
        %v763 = vpack.c.b16 %v683, %v675
        %v764 = vpack.c.b16 %v684, %v676
        %v765 = vpack.c.b16 %v685, %v677
        %v766 = vpack.c.b16 %v686, %v678
        %v767 = vpack.c.b16 %v695, %v687
        %v768 = vpack.c.b16 %v696, %v688
        %v769 = vpack.c.b16 %v697, %v689
        %v770 = vpack.c.b16 %v698, %v690
        %v771 = vpack.c.b16 %v699, %v691
        %v772 = vpack.c.b16 %v700, %v692
        %v773 = vpack.c.b16 %v701, %v693
        %v774 = vpack.c.b16 %v702, %v694
        %vm847 = vcmask 130048
        %v849 = vsel %vm847, %v485, 0
        %851 = vmatpush.bf16.msra.mxu0 %v759
        %852 = vmatpush.bf16.msra.mxu0 %v751
        %853 = vmatpush.bf16.msra.mxu0 %v743
        %854 = vmatpush.bf16.msra.mxu0 %v735
        %855 = vmatpush.bf16.msra.mxu0 %v727
        %856 = vmatpush.bf16.msra.mxu0 %v719
        %857 = vmatpush.bf16.msra.mxu0 %v711
        %858 = vmatpush.bf16.msra.mxu0 %v703
        %859 = vmatmul.bf16.gmra.mxu0 %v484
        %v860 = vpop.f32.mrf.mxu0
        %v861 = vadd.f32 %v471, %v860
        %v862 = vpop.f32.mrf.mxu0
        %v863 = vadd.f32 %v476, %v862
        %864 = vdwg.mxu0
        %865 = vmatpush.bf16.msra.mxu0 0
        %866 = vmatpush.bf16.msra.mxu0 0
        %867 = vmatpush.bf16.msra.mxu0 0
        %868 = vmatpush.bf16.msra.mxu0 0
        %869 = vmatpush.bf16.msra.mxu0 0
        %870 = vmatpush.bf16.msra.mxu0 0
        %871 = vmatpush.bf16.msra.mxu0 0
        %872 = vmatpush.bf16.msra.mxu0 %v767
        %873 = vmatmul.bf16.gmra.mxu0 %v849
        %v874 = vpop.f32.mrf.mxu0
        %v875 = vadd.f32 %v861, %v874
        %v876 = vpop.f32.mrf.mxu0
        %v877 = vadd.f32 %v863, %v876
        %878 = vdwg.mxu0
        %879 = vmatpush.bf16.msra.mxu0 %v760
        %880 = vmatpush.bf16.msra.mxu0 %v752
        %881 = vmatpush.bf16.msra.mxu0 %v744
        %882 = vmatpush.bf16.msra.mxu0 %v736
        %883 = vmatpush.bf16.msra.mxu0 %v728
        %884 = vmatpush.bf16.msra.mxu0 %v720
        %885 = vmatpush.bf16.msra.mxu0 %v712
        %886 = vmatpush.bf16.msra.mxu0 %v704
        %887 = vmatmul.bf16.gmra.mxu0 %v484
        %v888 = vpop.f32.mrf.mxu0
        %v889 = vadd.f32 %v471, %v888
        %v890 = vpop.f32.mrf.mxu0
        %v891 = vadd.f32 %v476, %v890
        %892 = vdwg.mxu0
        %893 = vmatpush.bf16.msra.mxu0 0
        %894 = vmatpush.bf16.msra.mxu0 0
        %895 = vmatpush.bf16.msra.mxu0 0
        %896 = vmatpush.bf16.msra.mxu0 0
        %897 = vmatpush.bf16.msra.mxu0 0
        %898 = vmatpush.bf16.msra.mxu0 0
        %899 = vmatpush.bf16.msra.mxu0 0
        %900 = vmatpush.bf16.msra.mxu0 %v768
        %901 = vmatmul.bf16.gmra.mxu0 %v849
        %v902 = vpop.f32.mrf.mxu0
        %v903 = vadd.f32 %v889, %v902
        %v904 = vpop.f32.mrf.mxu0
        %v905 = vadd.f32 %v891, %v904
        %906 = vdwg.mxu0
        %907 = vmatpush.bf16.msra.mxu0 %v761
        %908 = vmatpush.bf16.msra.mxu0 %v753
        %909 = vmatpush.bf16.msra.mxu0 %v745
        %910 = vmatpush.bf16.msra.mxu0 %v737
        %911 = vmatpush.bf16.msra.mxu0 %v729
        %912 = vmatpush.bf16.msra.mxu0 %v721
        %913 = vmatpush.bf16.msra.mxu0 %v713
        %914 = vmatpush.bf16.msra.mxu0 %v705
        %915 = vmatmul.bf16.gmra.mxu0 %v484
        %v916 = vpop.f32.mrf.mxu0
        %v917 = vadd.f32 %v471, %v916
        %v918 = vpop.f32.mrf.mxu0
        %v919 = vadd.f32 %v476, %v918
        %920 = vdwg.mxu0
        %921 = vmatpush.bf16.msra.mxu0 0
        %922 = vmatpush.bf16.msra.mxu0 0
        %923 = vmatpush.bf16.msra.mxu0 0
        %924 = vmatpush.bf16.msra.mxu0 0
        %925 = vmatpush.bf16.msra.mxu0 0
        %926 = vmatpush.bf16.msra.mxu0 0
        %927 = vmatpush.bf16.msra.mxu0 0
        %928 = vmatpush.bf16.msra.mxu0 %v769
        %929 = vmatmul.bf16.gmra.mxu0 %v849
        %v930 = vpop.f32.mrf.mxu0
        %v931 = vadd.f32 %v917, %v930
        %v932 = vpop.f32.mrf.mxu0
        %v933 = vadd.f32 %v919, %v932
        %934 = vdwg.mxu0
        %935 = vmatpush.bf16.msra.mxu0 %v762
        %936 = vmatpush.bf16.msra.mxu0 %v754
        %937 = vmatpush.bf16.msra.mxu0 %v746
        %938 = vmatpush.bf16.msra.mxu0 %v738
        %939 = vmatpush.bf16.msra.mxu0 %v730
        %940 = vmatpush.bf16.msra.mxu0 %v722
        %941 = vmatpush.bf16.msra.mxu0 %v714
        %942 = vmatpush.bf16.msra.mxu0 %v706
        %943 = vmatmul.bf16.gmra.mxu0 %v484
        %v944 = vpop.f32.mrf.mxu0
        %v945 = vadd.f32 %v471, %v944
        %v946 = vpop.f32.mrf.mxu0
        %v947 = vadd.f32 %v476, %v946
        %948 = vdwg.mxu0
        %949 = vmatpush.bf16.msra.mxu0 0
        %950 = vmatpush.bf16.msra.mxu0 0
        %951 = vmatpush.bf16.msra.mxu0 0
        %952 = vmatpush.bf16.msra.mxu0 0
        %953 = vmatpush.bf16.msra.mxu0 0
        %954 = vmatpush.bf16.msra.mxu0 0
        %955 = vmatpush.bf16.msra.mxu0 0
        %956 = vmatpush.bf16.msra.mxu0 %v770
        %957 = vmatmul.bf16.gmra.mxu0 %v849
        %v958 = vpop.f32.mrf.mxu0
        %v959 = vadd.f32 %v945, %v958
        %v960 = vpop.f32.mrf.mxu0
        %v961 = vadd.f32 %v947, %v960
        %962 = vdwg.mxu0
        %963 = vmatpush.bf16.msra.mxu0 %v763
        %964 = vmatpush.bf16.msra.mxu0 %v755
        %965 = vmatpush.bf16.msra.mxu0 %v747
        %966 = vmatpush.bf16.msra.mxu0 %v739
        %967 = vmatpush.bf16.msra.mxu0 %v731
        %968 = vmatpush.bf16.msra.mxu0 %v723
        %969 = vmatpush.bf16.msra.mxu0 %v715
        %970 = vmatpush.bf16.msra.mxu0 %v707
        %971 = vmatmul.bf16.gmra.mxu0 %v484
        %v972 = vpop.f32.mrf.mxu0
        %v973 = vadd.f32 %v471, %v972
        %v974 = vpop.f32.mrf.mxu0
        %v975 = vadd.f32 %v476, %v974
        %976 = vdwg.mxu0
        %977 = vmatpush.bf16.msra.mxu0 0
        %978 = vmatpush.bf16.msra.mxu0 0
        %979 = vmatpush.bf16.msra.mxu0 0
        %980 = vmatpush.bf16.msra.mxu0 0
        %981 = vmatpush.bf16.msra.mxu0 0
        %982 = vmatpush.bf16.msra.mxu0 0
        %983 = vmatpush.bf16.msra.mxu0 0
        %984 = vmatpush.bf16.msra.mxu0 %v771
        %985 = vmatmul.bf16.gmra.mxu0 %v849
        %v986 = vpop.f32.mrf.mxu0
        %v987 = vadd.f32 %v973, %v986
        %v988 = vpop.f32.mrf.mxu0
        %v989 = vadd.f32 %v975, %v988
        %990 = vdwg.mxu0
        %991 = vmatpush.bf16.msra.mxu0 %v764
        %992 = vmatpush.bf16.msra.mxu0 %v756
        %993 = vmatpush.bf16.msra.mxu0 %v748
        %994 = vmatpush.bf16.msra.mxu0 %v740
        %995 = vmatpush.bf16.msra.mxu0 %v732
        %996 = vmatpush.bf16.msra.mxu0 %v724
        %997 = vmatpush.bf16.msra.mxu0 %v716
        %998 = vmatpush.bf16.msra.mxu0 %v708
        %999 = vmatmul.bf16.gmra.mxu0 %v484
        %v1000 = vpop.f32.mrf.mxu0
        %v1001 = vadd.f32 %v471, %v1000
        %v1002 = vpop.f32.mrf.mxu0
        %v1003 = vadd.f32 %v476, %v1002
        %1004 = vdwg.mxu0
        %1005 = vmatpush.bf16.msra.mxu0 0
        %1006 = vmatpush.bf16.msra.mxu0 0
        %1007 = vmatpush.bf16.msra.mxu0 0
        %1008 = vmatpush.bf16.msra.mxu0 0
        %1009 = vmatpush.bf16.msra.mxu0 0
        %1010 = vmatpush.bf16.msra.mxu0 0
        %1011 = vmatpush.bf16.msra.mxu0 0
        %1012 = vmatpush.bf16.msra.mxu0 %v772
        %1013 = vmatmul.bf16.gmra.mxu0 %v849
        %v1014 = vpop.f32.mrf.mxu0
        %v1015 = vadd.f32 %v1001, %v1014
        %v1016 = vpop.f32.mrf.mxu0
        %v1017 = vadd.f32 %v1003, %v1016
        %1018 = vdwg.mxu0
        %1019 = vmatpush.bf16.msra.mxu0 %v765
        %1020 = vmatpush.bf16.msra.mxu0 %v757
        %1021 = vmatpush.bf16.msra.mxu0 %v749
        %1022 = vmatpush.bf16.msra.mxu0 %v741
        %1023 = vmatpush.bf16.msra.mxu0 %v733
        %1024 = vmatpush.bf16.msra.mxu0 %v725
        %1025 = vmatpush.bf16.msra.mxu0 %v717
        %1026 = vmatpush.bf16.msra.mxu0 %v709
        %1027 = vmatmul.bf16.gmra.mxu0 %v484
        %v1028 = vpop.f32.mrf.mxu0
        %v1029 = vadd.f32 %v471, %v1028
        %v1030 = vpop.f32.mrf.mxu0
        %v1031 = vadd.f32 %v476, %v1030
        %1032 = vdwg.mxu0
        %1033 = vmatpush.bf16.msra.mxu0 0
        %1034 = vmatpush.bf16.msra.mxu0 0
        %1035 = vmatpush.bf16.msra.mxu0 0
        %1036 = vmatpush.bf16.msra.mxu0 0
        %1037 = vmatpush.bf16.msra.mxu0 0
        %1038 = vmatpush.bf16.msra.mxu0 0
        %1039 = vmatpush.bf16.msra.mxu0 0
        %1040 = vmatpush.bf16.msra.mxu0 %v773
        %1041 = vmatmul.bf16.gmra.mxu0 %v849
        %v1042 = vpop.f32.mrf.mxu0
        %v1043 = vadd.f32 %v1029, %v1042
        %v1044 = vpop.f32.mrf.mxu0
        %v1045 = vadd.f32 %v1031, %v1044
        %1046 = vdwg.mxu0
        %1047 = vmatpush.bf16.msra.mxu0 %v766
        %1048 = vmatpush.bf16.msra.mxu0 %v758
        %1049 = vmatpush.bf16.msra.mxu0 %v750
        %1050 = vmatpush.bf16.msra.mxu0 %v742
        %1051 = vmatpush.bf16.msra.mxu0 %v734
        %1052 = vmatpush.bf16.msra.mxu0 %v726
        %1053 = vmatpush.bf16.msra.mxu0 %v718
        %1054 = vmatpush.bf16.msra.mxu0 %v710
        %1055 = vmatmul.bf16.gmra.mxu0 %v484
        %v1056 = vpop.f32.mrf.mxu0
        %v1057 = vadd.f32 %v471, %v1056
        %v1058 = vpop.f32.mrf.mxu0
        %v1059 = vadd.f32 %v476, %v1058
        %1060 = vdwg.mxu0
        %1061 = vmatpush.bf16.msra.mxu0 0
        %1062 = vmatpush.bf16.msra.mxu0 0
        %1063 = vmatpush.bf16.msra.mxu0 0
        %1064 = vmatpush.bf16.msra.mxu0 0
        %1065 = vmatpush.bf16.msra.mxu0 0
        %1066 = vmatpush.bf16.msra.mxu0 0
        %1067 = vmatpush.bf16.msra.mxu0 0
        %1068 = vmatpush.bf16.msra.mxu0 %v774
        %1069 = vmatmul.bf16.gmra.mxu0 %v849
        %v1070 = vpop.f32.mrf.mxu0
        %v1071 = vadd.f32 %v1057, %v1070
        %v1072 = vpop.f32.mrf.mxu0
        %v1073 = vadd.f32 %v1059, %v1072
        %1074 = vdwg.mxu0
        %v1075 = vtanh.pop %v875
        %v1076 = vtanh.pop %v903
        %v1077 = vtanh.pop %v931
        %v1078 = vtanh.pop %v959
        %v1079 = vtanh.pop %v987
        %v1080 = vtanh.pop %v1015
        %v1081 = vtanh.pop %v1043
        %v1082 = vtanh.pop %v1071
        %v1083 = vtanh.pop %v877
        %v1084 = vtanh.pop %v905
        %v1085 = vtanh.pop %v933
        %v1086 = vtanh.pop %v961
        %v1087 = vtanh.pop %v989
        %v1088 = vtanh.pop %v1017
        %v1089 = vtanh.pop %v1045
        %v1090 = vtanh.pop %v1073
        %1091 = vst [vmem:[%s374] sm:$0xff] %v1075
        %1092 = vst [vmem:[%s374 + $0x8] sm:$0xff] %v1076
        %1093 = vst [vmem:[%s374 + $0x10] sm:$0xff] %v1077
        %1094 = vst [vmem:[%s374 + $0x18] sm:$0xff] %v1078
        %1095 = vst [vmem:[%s374 + $0x20] sm:$0xff] %v1079
        %1096 = vst [vmem:[%s374 + $0x28] sm:$0xff] %v1080
        %1097 = vst [vmem:[%s374 + $0x30] sm:$0xff] %v1081
        %1098 = vst [vmem:[%s374 + $0x38] sm:$0xff] %v1082
        %1099 = vst [vmem:[%s374 + $0x40] sm:$0xf] %v1083
        %1100 = vst [vmem:[%s374 + $0x48] sm:$0xf] %v1084
        %1101 = vst [vmem:[%s374 + $0x50] sm:$0xf] %v1085
        %1102 = vst [vmem:[%s374 + $0x58] sm:$0xf] %v1086
        %1103 = vst [vmem:[%s374 + $0x60] sm:$0xf] %v1087
        %1104 = vst [vmem:[%s374 + $0x68] sm:$0xf] %v1088
        %1105 = vst [vmem:[%s374 + $0x70] sm:$0xf] %v1089
        %1106 = vst [vmem:[%s374 + $0x78] sm:$0xf] %v1090
        %s1107 = sand.u32 %s114, 1
        %s1108 = sand.u32 %s114, 1
        %s1109 = smul.addr %s1108, 128
        %s1110 = scalar_lea.vmem [#allocation3], %s1109
        // Predicated region
        $region56: #{generator1_forward.9} parent=50 // pred_check
          %p1111 = pneg %p124
        $region57: #{generator1_forward.9} parent=50 // pred_check_branch
          %1113 = sbr.rel (%p1111) target = $region59
        $region58: #{generator1_forward.9} parent=50 // pred_region
          %s1114 = smul.u32 2, %s18
          %s1115 = smul.u32 8, %s19
          %s1116 = smul.addr %s1114, 16
          %s1117 = sadd.s32 %s1115, %s1116
          %s1118 = smul.addr %s1117, 8
          %s1119 = scalar_lea.vmem %s3, %s1118
          // Predicated region
          $region60: #{generator1_forward.9} parent=58 // pred_check
            _
          $region61: #{generator1_forward.9} parent=58 // pred_check_branch
            %1121 = sbr.rel (0) target = $region63
          $region62: #{generator1_forward.9} parent=58 // pred_region
            // Predicated region
            $region64: #{generator1_forward.9} parent=62 // pred_check
              _
            $region65: #{generator1_forward.9} parent=62 // pred_check_branch
              %1123 = sbr.rel (0) target = $region67
            $region66: #{generator1_forward.9} parent=62 // pred_region
              loop: start=0, step=1, limit=1
              $region68: #{generator1_forward.9} parent=66 // loop_pre_header
                _
              $region69: #{generator1_forward.9} parent=66 // loop_header
                %s1125 = sphi 0, %s1129
                %p1126 = scmp.ge.s32.totalorder %s1125, 1
                %s1130 = sphi %s1110, %s1110
                %s1131 = sphi %s1119, %s1119
              $region70: #{generator1_forward.9} parent=66 // loop_header_branch
                %1128 = sbr.rel (%p1126) target = $region74
              $region71: #{generator1_forward.9} parent=66 // loop_body
                %v1132 = vld [vmem:[%s1130] sm:$0xff]
                %1133 = vst [vmem:[%s1131] sm:$0xff] %v1132
                %v1134 = vld [vmem:[%s1130 + $0x8] sm:$0xff]
                %1135 = vst [vmem:[%s1131 + $0x8] sm:$0xff] %v1134
                %v1136 = vld [vmem:[%s1130 + $0x10] sm:$0xff]
                %1137 = vst [vmem:[%s1131 + $0x10] sm:$0xff] %v1136
                %v1138 = vld [vmem:[%s1130 + $0x18] sm:$0xff]
                %1139 = vst [vmem:[%s1131 + $0x18] sm:$0xff] %v1138
                %v1140 = vld [vmem:[%s1130 + $0x20] sm:$0xff]
                %1141 = vst [vmem:[%s1131 + $0x20] sm:$0xff] %v1140
                %v1142 = vld [vmem:[%s1130 + $0x28] sm:$0xff]
                %1143 = vst [vmem:[%s1131 + $0x28] sm:$0xff] %v1142
                %v1144 = vld [vmem:[%s1130 + $0x30] sm:$0xff]
                %1145 = vst [vmem:[%s1131 + $0x30] sm:$0xff] %v1144
                %v1146 = vld [vmem:[%s1130 + $0x38] sm:$0xff]
                %1147 = vst [vmem:[%s1131 + $0x38] sm:$0xff] %v1146
                %v1148 = vld [vmem:[%s1130 + $0x40] sm:$0xff]
                %1149 = vst [vmem:[%s1131 + $0x80] sm:$0xff] %v1148
                %v1150 = vld [vmem:[%s1130 + $0x48] sm:$0xff]
                %1151 = vst [vmem:[%s1131 + $0x88] sm:$0xff] %v1150
                %v1152 = vld [vmem:[%s1130 + $0x50] sm:$0xff]
                %1153 = vst [vmem:[%s1131 + $0x90] sm:$0xff] %v1152
                %v1154 = vld [vmem:[%s1130 + $0x58] sm:$0xff]
                %1155 = vst [vmem:[%s1131 + $0x98] sm:$0xff] %v1154
                %v1156 = vld [vmem:[%s1130 + $0x60] sm:$0xff]
                %1157 = vst [vmem:[%s1131 + $0xa0] sm:$0xff] %v1156
                %v1158 = vld [vmem:[%s1130 + $0x68] sm:$0xff]
                %1159 = vst [vmem:[%s1131 + $0xa8] sm:$0xff] %v1158
                %v1160 = vld [vmem:[%s1130 + $0x70] sm:$0xff]
                %1161 = vst [vmem:[%s1131 + $0xb0] sm:$0xff] %v1160
                %v1162 = vld [vmem:[%s1130 + $0x78] sm:$0xff]
                %1163 = vst [vmem:[%s1131 + $0xb8] sm:$0xff] %v1162
              $region72: #{generator1_forward.9} parent=66 // loop_footer
                %s1129 = sadd.s32 1, %s1125
              $region73: #{generator1_forward.9} parent=66 // loop_footer_branch
                %1124 = sbr.rel target = $region69
              $region74: #{generator1_forward.9} parent=66 // loop_exit
                _
            $region67: #{generator1_forward.9} parent=62 // pred_fallthru
              _
            // Predicated region
            $region75: #{generator1_forward.9} parent=62 // pred_check
              _
            $region76: #{generator1_forward.9} parent=62 // pred_check_branch
              %1165 = sbr.rel target = $region78
            $region77: #{generator1_forward.9} parent=62 // pred_region
              _
            $region78: #{generator1_forward.9} parent=62 // pred_fallthru
              _
          $region63: #{generator1_forward.9} parent=58 // pred_fallthru
            _
          %1166 = vnop
        $region59: #{generator1_forward.9} parent=50 // pred_fallthru
          _
      $region51: #{generator1_forward.9} parent=5 // pred_fallthru
        _
      %p1167 = scmp.le.s32.totalorder 2, %s9
      // Predicated region
      $region79: #{generator1_forward.9} parent=5 // pred_check
        %p1168 = pneg %p1167
      $region80: #{generator1_forward.9} parent=5 // pred_check_branch
        %1170 = sbr.rel (%p1168) target = $region82
      $region81: #{generator1_forward.9} parent=5 // pred_region
        %s1171 = ssub.s32 %s9, 2
        // Predicated region
        $region83: #{generator1_forward.9} parent=81 // pred_check
          %p1172 = pneg %p130
        $region84: #{generator1_forward.9} parent=81 // pred_check_branch
          %1174 = sbr.rel (%p1172) target = $region86
        $region85: #{generator1_forward.9} parent=81 // pred_region
          %s1175 = sand.u32 %s115, 1
          %s1176 = sand.u32 %s115, 1
          %s1177 = smul.addr %s1176, 128
          %s1178 = scalar_lea.vmem [#allocation3], %s1177
        $region86: #{generator1_forward.9} parent=81 // pred_fallthru
          _
      $region82: #{generator1_forward.9} parent=5 // pred_fallthru
        _
    $region6: #{generator1_forward.9} parent=1 // loop_footer
      %s13 = sadd.s32 1, %s9
    $region7: #{generator1_forward.9} parent=1 // loop_footer_branch
      %8 = sbr.rel target = $region3
    $region8: #{generator1_forward.9} parent=1 // loop_exit
      _

</llo_original>
